<compile_context>
chip_gen: v5e
topology: v5e:2x2
jax: 0.10.0
libtpu: 0.0.40
codegen_flags: <defaults>
</compile_context>

<pallas_src>
import math
from functools import partial

import jax
import jax.numpy as jnp
from jax import lax
from jax.experimental import pallas as pl
from jax.experimental.pallas import tpu as pltpu


# ----------------------------------------------------------------------------
# Fused kernel: per-head q GEMM + transposed kv GEMM -> softmax(q k_t) v_t
#               -> per-head projection accumulate + bias.
# One grid step handles `bpg` batch elements; heads are a static unrolled loop.
# ----------------------------------------------------------------------------
def _attention_kernel(x_ref, wqh_ref, wkvt_ref, wproj_ref, bproj_ref, o_ref, *, num_heads):
    # x_ref:     (bpg, N, C)   model dtype (f32 / bf16)
    # wqh_ref:   (nh, C, hd)   per-head q projection, softmax scale pre-folded
    # wkvt_ref:  (2C, C)       kv projection, feature-major: rows [0,C)=k, [C,2C)=v
    # wproj_ref: (C, C)        output projection (applied as y = a @ wproj)
    # bproj_ref: (1, C)        output projection bias
    # o_ref:     (bpg, N, C)
    bpg, n_tok, c = x_ref.shape
    hd = c // num_heads

    wq_heads = wqh_ref[...]                        # (nh, C, hd)
    w_kvt = wkvt_ref[...]                          # (2C, C)
    w_proj = wproj_ref[...]                        # (C, C)
    bias = bproj_ref[...].astype(jnp.float32)      # (1, C)

    for b in range(bpg):                           # static unroll over the batch block
        x_b = x_ref[b]                             # (N, C), model dtype straight to the MXU
        cdt = x_b.dtype

        # kv in transposed (feature-major) layout: contraction is lhs-last x rhs-last
        # (native transpose_rhs MXU path); per-head slices below are sublane slices
        # at multiples of hd (tile-aligned).
        kv_t = lax.dot_general(
            w_kvt, x_b, (((1,), (1,)), ((), ())),
            preferred_element_type=jnp.float32).astype(cdt)           # (2C, N)

        acc = None
        for h in range(num_heads):                 # static unroll (small nh)
            # q for this head: no slicing of activations, scale already in the weight.
            q_h = jnp.dot(x_b, wq_heads[h],
                          preferred_element_type=jnp.float32).astype(cdt)   # (N, hd)
            k_t = kv_t[h * hd:(h + 1) * hd, :]                               # (hd, N)
            v_t = kv_t[c + h * hd:c + (h + 1) * hd, :]                       # (hd, N)

            # scores: (N, hd) @ (hd, N) -> native MXU contraction, no transposes.
            s = jnp.dot(q_h, k_t, preferred_element_type=jnp.float32)        # (N, N) f32
            s = s - jnp.max(s, axis=-1, keepdims=True)
            p = jnp.exp(s)
            p = p * pl.reciprocal(jnp.sum(p, axis=-1, keepdims=True))        # exact

            # p @ v: contract over keys with v in (hd, N) -> rhs-transposed MXU path.
            out_h = lax.dot_general(
                p.astype(cdt), v_t, (((1,), (1,)), ((), ())),
                preferred_element_type=jnp.float32)                          # (N, hd)

            # Fold the output projection into the head loop: sublane-aligned row slice
            # of wproj, accumulate in f32 (replaces concatenate + one big proj GEMM).
            contrib = jnp.dot(out_h.astype(cdt), w_proj[h * hd:(h + 1) * hd, :],
                              preferred_element_type=jnp.float32)            # (N, C)
            acc = contrib if acc is None else acc + contrib

        o_ref[b] = (acc + bias).astype(o_ref.dtype)


# ----------------------------------------------------------------------------
# Wrapper: weight preparation (constants, free under jit) + pallas_call.
# ----------------------------------------------------------------------------
def prepare_weights(wq, wkv, wproj, bproj, num_heads, qk_scale=None):
    """Reorganize nn.Linear weights (given in `x @ W` form) into the kernel layout.

    wq:    (C, C)      q.weight^T
    wkv:   (C, 2C)     kv.weight^T   (columns [0,C)=k, [C,2C)=v, feature index h*hd+d)
    wproj: (C, C)      proj.weight^T
    bproj: (C,)        proj.bias
    """
    C = wq.shape[0]
    assert C % num_heads == 0
    hd = C // num_heads
    scale = (hd ** -0.5) if qk_scale is None else qk_scale
    # Per-head q weights with the softmax scale folded in: (nh, C, hd).
    wq_heads = (wq * scale).reshape(C, num_heads, hd).transpose(1, 0, 2)
    # kv weight transposed to feature-major (2C, C): rows [0,C)=k, [C,2C)=v.
    wkv_t = wkv.T
    return wq_heads, wkv_t, wproj, bproj.reshape(1, C)


def attention(x, wq_heads, wkv_t, wproj, bproj, *, num_heads, sr_ratio=1,
              batch_block=None, vmem_limit_bytes=None):
    """Attention.forward for sr_ratio == 1 (module default).

    x: (B, N, C). batch_block: batch elements per grid step (None -> all of B in one
    step, best for single-TC v5e/v6e; use 1 on v7x to spread batches over both TCs).
    """
    assert sr_ratio == 1, "sr_ratio > 1 branch not implemented (see TODO at top of file)"
    B, N, C = x.shape
    assert C % num_heads == 0
    hd = C // num_heads

    bpg = B if batch_block is None else batch_block
    assert B % bpg == 0, (B, bpg)

    cp_kwargs = dict(dimension_semantics=("parallel",))
    if vmem_limit_bytes is not None:
        cp_kwargs["vmem_limit_bytes"] = vmem_limit_bytes

    return pl.pallas_call(
        partial(_attention_kernel, num_heads=num_heads),
        out_shape=jax.ShapeDtypeStruct((B, N, C), x.dtype),
        grid=(B // bpg,),
        in_specs=[
            pl.BlockSpec((bpg, N, C), lambda i: (i, 0, 0)),
            pl.BlockSpec((num_heads, C, hd), lambda i: (0, 0, 0)),
            pl.BlockSpec((2 * C, C), lambda i: (0, 0)),
            pl.BlockSpec((C, C), lambda i: (0, 0)),
            pl.BlockSpec((1, C), lambda i: (0, 0)),
        ],
        out_specs=pl.BlockSpec((bpg, N, C), lambda i: (i, 0, 0)),
        compiler_params=pltpu.CompilerParams(**cp_kwargs),
    )(x, wq_heads, wkv_t, wproj, bproj)


# ----------------------------------------------------------------------------
# Pure-JAX reference (mirrors the PyTorch forward) for a numerical sanity check.
# ----------------------------------------------------------------------------
def attention_ref(x, wq, wkv, wproj, bproj, num_heads):
    B, N, C = x.shape
    hd = C // num_heads
    scale = hd ** -0.5
    q = (x @ wq).reshape(B, N, num_heads, hd).transpose(0, 2, 1, 3)
    kv = (x @ wkv).reshape(B, N, 2, num_heads, hd).transpose(2, 0, 3, 1, 4)
    k, v = kv[0], kv[1]
    attn = (q @ jnp.swapaxes(k, -1, -2)) * scale
    attn = jax.nn.softmax(attn, axis=-1)
    out = (attn @ v).transpose(0, 2, 1, 3).reshape(B, N, C)
    return out @ wproj + bproj


if __name__ == "__main__":
    # Small shapes consistent with the module: x is (B, N, C) with N = H * W.
    B, C, NUM_HEADS = 2, 32, 4
    H = W = 8
    N = H * W

    key = jax.random.PRNGKey(0)
    kx, kq, kkv, kp, kb = jax.random.split(key, 5)
    x = jax.random.normal(kx, (B, N, C), jnp.float32)

    # nn.Linear-style init (uniform in +-1/sqrt(fan_in)); qkv_bias=False, proj has bias.
    bound = 1.0 / math.sqrt(C)
    wq = jax.random.uniform(kq, (C, C), jnp.float32, -bound, bound)        # q.weight^T
    wkv = jax.random.uniform(kkv, (C, 2 * C), jnp.float32, -bound, bound)  # kv.weight^T
    wproj = jax.random.uniform(kp, (C, C), jnp.float32, -bound, bound)     # proj.weight^T
    bproj = jax.random.uniform(kb, (C,), jnp.float32, -bound, bound)       # proj.bias

    # One-time constant weight reorganization (head-split q with scale folded, kv transposed).
    wq_heads, wkv_t, wproj_k, bproj_k = prepare_weights(wq, wkv, wproj, bproj, NUM_HEADS)

    fwd = jax.jit(partial(attention, num_heads=NUM_HEADS))
    out = jax.block_until_ready(fwd(x, wq_heads, wkv_t, wproj_k, bproj_k))

    assert out.shape == (B, N, C), out.shape
    assert bool(jnp.all(jnp.isfinite(out)))

    ref = attention_ref(x, wq, wkv, wproj, bproj, NUM_HEADS)
    max_err = float(jnp.max(jnp.abs(out - ref)))
    assert max_err < 1e-3, f"max abs err {max_err}"

    print("KERNEL_OK")
</pallas_src>

<mosaic_0001>
module attributes {stable_mosaic.version = 11 : i64} {
  func.func @_attention_kernel(%arg0: i32, %arg1: memref<2x64x32xf32, #tpu.memory_space<vmem>>, %arg2: memref<4x32x8xf32, #tpu.memory_space<vmem>>, %arg3: memref<64x32xf32, #tpu.memory_space<vmem>>, %arg4: memref<32x32xf32, #tpu.memory_space<vmem>>, %arg5: memref<1x32xf32, #tpu.memory_space<vmem>>, %arg6: memref<2x64x32xf32, #tpu.memory_space<vmem>>) attributes {dimension_semantics = [#tpu.dimension_semantics<parallel>], iteration_bounds = array<i64: 1>, scalar_prefetch = 0 : i64, scratch_operands = 0 : i64, tpu.core_type = #tpu.core_type<tc>, window_params = [{transform_indices = @transform_0, window_bounds = array<i64: 2, 64, 32>}, {pipeline_mode = #tpu.pipeline_mode<synchronous>, transform_indices = @transform_1, window_bounds = array<i64: 4, 32, 8>}, {pipeline_mode = #tpu.pipeline_mode<synchronous>, transform_indices = @transform_2, window_bounds = array<i64: 64, 32>}, {pipeline_mode = #tpu.pipeline_mode<synchronous>, transform_indices = @transform_3, window_bounds = array<i64: 32, 32>}, {pipeline_mode = #tpu.pipeline_mode<synchronous>, transform_indices = @transform_4, window_bounds = array<i64: 1, 32>}, {transform_indices = @transform_5, window_bounds = array<i64: 2, 64, 32>}]} {
    %c0 = arith.constant 0 : index
    %c0_0 = arith.constant 0 : index
    %c0_1 = arith.constant 0 : index
    %0 = vector.load %arg2[%c0, %c0_0, %c0_1] : memref<4x32x8xf32, #tpu.memory_space<vmem>>, vector<4x32x8xf32>
    %c0_2 = arith.constant 0 : index
    %c0_3 = arith.constant 0 : index
    %1 = vector.load %arg3[%c0_2, %c0_3] : memref<64x32xf32, #tpu.memory_space<vmem>>, vector<64x32xf32>
    %c0_4 = arith.constant 0 : index
    %c0_5 = arith.constant 0 : index
    %2 = vector.load %arg4[%c0_4, %c0_5] : memref<32x32xf32, #tpu.memory_space<vmem>>, vector<32x32xf32>
    %c0_6 = arith.constant 0 : index
    %c0_7 = arith.constant 0 : index
    %3 = vector.load %arg5[%c0_6, %c0_7] : memref<1x32xf32, #tpu.memory_space<vmem>>, vector<1x32xf32>
    %c0_8 = arith.constant 0 : index
    %c0_9 = arith.constant 0 : index
    %c0_10 = arith.constant 0 : index
    %4 = vector.load %arg1[%c0_8, %c0_9, %c0_10] : memref<2x64x32xf32, #tpu.memory_space<vmem>>, vector<1x64x32xf32>
    %5 = vector.shape_cast %4 : vector<1x64x32xf32> to vector<64x32xf32>
    %cst = arith.constant dense<0.000000e+00> : vector<64x64xf32>
    %6 = tpu.matmul %1, %5, %cst {dimension_numbers = #tpu.dot_dimension_numbers<[1], [1], [0], [0], [0, 0, 1, 0], [], []>} : vector<64x32xf32>, vector<64x32xf32>, vector<64x64xf32> -> vector<64x64xf32>
    %7 = vector.extract_strided_slice %0 {offsets = [0, 0, 0], sizes = [1, 32, 8], strides = [1, 1, 1]} : vector<4x32x8xf32> to vector<1x32x8xf32>
    %8 = vector.shape_cast %7 : vector<1x32x8xf32> to vector<32x8xf32>
    %cst_11 = arith.constant dense<0.000000e+00> : vector<64x8xf32>
    %9 = tpu.matmul %5, %8, %cst_11 {dimension_numbers = #tpu.dot_dimension_numbers<[1], [0], [0], [1], [0, 0, 1, 1], [], []>} : vector<64x32xf32>, vector<32x8xf32>, vector<64x8xf32> -> vector<64x8xf32>
    %10 = vector.extract_strided_slice %6 {offsets = [0, 0], sizes = [8, 64], strides = [1, 1]} : vector<64x64xf32> to vector<8x64xf32>
    %11 = vector.extract_strided_slice %6 {offsets = [32, 0], sizes = [8, 64], strides = [1, 1]} : vector<64x64xf32> to vector<8x64xf32>
    %cst_12 = arith.constant dense<0.000000e+00> : vector<64x64xf32>
    %12 = tpu.matmul %9, %10, %cst_12 {dimension_numbers = #tpu.dot_dimension_numbers<[1], [0], [0], [1], [0, 0, 1, 1], [], []>} : vector<64x8xf32>, vector<8x64xf32>, vector<64x64xf32> -> vector<64x64xf32>
    %cst_13 = arith.constant dense<0xFF800000> : vector<64xf32>
    %13 = vector.multi_reduction <maximumf>, %12, %cst_13 [1] : vector<64x64xf32> to vector<64xf32>
    %14 = vector.shape_cast %13 : vector<64xf32> to vector<64x1xf32>
    %15 = vector.broadcast %14 : vector<64x1xf32> to vector<64x64xf32>
    %16 = arith.subf %12, %15 : vector<64x64xf32>
    %17 = math.exp %16 : vector<64x64xf32>
    %cst_14 = arith.constant dense<0.000000e+00> : vector<64xf32>
    %18 = vector.multi_reduction <add>, %17, %cst_14 [1] : vector<64x64xf32> to vector<64xf32>
    %19 = vector.shape_cast %18 : vector<64xf32> to vector<64x1xf32>
    %20 = tpu.reciprocal %19 : vector<64x1xf32> -> vector<64x1xf32>
    %21 = vector.broadcast %20 : vector<64x1xf32> to vector<64x64xf32>
    %22 = arith.mulf %17, %21 : vector<64x64xf32>
    %cst_15 = arith.constant dense<0.000000e+00> : vector<64x8xf32>
    %23 = tpu.matmul %22, %11, %cst_15 {dimension_numbers = #tpu.dot_dimension_numbers<[1], [1], [0], [0], [0, 0, 1, 0], [], []>} : vector<64x64xf32>, vector<8x64xf32>, vector<64x8xf32> -> vector<64x8xf32>
    %24 = vector.extract_strided_slice %2 {offsets = [0, 0], sizes = [8, 32], strides = [1, 1]} : vector<32x32xf32> to vector<8x32xf32>
    %cst_16 = arith.constant dense<0.000000e+00> : vector<64x32xf32>
    %25 = tpu.matmul %23, %24, %cst_16 {dimension_numbers = #tpu.dot_dimension_numbers<[1], [0], [0], [1], [0, 0, 1, 1], [], []>} : vector<64x8xf32>, vector<8x32xf32>, vector<64x32xf32> -> vector<64x32xf32>
    %26 = vector.extract_strided_slice %0 {offsets = [1, 0, 0], sizes = [1, 32, 8], strides = [1, 1, 1]} : vector<4x32x8xf32> to vector<1x32x8xf32>
    %27 = vector.shape_cast %26 : vector<1x32x8xf32> to vector<32x8xf32>
    %cst_17 = arith.constant dense<0.000000e+00> : vector<64x8xf32>
    %28 = tpu.matmul %5, %27, %cst_17 {dimension_numbers = #tpu.dot_dimension_numbers<[1], [0], [0], [1], [0, 0, 1, 1], [], []>} : vector<64x32xf32>, vector<32x8xf32>, vector<64x8xf32> -> vector<64x8xf32>
    %29 = vector.extract_strided_slice %6 {offsets = [8, 0], sizes = [8, 64], strides = [1, 1]} : vector<64x64xf32> to vector<8x64xf32>
    %30 = vector.extract_strided_slice %6 {offsets = [40, 0], sizes = [8, 64], strides = [1, 1]} : vector<64x64xf32> to vector<8x64xf32>
    %cst_18 = arith.constant dense<0.000000e+00> : vector<64x64xf32>
    %31 = tpu.matmul %28, %29, %cst_18 {dimension_numbers = #tpu.dot_dimension_numbers<[1], [0], [0], [1], [0, 0, 1, 1], [], []>} : vector<64x8xf32>, vector<8x64xf32>, vector<64x64xf32> -> vector<64x64xf32>
    %cst_19 = arith.constant dense<0xFF800000> : vector<64xf32>
    %32 = vector.multi_reduction <maximumf>, %31, %cst_19 [1] : vector<64x64xf32> to vector<64xf32>
    %33 = vector.shape_cast %32 : vector<64xf32> to vector<64x1xf32>
    %34 = vector.broadcast %33 : vector<64x1xf32> to vector<64x64xf32>
    %35 = arith.subf %31, %34 : vector<64x64xf32>
    %36 = math.exp %35 : vector<64x64xf32>
    %cst_20 = arith.constant dense<0.000000e+00> : vector<64xf32>
    %37 = vector.multi_reduction <add>, %36, %cst_20 [1] : vector<64x64xf32> to vector<64xf32>
    %38 = vector.shape_cast %37 : vector<64xf32> to vector<64x1xf32>
    %39 = tpu.reciprocal %38 : vector<64x1xf32> -> vector<64x1xf32>
    %40 = vector.broadcast %39 : vector<64x1xf32> to vector<64x64xf32>
    %41 = arith.mulf %36, %40 : vector<64x64xf32>
    %cst_21 = arith.constant dense<0.000000e+00> : vector<64x8xf32>
    %42 = tpu.matmul %41, %30, %cst_21 {dimension_numbers = #tpu.dot_dimension_numbers<[1], [1], [0], [0], [0, 0, 1, 0], [], []>} : vector<64x64xf32>, vector<8x64xf32>, vector<64x8xf32> -> vector<64x8xf32>
    %43 = vector.extract_strided_slice %2 {offsets = [8, 0], sizes = [8, 32], strides = [1, 1]} : vector<32x32xf32> to vector<8x32xf32>
    %cst_22 = arith.constant dense<0.000000e+00> : vector<64x32xf32>
    %44 = tpu.matmul %42, %43, %cst_22 {dimension_numbers = #tpu.dot_dimension_numbers<[1], [0], [0], [1], [0, 0, 1, 1], [], []>} : vector<64x8xf32>, vector<8x32xf32>, vector<64x32xf32> -> vector<64x32xf32>
    %45 = arith.addf %25, %44 : vector<64x32xf32>
    %46 = vector.extract_strided_slice %0 {offsets = [2, 0, 0], sizes = [1, 32, 8], strides = [1, 1, 1]} : vector<4x32x8xf32> to vector<1x32x8xf32>
    %47 = vector.shape_cast %46 : vector<1x32x8xf32> to vector<32x8xf32>
    %cst_23 = arith.constant dense<0.000000e+00> : vector<64x8xf32>
    %48 = tpu.matmul %5, %47, %cst_23 {dimension_numbers = #tpu.dot_dimension_numbers<[1], [0], [0], [1], [0, 0, 1, 1], [], []>} : vector<64x32xf32>, vector<32x8xf32>, vector<64x8xf32> -> vector<64x8xf32>
    %49 = vector.extract_strided_slice %6 {offsets = [16, 0], sizes = [8, 64], strides = [1, 1]} : vector<64x64xf32> to vector<8x64xf32>
    %50 = vector.extract_strided_slice %6 {offsets = [48, 0], sizes = [8, 64], strides = [1, 1]} : vector<64x64xf32> to vector<8x64xf32>
    %cst_24 = arith.constant dense<0.000000e+00> : vector<64x64xf32>
    %51 = tpu.matmul %48, %49, %cst_24 {dimension_numbers = #tpu.dot_dimension_numbers<[1], [0], [0], [1], [0, 0, 1, 1], [], []>} : vector<64x8xf32>, vector<8x64xf32>, vector<64x64xf32> -> vector<64x64xf32>
    %cst_25 = arith.constant dense<0xFF800000> : vector<64xf32>
    %52 = vector.multi_reduction <maximumf>, %51, %cst_25 [1] : vector<64x64xf32> to vector<64xf32>
    %53 = vector.shape_cast %52 : vector<64xf32> to vector<64x1xf32>
    %54 = vector.broadcast %53 : vector<64x1xf32> to vector<64x64xf32>
    %55 = arith.subf %51, %54 : vector<64x64xf32>
    %56 = math.exp %55 : vector<64x64xf32>
    %cst_26 = arith.constant dense<0.000000e+00> : vector<64xf32>
    %57 = vector.multi_reduction <add>, %56, %cst_26 [1] : vector<64x64xf32> to vector<64xf32>
    %58 = vector.shape_cast %57 : vector<64xf32> to vector<64x1xf32>
    %59 = tpu.reciprocal %58 : vector<64x1xf32> -> vector<64x1xf32>
    %60 = vector.broadcast %59 : vector<64x1xf32> to vector<64x64xf32>
    %61 = arith.mulf %56, %60 : vector<64x64xf32>
    %cst_27 = arith.constant dense<0.000000e+00> : vector<64x8xf32>
    %62 = tpu.matmul %61, %50, %cst_27 {dimension_numbers = #tpu.dot_dimension_numbers<[1], [1], [0], [0], [0, 0, 1, 0], [], []>} : vector<64x64xf32>, vector<8x64xf32>, vector<64x8xf32> -> vector<64x8xf32>
    %63 = vector.extract_strided_slice %2 {offsets = [16, 0], sizes = [8, 32], strides = [1, 1]} : vector<32x32xf32> to vector<8x32xf32>
    %cst_28 = arith.constant dense<0.000000e+00> : vector<64x32xf32>
    %64 = tpu.matmul %62, %63, %cst_28 {dimension_numbers = #tpu.dot_dimension_numbers<[1], [0], [0], [1], [0, 0, 1, 1], [], []>} : vector<64x8xf32>, vector<8x32xf32>, vector<64x32xf32> -> vector<64x32xf32>
    %65 = arith.addf %45, %64 : vector<64x32xf32>
    %66 = vector.extract_strided_slice %0 {offsets = [3, 0, 0], sizes = [1, 32, 8], strides = [1, 1, 1]} : vector<4x32x8xf32> to vector<1x32x8xf32>
    %67 = vector.shape_cast %66 : vector<1x32x8xf32> to vector<32x8xf32>
    %cst_29 = arith.constant dense<0.000000e+00> : vector<64x8xf32>
    %68 = tpu.matmul %5, %67, %cst_29 {dimension_numbers = #tpu.dot_dimension_numbers<[1], [0], [0], [1], [0, 0, 1, 1], [], []>} : vector<64x32xf32>, vector<32x8xf32>, vector<64x8xf32> -> vector<64x8xf32>
    %69 = vector.extract_strided_slice %6 {offsets = [24, 0], sizes = [8, 64], strides = [1, 1]} : vector<64x64xf32> to vector<8x64xf32>
    %70 = vector.extract_strided_slice %6 {offsets = [56, 0], sizes = [8, 64], strides = [1, 1]} : vector<64x64xf32> to vector<8x64xf32>
    %cst_30 = arith.constant dense<0.000000e+00> : vector<64x64xf32>
    %71 = tpu.matmul %68, %69, %cst_30 {dimension_numbers = #tpu.dot_dimension_numbers<[1], [0], [0], [1], [0, 0, 1, 1], [], []>} : vector<64x8xf32>, vector<8x64xf32>, vector<64x64xf32> -> vector<64x64xf32>
    %cst_31 = arith.constant dense<0xFF800000> : vector<64xf32>
    %72 = vector.multi_reduction <maximumf>, %71, %cst_31 [1] : vector<64x64xf32> to vector<64xf32>
    %73 = vector.shape_cast %72 : vector<64xf32> to vector<64x1xf32>
    %74 = vector.broadcast %73 : vector<64x1xf32> to vector<64x64xf32>
    %75 = arith.subf %71, %74 : vector<64x64xf32>
    %76 = math.exp %75 : vector<64x64xf32>
    %cst_32 = arith.constant dense<0.000000e+00> : vector<64xf32>
    %77 = vector.multi_reduction <add>, %76, %cst_32 [1] : vector<64x64xf32> to vector<64xf32>
    %78 = vector.shape_cast %77 : vector<64xf32> to vector<64x1xf32>
    %79 = tpu.reciprocal %78 : vector<64x1xf32> -> vector<64x1xf32>
    %80 = vector.broadcast %79 : vector<64x1xf32> to vector<64x64xf32>
    %81 = arith.mulf %76, %80 : vector<64x64xf32>
    %cst_33 = arith.constant dense<0.000000e+00> : vector<64x8xf32>
    %82 = tpu.matmul %81, %70, %cst_33 {dimension_numbers = #tpu.dot_dimension_numbers<[1], [1], [0], [0], [0, 0, 1, 0], [], []>} : vector<64x64xf32>, vector<8x64xf32>, vector<64x8xf32> -> vector<64x8xf32>
    %83 = vector.extract_strided_slice %2 {offsets = [24, 0], sizes = [8, 32], strides = [1, 1]} : vector<32x32xf32> to vector<8x32xf32>
    %cst_34 = arith.constant dense<0.000000e+00> : vector<64x32xf32>
    %84 = tpu.matmul %82, %83, %cst_34 {dimension_numbers = #tpu.dot_dimension_numbers<[1], [0], [0], [1], [0, 0, 1, 1], [], []>} : vector<64x8xf32>, vector<8x32xf32>, vector<64x32xf32> -> vector<64x32xf32>
    %85 = arith.addf %65, %84 : vector<64x32xf32>
    %86 = vector.broadcast %3 : vector<1x32xf32> to vector<64x32xf32>
    %87 = arith.addf %85, %86 : vector<64x32xf32>
    %c0_35 = arith.constant 0 : index
    %c0_36 = arith.constant 0 : index
    %c0_37 = arith.constant 0 : index
    %88 = vector.load %arg6[%c0_35, %c0_36, %c0_37] : memref<2x64x32xf32, #tpu.memory_space<vmem>>, vector<1x64x32xf32>
    %89 = vector.shape_cast %88 : vector<1x64x32xf32> to vector<64x32xf32>
    %90 = vector.shape_cast %87 : vector<64x32xf32> to vector<1x64x32xf32>
    tpu.vector_store %arg6[%c0_35, %c0_36, %c0_37], %90 {strides = array<i32>} : memref<2x64x32xf32, #tpu.memory_space<vmem>>, vector<1x64x32xf32>,
    %c1 = arith.constant 1 : index
    %c0_38 = arith.constant 0 : index
    %c0_39 = arith.constant 0 : index
    %91 = vector.load %arg1[%c1, %c0_38, %c0_39] : memref<2x64x32xf32, #tpu.memory_space<vmem>>, vector<1x64x32xf32>
    %92 = vector.shape_cast %91 : vector<1x64x32xf32> to vector<64x32xf32>
    %cst_40 = arith.constant dense<0.000000e+00> : vector<64x64xf32>
    %93 = tpu.matmul %1, %92, %cst_40 {dimension_numbers = #tpu.dot_dimension_numbers<[1], [1], [0], [0], [0, 0, 1, 0], [], []>} : vector<64x32xf32>, vector<64x32xf32>, vector<64x64xf32> -> vector<64x64xf32>
    %94 = vector.extract_strided_slice %0 {offsets = [0, 0, 0], sizes = [1, 32, 8], strides = [1, 1, 1]} : vector<4x32x8xf32> to vector<1x32x8xf32>
    %95 = vector.shape_cast %94 : vector<1x32x8xf32> to vector<32x8xf32>
    %cst_41 = arith.constant dense<0.000000e+00> : vector<64x8xf32>
    %96 = tpu.matmul %92, %95, %cst_41 {dimension_numbers = #tpu.dot_dimension_numbers<[1], [0], [0], [1], [0, 0, 1, 1], [], []>} : vector<64x32xf32>, vector<32x8xf32>, vector<64x8xf32> -> vector<64x8xf32>
    %97 = vector.extract_strided_slice %93 {offsets = [0, 0], sizes = [8, 64], strides = [1, 1]} : vector<64x64xf32> to vector<8x64xf32>
    %98 = vector.extract_strided_slice %93 {offsets = [32, 0], sizes = [8, 64], strides = [1, 1]} : vector<64x64xf32> to vector<8x64xf32>
    %cst_42 = arith.constant dense<0.000000e+00> : vector<64x64xf32>
    %99 = tpu.matmul %96, %97, %cst_42 {dimension_numbers = #tpu.dot_dimension_numbers<[1], [0], [0], [1], [0, 0, 1, 1], [], []>} : vector<64x8xf32>, vector<8x64xf32>, vector<64x64xf32> -> vector<64x64xf32>
    %cst_43 = arith.constant dense<0xFF800000> : vector<64xf32>
    %100 = vector.multi_reduction <maximumf>, %99, %cst_43 [1] : vector<64x64xf32> to vector<64xf32>
    %101 = vector.shape_cast %100 : vector<64xf32> to vector<64x1xf32>
    %102 = vector.broadcast %101 : vector<64x1xf32> to vector<64x64xf32>
    %103 = arith.subf %99, %102 : vector<64x64xf32>
    %104 = math.exp %103 : vector<64x64xf32>
    %cst_44 = arith.constant dense<0.000000e+00> : vector<64xf32>
    %105 = vector.multi_reduction <add>, %104, %cst_44 [1] : vector<64x64xf32> to vector<64xf32>
    %106 = vector.shape_cast %105 : vector<64xf32> to vector<64x1xf32>
    %107 = tpu.reciprocal %106 : vector<64x1xf32> -> vector<64x1xf32>
    %108 = vector.broadcast %107 : vector<64x1xf32> to vector<64x64xf32>
    %109 = arith.mulf %104, %108 : vector<64x64xf32>
    %cst_45 = arith.constant dense<0.000000e+00> : vector<64x8xf32>
    %110 = tpu.matmul %109, %98, %cst_45 {dimension_numbers = #tpu.dot_dimension_numbers<[1], [1], [0], [0], [0, 0, 1, 0], [], []>} : vector<64x64xf32>, vector<8x64xf32>, vector<64x8xf32> -> vector<64x8xf32>
    %111 = vector.extract_strided_slice %2 {offsets = [0, 0], sizes = [8, 32], strides = [1, 1]} : vector<32x32xf32> to vector<8x32xf32>
    %cst_46 = arith.constant dense<0.000000e+00> : vector<64x32xf32>
    %112 = tpu.matmul %110, %111, %cst_46 {dimension_numbers = #tpu.dot_dimension_numbers<[1], [0], [0], [1], [0, 0, 1, 1], [], []>} : vector<64x8xf32>, vector<8x32xf32>, vector<64x32xf32> -> vector<64x32xf32>
    %113 = vector.extract_strided_slice %0 {offsets = [1, 0, 0], sizes = [1, 32, 8], strides = [1, 1, 1]} : vector<4x32x8xf32> to vector<1x32x8xf32>
    %114 = vector.shape_cast %113 : vector<1x32x8xf32> to vector<32x8xf32>
    %cst_47 = arith.constant dense<0.000000e+00> : vector<64x8xf32>
    %115 = tpu.matmul %92, %114, %cst_47 {dimension_numbers = #tpu.dot_dimension_numbers<[1], [0], [0], [1], [0, 0, 1, 1], [], []>} : vector<64x32xf32>, vector<32x8xf32>, vector<64x8xf32> -> vector<64x8xf32>
    %116 = vector.extract_strided_slice %93 {offsets = [8, 0], sizes = [8, 64], strides = [1, 1]} : vector<64x64xf32> to vector<8x64xf32>
    %117 = vector.extract_strided_slice %93 {offsets = [40, 0], sizes = [8, 64], strides = [1, 1]} : vector<64x64xf32> to vector<8x64xf32>
    %cst_48 = arith.constant dense<0.000000e+00> : vector<64x64xf32>
    %118 = tpu.matmul %115, %116, %cst_48 {dimension_numbers = #tpu.dot_dimension_numbers<[1], [0], [0], [1], [0, 0, 1, 1], [], []>} : vector<64x8xf32>, vector<8x64xf32>, vector<64x64xf32> -> vector<64x64xf32>
    %cst_49 = arith.constant dense<0xFF800000> : vector<64xf32>
    %119 = vector.multi_reduction <maximumf>, %118, %cst_49 [1] : vector<64x64xf32> to vector<64xf32>
    %120 = vector.shape_cast %119 : vector<64xf32> to vector<64x1xf32>
    %121 = vector.broadcast %120 : vector<64x1xf32> to vector<64x64xf32>
    %122 = arith.subf %118, %121 : vector<64x64xf32>
    %123 = math.exp %122 : vector<64x64xf32>
    %cst_50 = arith.constant dense<0.000000e+00> : vector<64xf32>
    %124 = vector.multi_reduction <add>, %123, %cst_50 [1] : vector<64x64xf32> to vector<64xf32>
    %125 = vector.shape_cast %124 : vector<64xf32> to vector<64x1xf32>
    %126 = tpu.reciprocal %125 : vector<64x1xf32> -> vector<64x1xf32>
    %127 = vector.broadcast %126 : vector<64x1xf32> to vector<64x64xf32>
    %128 = arith.mulf %123, %127 : vector<64x64xf32>
    %cst_51 = arith.constant dense<0.000000e+00> : vector<64x8xf32>
    %129 = tpu.matmul %128, %117, %cst_51 {dimension_numbers = #tpu.dot_dimension_numbers<[1], [1], [0], [0], [0, 0, 1, 0], [], []>} : vector<64x64xf32>, vector<8x64xf32>, vector<64x8xf32> -> vector<64x8xf32>
    %130 = vector.extract_strided_slice %2 {offsets = [8, 0], sizes = [8, 32], strides = [1, 1]} : vector<32x32xf32> to vector<8x32xf32>
    %cst_52 = arith.constant dense<0.000000e+00> : vector<64x32xf32>
    %131 = tpu.matmul %129, %130, %cst_52 {dimension_numbers = #tpu.dot_dimension_numbers<[1], [0], [0], [1], [0, 0, 1, 1], [], []>} : vector<64x8xf32>, vector<8x32xf32>, vector<64x32xf32> -> vector<64x32xf32>
    %132 = arith.addf %112, %131 : vector<64x32xf32>
    %133 = vector.extract_strided_slice %0 {offsets = [2, 0, 0], sizes = [1, 32, 8], strides = [1, 1, 1]} : vector<4x32x8xf32> to vector<1x32x8xf32>
    %134 = vector.shape_cast %133 : vector<1x32x8xf32> to vector<32x8xf32>
    %cst_53 = arith.constant dense<0.000000e+00> : vector<64x8xf32>
    %135 = tpu.matmul %92, %134, %cst_53 {dimension_numbers = #tpu.dot_dimension_numbers<[1], [0], [0], [1], [0, 0, 1, 1], [], []>} : vector<64x32xf32>, vector<32x8xf32>, vector<64x8xf32> -> vector<64x8xf32>
    %136 = vector.extract_strided_slice %93 {offsets = [16, 0], sizes = [8, 64], strides = [1, 1]} : vector<64x64xf32> to vector<8x64xf32>
    %137 = vector.extract_strided_slice %93 {offsets = [48, 0], sizes = [8, 64], strides = [1, 1]} : vector<64x64xf32> to vector<8x64xf32>
    %cst_54 = arith.constant dense<0.000000e+00> : vector<64x64xf32>
    %138 = tpu.matmul %135, %136, %cst_54 {dimension_numbers = #tpu.dot_dimension_numbers<[1], [0], [0], [1], [0, 0, 1, 1], [], []>} : vector<64x8xf32>, vector<8x64xf32>, vector<64x64xf32> -> vector<64x64xf32>
    %cst_55 = arith.constant dense<0xFF800000> : vector<64xf32>
    %139 = vector.multi_reduction <maximumf>, %138, %cst_55 [1] : vector<64x64xf32> to vector<64xf32>
    %140 = vector.shape_cast %139 : vector<64xf32> to vector<64x1xf32>
    %141 = vector.broadcast %140 : vector<64x1xf32> to vector<64x64xf32>
    %142 = arith.subf %138, %141 : vector<64x64xf32>
    %143 = math.exp %142 : vector<64x64xf32>
    %cst_56 = arith.constant dense<0.000000e+00> : vector<64xf32>
    %144 = vector.multi_reduction <add>, %143, %cst_56 [1] : vector<64x64xf32> to vector<64xf32>
    %145 = vector.shape_cast %144 : vector<64xf32> to vector<64x1xf32>
    %146 = tpu.reciprocal %145 : vector<64x1xf32> -> vector<64x1xf32>
    %147 = vector.broadcast %146 : vector<64x1xf32> to vector<64x64xf32>
    %148 = arith.mulf %143, %147 : vector<64x64xf32>
    %cst_57 = arith.constant dense<0.000000e+00> : vector<64x8xf32>
    %149 = tpu.matmul %148, %137, %cst_57 {dimension_numbers = #tpu.dot_dimension_numbers<[1], [1], [0], [0], [0, 0, 1, 0], [], []>} : vector<64x64xf32>, vector<8x64xf32>, vector<64x8xf32> -> vector<64x8xf32>
    %150 = vector.extract_strided_slice %2 {offsets = [16, 0], sizes = [8, 32], strides = [1, 1]} : vector<32x32xf32> to vector<8x32xf32>
    %cst_58 = arith.constant dense<0.000000e+00> : vector<64x32xf32>
    %151 = tpu.matmul %149, %150, %cst_58 {dimension_numbers = #tpu.dot_dimension_numbers<[1], [0], [0], [1], [0, 0, 1, 1], [], []>} : vector<64x8xf32>, vector<8x32xf32>, vector<64x32xf32> -> vector<64x32xf32>
    %152 = arith.addf %132, %151 : vector<64x32xf32>
    %153 = vector.extract_strided_slice %0 {offsets = [3, 0, 0], sizes = [1, 32, 8], strides = [1, 1, 1]} : vector<4x32x8xf32> to vector<1x32x8xf32>
    %154 = vector.shape_cast %153 : vector<1x32x8xf32> to vector<32x8xf32>
    %cst_59 = arith.constant dense<0.000000e+00> : vector<64x8xf32>
    %155 = tpu.matmul %92, %154, %cst_59 {dimension_numbers = #tpu.dot_dimension_numbers<[1], [0], [0], [1], [0, 0, 1, 1], [], []>} : vector<64x32xf32>, vector<32x8xf32>, vector<64x8xf32> -> vector<64x8xf32>
    %156 = vector.extract_strided_slice %93 {offsets = [24, 0], sizes = [8, 64], strides = [1, 1]} : vector<64x64xf32> to vector<8x64xf32>
    %157 = vector.extract_strided_slice %93 {offsets = [56, 0], sizes = [8, 64], strides = [1, 1]} : vector<64x64xf32> to vector<8x64xf32>
    %cst_60 = arith.constant dense<0.000000e+00> : vector<64x64xf32>
    %158 = tpu.matmul %155, %156, %cst_60 {dimension_numbers = #tpu.dot_dimension_numbers<[1], [0], [0], [1], [0, 0, 1, 1], [], []>} : vector<64x8xf32>, vector<8x64xf32>, vector<64x64xf32> -> vector<64x64xf32>
    %cst_61 = arith.constant dense<0xFF800000> : vector<64xf32>
    %159 = vector.multi_reduction <maximumf>, %158, %cst_61 [1] : vector<64x64xf32> to vector<64xf32>
    %160 = vector.shape_cast %159 : vector<64xf32> to vector<64x1xf32>
    %161 = vector.broadcast %160 : vector<64x1xf32> to vector<64x64xf32>
    %162 = arith.subf %158, %161 : vector<64x64xf32>
    %163 = math.exp %162 : vector<64x64xf32>
    %cst_62 = arith.constant dense<0.000000e+00> : vector<64xf32>
    %164 = vector.multi_reduction <add>, %163, %cst_62 [1] : vector<64x64xf32> to vector<64xf32>
    %165 = vector.shape_cast %164 : vector<64xf32> to vector<64x1xf32>
    %166 = tpu.reciprocal %165 : vector<64x1xf32> -> vector<64x1xf32>
    %167 = vector.broadcast %166 : vector<64x1xf32> to vector<64x64xf32>
    %168 = arith.mulf %163, %167 : vector<64x64xf32>
    %cst_63 = arith.constant dense<0.000000e+00> : vector<64x8xf32>
    %169 = tpu.matmul %168, %157, %cst_63 {dimension_numbers = #tpu.dot_dimension_numbers<[1], [1], [0], [0], [0, 0, 1, 0], [], []>} : vector<64x64xf32>, vector<8x64xf32>, vector<64x8xf32> -> vector<64x8xf32>
    %170 = vector.extract_strided_slice %2 {offsets = [24, 0], sizes = [8, 32], strides = [1, 1]} : vector<32x32xf32> to vector<8x32xf32>
    %cst_64 = arith.constant dense<0.000000e+00> : vector<64x32xf32>
    %171 = tpu.matmul %169, %170, %cst_64 {dimension_numbers = #tpu.dot_dimension_numbers<[1], [0], [0], [1], [0, 0, 1, 1], [], []>} : vector<64x8xf32>, vector<8x32xf32>, vector<64x32xf32> -> vector<64x32xf32>
    %172 = arith.addf %152, %171 : vector<64x32xf32>
    %173 = vector.broadcast %3 : vector<1x32xf32> to vector<64x32xf32>
    %174 = arith.addf %172, %173 : vector<64x32xf32>
    %c1_65 = arith.constant 1 : index
    %c0_66 = arith.constant 0 : index
    %c0_67 = arith.constant 0 : index
    %175 = vector.load %arg6[%c1_65, %c0_66, %c0_67] : memref<2x64x32xf32, #tpu.memory_space<vmem>>, vector<1x64x32xf32>
    %176 = vector.shape_cast %175 : vector<1x64x32xf32> to vector<64x32xf32>
    %177 = vector.shape_cast %174 : vector<64x32xf32> to vector<1x64x32xf32>
    tpu.vector_store %arg6[%c1_65, %c0_66, %c0_67], %177 {strides = array<i32>} : memref<2x64x32xf32, #tpu.memory_space<vmem>>, vector<1x64x32xf32>,
    return
  }
  func.func @transform_0(%arg0: i32) -> (i32, i32, i32) {
    %c0_i32 = arith.constant 0 : i32
    %c0_i32_0 = arith.constant 0 : i32
    %c0_i32_1 = arith.constant 0 : i32
    return %arg0, %c0_i32, %c0_i32_0 : i32, i32, i32
  }
  func.func @transform_1(%arg0: i32) -> (i32, i32, i32) {
    %c0_i32 = arith.constant 0 : i32
    %c0_i32_0 = arith.constant 0 : i32
    %c0_i32_1 = arith.constant 0 : i32
    %c0_i32_2 = arith.constant 0 : i32
    return %c0_i32, %c0_i32_0, %c0_i32_1 : i32, i32, i32
  }
  func.func @transform_2(%arg0: i32) -> (i32, i32) {
    %c0_i32 = arith.constant 0 : i32
    %c0_i32_0 = arith.constant 0 : i32
    %c0_i32_1 = arith.constant 0 : i32
    return %c0_i32, %c0_i32_0 : i32, i32
  }
  func.func @transform_3(%arg0: i32) -> (i32, i32) {
    %c0_i32 = arith.constant 0 : i32
    %c0_i32_0 = arith.constant 0 : i32
    %c0_i32_1 = arith.constant 0 : i32
    return %c0_i32, %c0_i32_0 : i32, i32
  }
  func.func @transform_4(%arg0: i32) -> (i32, i32) {
    %c0_i32 = arith.constant 0 : i32
    %c0_i32_0 = arith.constant 0 : i32
    %c0_i32_1 = arith.constant 0 : i32
    return %c0_i32, %c0_i32_0 : i32, i32
  }
  func.func @transform_5(%arg0: i32) -> (i32, i32, i32) {
    %c0_i32 = arith.constant 0 : i32
    %c0_i32_0 = arith.constant 0 : i32
    %c0_i32_1 = arith.constant 0 : i32
    return %arg0, %c0_i32, %c0_i32_0 : i32, i32, i32
  }
}

</mosaic_0001>

<llo_original>
// kernel: attention.1
$region0: #{attention.1}
  #allocation0 [shape = 'u32[]', space=smem, size = 0x4, offset = 0x4, fixed_abs, tag = 'smem constant byte address 0x4 - core index']
  #allocation1 [shape = 'u32[72,128]{1,0:T(1,128)}', space=vmem, size = 0x9000, scoped, tag = 'internal scratch']
  %s0 = inlined_call_operand.vmem [shape: f32[2,64,32], index: 0, kind: input, shape index: {}]
  %s1 = inlined_call_operand.vmem [shape: f32[4,32,8], index: 1, kind: input, shape index: {}]
  %s2 = inlined_call_operand.vmem [shape: f32[64,32], index: 2, kind: input, shape index: {}]
  %s3 = inlined_call_operand.vmem [shape: f32[32,32], index: 3, kind: input, shape index: {}]
  %s4 = inlined_call_operand.vmem [shape: f32[1,32], index: 4, kind: input, shape index: {}]
  %s5 = inlined_call_operand.vmem [shape: f32[2,64,32], index: 5, kind: output, shape index: {}]
  %s6 = sld [smem:[#allocation0]]
  $region30: #{attention.1} parent=0
    _
  %s8 = ssub.s32 1, %s6
  %s9 = scalar_select 0, %s8, %s6
  // Predicated region
  $region2: #{attention.1} parent=0 // pred_check
    _
  $region3: #{attention.1} parent=0 // pred_check_branch
    %11 = sbr.rel (0) target = $region5
  $region4: #{attention.1} parent=0 // pred_region
    _
  $region5: #{attention.1} parent=0 // pred_fallthru
    _
  // Predicated region
  $region6: #{attention.1} parent=0 // pred_check
    _
  $region7: #{attention.1} parent=0 // pred_check_branch
    %13 = sbr.rel (0) target = $region9
  $region8: #{attention.1} parent=0 // pred_region
    _
  $region9: #{attention.1} parent=0 // pred_fallthru
    _
  // Predicated region
  $region10: #{attention.1} parent=0 // pred_check
    _
  $region11: #{attention.1} parent=0 // pred_check_branch
    %15 = sbr.rel (0) target = $region13
  $region12: #{attention.1} parent=0 // pred_region
    _
  $region13: #{attention.1} parent=0 // pred_fallthru
    _
  // Predicated region
  $region14: #{attention.1} parent=0 // pred_check
    _
  $region15: #{attention.1} parent=0 // pred_check_branch
    %17 = sbr.rel (0) target = $region17
  $region16: #{attention.1} parent=0 // pred_region
    _
  $region17: #{attention.1} parent=0 // pred_fallthru
    _
  // Predicated region
  $region18: #{attention.1} parent=0 // pred_check
    _
  $region19: #{attention.1} parent=0 // pred_check_branch
    %19 = sbr.rel (0) target = $region21
  $region20: #{attention.1} parent=0 // pred_region
    _
  $region21: #{attention.1} parent=0 // pred_fallthru
    _
  %v20 = vld [vmem:[%s1] sm:$0xff]
  %v21 = vld [vmem:[%s1 + $0x8] sm:$0xff]
  %v22 = vld [vmem:[%s1 + $0x10] sm:$0xff]
  %v23 = vld [vmem:[%s1 + $0x18] sm:$0xff]
  %v24 = vld [vmem:[%s1 + $0x20] sm:$0xff]
  %v25 = vld [vmem:[%s1 + $0x28] sm:$0xff]
  %v26 = vld [vmem:[%s1 + $0x30] sm:$0xff]
  %v27 = vld [vmem:[%s1 + $0x38] sm:$0xff]
  %v28 = vld [vmem:[%s1 + $0x40] sm:$0xff]
  %v29 = vld [vmem:[%s1 + $0x48] sm:$0xff]
  %v30 = vld [vmem:[%s1 + $0x50] sm:$0xff]
  %v31 = vld [vmem:[%s1 + $0x58] sm:$0xff]
  %v32 = vld [vmem:[%s1 + $0x60] sm:$0xff]
  %v33 = vld [vmem:[%s1 + $0x68] sm:$0xff]
  %v34 = vld [vmem:[%s1 + $0x70] sm:$0xff]
  %v35 = vld [vmem:[%s1 + $0x78] sm:$0xff]
  %v36 = vld [vmem:[%s2] sm:$0xff]
  %v37 = vld [vmem:[%s2 + $0x8] sm:$0xff]
  %v38 = vld [vmem:[%s2 + $0x10] sm:$0xff]
  %v39 = vld [vmem:[%s2 + $0x18] sm:$0xff]
  %v40 = vld [vmem:[%s2 + $0x20] sm:$0xff]
  %v41 = vld [vmem:[%s2 + $0x28] sm:$0xff]
  %v42 = vld [vmem:[%s2 + $0x30] sm:$0xff]
  %v43 = vld [vmem:[%s2 + $0x38] sm:$0xff]
  %v44 = vld [vmem:[%s3] sm:$0xff]
  %v45 = vld [vmem:[%s3 + $0x8] sm:$0xff]
  %v46 = vld [vmem:[%s3 + $0x10] sm:$0xff]
  %v47 = vld [vmem:[%s3 + $0x18] sm:$0xff]
  %v48 = vld [vmem:[%s4] sm:$0x1]
  %v49 = vld [vmem:[%s0] sm:$0xff]
  %v50 = vld [vmem:[%s0 + $0x8] sm:$0xff]
  %v51 = vld [vmem:[%s0 + $0x10] sm:$0xff]
  %v52 = vld [vmem:[%s0 + $0x18] sm:$0xff]
  %v53 = vld [vmem:[%s0 + $0x20] sm:$0xff]
  %v54 = vld [vmem:[%s0 + $0x28] sm:$0xff]
  %v55 = vld [vmem:[%s0 + $0x30] sm:$0xff]
  %v56 = vld [vmem:[%s0 + $0x38] sm:$0xff]
  %vm57 = vcmask 261120
  %v59 = vsel %vm57, %v36, 0
  %v62 = vsel %vm57, %v37, 0
  %v65 = vsel %vm57, %v38, 0
  %v68 = vsel %vm57, %v39, 0
  %v71 = vsel %vm57, %v40, 0
  %v74 = vsel %vm57, %v41, 0
  %v77 = vsel %vm57, %v42, 0
  %v80 = vsel %vm57, %v43, 0
  %v83 = vsel %vm57, %v49, 0
  %v86 = vsel %vm57, %v50, 0
  %v89 = vsel %vm57, %v51, 0
  %v92 = vsel %vm57, %v52, 0
  %v95 = vsel %vm57, %v53, 0
  %v98 = vsel %vm57, %v54, 0
  %v101 = vsel %vm57, %v55, 0
  %v104 = vsel %vm57, %v56, 0
  %106 = vmatpush.xpose.msra.mxu0 0.0
  %107 = vmatpush.xpose.msra.mxu0 0.0
  %108 = vmatpush.xpose.msra.mxu0 0.0
  %109 = vmatpush.xpose.msra.mxu0 0.0
  %110 = vmatpush.xpose.msra.mxu0 0.0
  %111 = vmatpush.xpose.msra.mxu0 0.0
  %112 = vmatpush.xpose.msra.mxu0 0.0
  %113 = vmatpush.xpose.msra.mxu0 0.0
  %114 = vmatpush.xpose.msra.mxu0 %v104
  %115 = vmatpush.xpose.msra.mxu0 %v101
  %116 = vmatpush.xpose.msra.mxu0 %v98
  %117 = vmatpush.xpose.msra.mxu0 %v95
  %118 = vmatpush.xpose.msra.mxu0 %v92
  %119 = vmatpush.xpose.msra.mxu0 %v89
  %120 = vmatpush.xpose.msra.mxu0 %v86
  %121 = vmatpush.xpose.msra.mxu0 %v83
  %122 = vmatmul.f32.gmra.mxu0 %v59
  %v123 = vpop.f32.mrf.mxu0
  %v124 = vadd.f32 0.0, %v123
  %125 = vmatmul.f32.gmra.mxu0 %v62
  %v126 = vpop.f32.mrf.mxu0
  %v127 = vadd.f32 0.0, %v126
  %128 = vmatmul.f32.gmra.mxu0 %v65
  %v129 = vpop.f32.mrf.mxu0
  %v130 = vadd.f32 0.0, %v129
  %131 = vmatmul.f32.gmra.mxu0 %v68
  %v132 = vpop.f32.mrf.mxu0
  %v133 = vadd.f32 0.0, %v132
  %134 = vmatmul.f32.gmra.mxu0 %v71
  %v135 = vpop.f32.mrf.mxu0
  %v136 = vadd.f32 0.0, %v135
  %137 = vmatmul.f32.gmra.mxu0 %v74
  %v138 = vpop.f32.mrf.mxu0
  %v139 = vadd.f32 0.0, %v138
  %140 = vmatmul.f32.gmra.mxu0 %v77
  %v141 = vpop.f32.mrf.mxu0
  %v142 = vadd.f32 0.0, %v141
  %143 = vmatmul.f32.gmra.mxu0 %v80
  %v144 = vpop.f32.mrf.mxu0
  %v145 = vadd.f32 0.0, %v144
  %146 = vdwg.mxu0
  %147 = vmatpush.msra.mxu0 0.0
  %148 = vmatpush.msra.mxu0 0.0
  %149 = vmatpush.msra.mxu0 0.0
  %150 = vmatpush.msra.mxu0 0.0
  %151 = vmatpush.msra.mxu0 0.0
  %152 = vmatpush.msra.mxu0 0.0
  %153 = vmatpush.msra.mxu0 0.0
  %154 = vmatpush.msra.mxu0 0.0
  %155 = vmatpush.msra.mxu0 0.0
  %156 = vmatpush.msra.mxu0 0.0
  %157 = vmatpush.msra.mxu0 0.0
  %158 = vmatpush.msra.mxu0 0.0
  %159 = vmatpush.msra.mxu0 %v23
  %160 = vmatpush.msra.mxu0 %v22
  %161 = vmatpush.msra.mxu0 %v21
  %162 = vmatpush.msra.mxu0 %v20
  %163 = vmatmul.f32.gmra.mxu0 %v83
  %v164 = vpop.f32.mrf.mxu0
  %v165 = vadd.f32 0.0, %v164
  %166 = vmatmul.f32.gmra.mxu0 %v86
  %v167 = vpop.f32.mrf.mxu0
  %v168 = vadd.f32 0.0, %v167
  %169 = vmatmul.f32.gmra.mxu0 %v89
  %v170 = vpop.f32.mrf.mxu0
  %v171 = vadd.f32 0.0, %v170
  %172 = vmatmul.f32.gmra.mxu0 %v92
  %v173 = vpop.f32.mrf.mxu0
  %v174 = vadd.f32 0.0, %v173
  %175 = vmatmul.f32.gmra.mxu0 %v95
  %v176 = vpop.f32.mrf.mxu0
  %v177 = vadd.f32 0.0, %v176
  %178 = vmatmul.f32.gmra.mxu0 %v98
  %v179 = vpop.f32.mrf.mxu0
  %v180 = vadd.f32 0.0, %v179
  %181 = vmatmul.f32.gmra.mxu0 %v101
  %v182 = vpop.f32.mrf.mxu0
  %v183 = vadd.f32 0.0, %v182
  %184 = vmatmul.f32.gmra.mxu0 %v104
  %v185 = vpop.f32.mrf.mxu0
  %v186 = vadd.f32 0.0, %v185
  %187 = vdwg.mxu0
  %vm188 = vcmask 64512
  %v190 = vsel %vm188, %v165, 0
  %v193 = vsel %vm188, %v168, 0
  %v196 = vsel %vm188, %v171, 0
  %v199 = vsel %vm188, %v174, 0
  %v202 = vsel %vm188, %v177, 0
  %v205 = vsel %vm188, %v180, 0
  %v208 = vsel %vm188, %v183, 0
  %v211 = vsel %vm188, %v186, 0
  %213 = vmatpush.msra.mxu0 0.0
  %214 = vmatpush.msra.mxu0 0.0
  %215 = vmatpush.msra.mxu0 0.0
  %216 = vmatpush.msra.mxu0 0.0
  %217 = vmatpush.msra.mxu0 0.0
  %218 = vmatpush.msra.mxu0 0.0
  %219 = vmatpush.msra.mxu0 0.0
  %220 = vmatpush.msra.mxu0 0.0
  %221 = vmatpush.msra.mxu0 0.0
  %222 = vmatpush.msra.mxu0 0.0
  %223 = vmatpush.msra.mxu0 0.0
  %224 = vmatpush.msra.mxu0 0.0
  %225 = vmatpush.msra.mxu0 0.0
  %226 = vmatpush.msra.mxu0 0.0
  %227 = vmatpush.msra.mxu0 0.0
  %228 = vmatpush.msra.mxu0 %v124
  %229 = vmatmul.f32.gmra.mxu0 %v190
  %v230 = vpop.f32.mrf.mxu0
  %v231 = vadd.f32 0.0, %v230
  %232 = vmatmul.f32.gmra.mxu0 %v193
  %v233 = vpop.f32.mrf.mxu0
  %v234 = vadd.f32 0.0, %v233
  %235 = vmatmul.f32.gmra.mxu0 %v196
  %v236 = vpop.f32.mrf.mxu0
  %v237 = vadd.f32 0.0, %v236
  %238 = vmatmul.f32.gmra.mxu0 %v199
  %v239 = vpop.f32.mrf.mxu0
  %v240 = vadd.f32 0.0, %v239
  %241 = vmatmul.f32.gmra.mxu0 %v202
  %v242 = vpop.f32.mrf.mxu0
  %v243 = vadd.f32 0.0, %v242
  %244 = vmatmul.f32.gmra.mxu0 %v205
  %v245 = vpop.f32.mrf.mxu0
  %v246 = vadd.f32 0.0, %v245
  %247 = vmatmul.f32.gmra.mxu0 %v208
  %v248 = vpop.f32.mrf.mxu0
  %v249 = vadd.f32 0.0, %v248
  %250 = vmatmul.f32.gmra.mxu0 %v211
  %v251 = vpop.f32.mrf.mxu0
  %v252 = vadd.f32 0.0, %v251
  %253 = vdwg.mxu0
  %vm254 = vcmask 523264
  %v255 = vsel %vm254, %v231, -inf
  %256 = vmax.xlane.f32.xlu0 %v255
  %v257 = vpop.xlane.xlu0 %256
  %v258 = vsel %vm254, %v234, -inf
  %259 = vmax.xlane.f32.xlu0 %v258
  %v260 = vpop.xlane.xlu0 %259
  %v261 = vsel %vm254, %v237, -inf
  %262 = vmax.xlane.f32.xlu0 %v261
  %v263 = vpop.xlane.xlu0 %262
  %v264 = vsel %vm254, %v240, -inf
  %265 = vmax.xlane.f32.xlu0 %v264
  %v266 = vpop.xlane.xlu0 %265
  %v267 = vsel %vm254, %v243, -inf
  %268 = vmax.xlane.f32.xlu0 %v267
  %v269 = vpop.xlane.xlu0 %268
  %v270 = vsel %vm254, %v246, -inf
  %271 = vmax.xlane.f32.xlu0 %v270
  %v272 = vpop.xlane.xlu0 %271
  %v273 = vsel %vm254, %v249, -inf
  %274 = vmax.xlane.f32.xlu0 %v273
  %v275 = vpop.xlane.xlu0 %274
  %v276 = vsel %vm254, %v252, -inf
  %277 = vmax.xlane.f32.xlu0 %v276
  %v278 = vpop.xlane.xlu0 %277
  %v279 = vsub.f32 %v231, %v257
  %v280 = vsub.f32 %v234, %v260
  %v281 = vsub.f32 %v237, %v263
  %v282 = vsub.f32 %v240, %v266
  %v283 = vsub.f32 %v243, %v269
  %v284 = vsub.f32 %v246, %v272
  %v285 = vsub.f32 %v249, %v275
  %v286 = vsub.f32 %v252, %v278
  %v287 = vmul.f32 %v279, 1.442695
  %v288 = vpow.pop %v287
  %v289 = vmul.f32 %v280, 1.442695
  %v290 = vpow.pop %v289
  %v291 = vmul.f32 %v281, 1.442695
  %v292 = vpow.pop %v291
  %v293 = vmul.f32 %v282, 1.442695
  %v294 = vpow.pop %v293
  %v295 = vmul.f32 %v283, 1.442695
  %v296 = vpow.pop %v295
  %v297 = vmul.f32 %v284, 1.442695
  %v298 = vpow.pop %v297
  %v299 = vmul.f32 %v285, 1.442695
  %v300 = vpow.pop %v299
  %v301 = vmul.f32 %v286, 1.442695
  %v302 = vpow.pop %v301
  %v303 = vsel %vm254, %v288, 0.0
  %304 = vadd.xlane.f32.xlu0 %v303
  %v305 = vpop.xlane.xlu0 %304
  %v306 = vsel %vm254, %v290, 0.0
  %307 = vadd.xlane.f32.xlu0 %v306
  %v308 = vpop.xlane.xlu0 %307
  %v309 = vsel %vm254, %v292, 0.0
  %310 = vadd.xlane.f32.xlu0 %v309
  %v311 = vpop.xlane.xlu0 %310
  %v312 = vsel %vm254, %v294, 0.0
  %313 = vadd.xlane.f32.xlu0 %v312
  %v314 = vpop.xlane.xlu0 %313
  %v315 = vsel %vm254, %v296, 0.0
  %316 = vadd.xlane.f32.xlu0 %v315
  %v317 = vpop.xlane.xlu0 %316
  %v318 = vsel %vm254, %v298, 0.0
  %319 = vadd.xlane.f32.xlu0 %v318
  %v320 = vpop.xlane.xlu0 %319
  %v321 = vsel %vm254, %v300, 0.0
  %322 = vadd.xlane.f32.xlu0 %v321
  %v323 = vpop.xlane.xlu0 %322
  %v324 = vsel %vm254, %v302, 0.0
  %325 = vadd.xlane.f32.xlu0 %v324
  %v326 = vpop.xlane.xlu0 %325
  %v327 = vrcp.pop %v305
  %v328 = vmul.f32 %v305, %v327
  %v329 = vsub.f32 1.0, %v328
  %v330 = vmul.f32 %v327, %v329
  %v331 = vadd.f32 %v327, %v330
  %vm332 = vweird.f32 %v305
  %vm333 = vweird.f32 %v327
  %vm334 = vmor %vm332, %vm333
  %v335 = vsel %vm334, %v327, %v331
  %v336 = vand.u32 2147483647, %v305
  %vm337 = vcmp.eq.f32.partialorder %v336, 8.507059e+37
  %v338 = vand.u32 %v305, 2147483648
  %v339 = vor.u32 1.1754944e-38, %v338
  %v340 = vsel %vm337, %v339, %v335
  %v341 = vrcp.pop %v308
  %v342 = vmul.f32 %v308, %v341
  %v343 = vsub.f32 1.0, %v342
  %v344 = vmul.f32 %v341, %v343
  %v345 = vadd.f32 %v341, %v344
  %vm346 = vweird.f32 %v308
  %vm347 = vweird.f32 %v341
  %vm348 = vmor %vm346, %vm347
  %v349 = vsel %vm348, %v341, %v345
  %v350 = vand.u32 2147483647, %v308
  %vm351 = vcmp.eq.f32.partialorder %v350, 8.507059e+37
  %v352 = vand.u32 %v308, 2147483648
  %v353 = vor.u32 1.1754944e-38, %v352
  %v354 = vsel %vm351, %v353, %v349
  %v355 = vrcp.pop %v311
  %v356 = vmul.f32 %v311, %v355
  %v357 = vsub.f32 1.0, %v356
  %v358 = vmul.f32 %v355, %v357
  %v359 = vadd.f32 %v355, %v358
  %vm360 = vweird.f32 %v311
  %vm361 = vweird.f32 %v355
  %vm362 = vmor %vm360, %vm361
  %v363 = vsel %vm362, %v355, %v359
  %v364 = vand.u32 2147483647, %v311
  %vm365 = vcmp.eq.f32.partialorder %v364, 8.507059e+37
  %v366 = vand.u32 %v311, 2147483648
  %v367 = vor.u32 1.1754944e-38, %v366
  %v368 = vsel %vm365, %v367, %v363
  %v369 = vrcp.pop %v314
  %v370 = vmul.f32 %v314, %v369
  %v371 = vsub.f32 1.0, %v370
  %v372 = vmul.f32 %v369, %v371
  %v373 = vadd.f32 %v369, %v372
  %vm374 = vweird.f32 %v314
  %vm375 = vweird.f32 %v369
  %vm376 = vmor %vm374, %vm375
  %v377 = vsel %vm376, %v369, %v373
  %v378 = vand.u32 2147483647, %v314
  %vm379 = vcmp.eq.f32.partialorder %v378, 8.507059e+37
  %v380 = vand.u32 %v314, 2147483648
  %v381 = vor.u32 1.1754944e-38, %v380
  %v382 = vsel %vm379, %v381, %v377
  %v383 = vrcp.pop %v317
  %v384 = vmul.f32 %v317, %v383
  %v385 = vsub.f32 1.0, %v384
  %v386 = vmul.f32 %v383, %v385
  %v387 = vadd.f32 %v383, %v386
  %vm388 = vweird.f32 %v317
  %vm389 = vweird.f32 %v383
  %vm390 = vmor %vm388, %vm389
  %v391 = vsel %vm390, %v383, %v387
  %v392 = vand.u32 2147483647, %v317
  %vm393 = vcmp.eq.f32.partialorder %v392, 8.507059e+37
  %v394 = vand.u32 %v317, 2147483648
  %v395 = vor.u32 1.1754944e-38, %v394
  %v396 = vsel %vm393, %v395, %v391
  %v397 = vrcp.pop %v320
  %v398 = vmul.f32 %v320, %v397
  %v399 = vsub.f32 1.0, %v398
  %v400 = vmul.f32 %v397, %v399
  %v401 = vadd.f32 %v397, %v400
  %vm402 = vweird.f32 %v320
  %vm403 = vweird.f32 %v397
  %vm404 = vmor %vm402, %vm403
  %v405 = vsel %vm404, %v397, %v401
  %v406 = vand.u32 2147483647, %v320
  %vm407 = vcmp.eq.f32.partialorder %v406, 8.507059e+37
  %v408 = vand.u32 %v320, 2147483648
  %v409 = vor.u32 1.1754944e-38, %v408
  %v410 = vsel %vm407, %v409, %v405
  %v411 = vrcp.pop %v323
  %v412 = vmul.f32 %v323, %v411
  %v413 = vsub.f32 1.0, %v412
  %v414 = vmul.f32 %v411, %v413
  %v415 = vadd.f32 %v411, %v414
  %vm416 = vweird.f32 %v323
  %vm417 = vweird.f32 %v411
  %vm418 = vmor %vm416, %vm417
  %v419 = vsel %vm418, %v411, %v415
  %v420 = vand.u32 2147483647, %v323
  %vm421 = vcmp.eq.f32.partialorder %v420, 8.507059e+37
  %v422 = vand.u32 %v323, 2147483648
  %v423 = vor.u32 1.1754944e-38, %v422
  %v424 = vsel %vm421, %v423, %v419
  %v425 = vrcp.pop %v326
  %v426 = vmul.f32 %v326, %v425
  %v427 = vsub.f32 1.0, %v426
  %v428 = vmul.f32 %v425, %v427
  %v429 = vadd.f32 %v425, %v428
  %vm430 = vweird.f32 %v326
  %vm431 = vweird.f32 %v425
  %vm432 = vmor %vm430, %vm431
  %v433 = vsel %vm432, %v425, %v429
  %v434 = vand.u32 2147483647, %v326
  %vm435 = vcmp.eq.f32.partialorder %v434, 8.507059e+37
  %v436 = vand.u32 %v326, 2147483648
  %v437 = vor.u32 1.1754944e-38, %v436
  %v438 = vsel %vm435, %v437, %v433
  %v439 = vmul.f32 %v288, %v340
  %v440 = vmul.f32 %v290, %v354
  %v441 = vmul.f32 %v292, %v368
  %v442 = vmul.f32 %v294, %v382
  %v443 = vmul.f32 %v296, %v396
  %v444 = vmul.f32 %v298, %v410
  %v445 = vmul.f32 %v300, %v424
  %v446 = vmul.f32 %v302, %v438
  %v448 = vsel %vm254, %v439, 0
  %v451 = vsel %vm254, %v440, 0
  %v454 = vsel %vm254, %v441, 0
  %v457 = vsel %vm254, %v442, 0
  %v460 = vsel %vm254, %v443, 0
  %v463 = vsel %vm254, %v444, 0
  %v466 = vsel %vm254, %v445, 0
  %v469 = vsel %vm254, %v446, 0
  %v472 = vsel %vm254, %v136, 0
  %474 = vmatpush.xpose.msra.mxu0 0.0
  %475 = vmatpush.xpose.msra.mxu0 0.0
  %476 = vmatpush.xpose.msra.mxu0 0.0
  %477 = vmatpush.xpose.msra.mxu0 0.0
  %478 = vmatpush.xpose.msra.mxu0 0.0
  %479 = vmatpush.xpose.msra.mxu0 0.0
  %480 = vmatpush.xpose.msra.mxu0 0.0
  %481 = vmatpush.xpose.msra.mxu0 0.0
  %482 = vmatpush.xpose.msra.mxu0 0.0
  %483 = vmatpush.xpose.msra.mxu0 0.0
  %484 = vmatpush.xpose.msra.mxu0 0.0
  %485 = vmatpush.xpose.msra.mxu0 0.0
  %486 = vmatpush.xpose.msra.mxu0 0.0
  %487 = vmatpush.xpose.msra.mxu0 0.0
  %488 = vmatpush.xpose.msra.mxu0 0.0
  %489 = vmatpush.xpose.msra.mxu0 %v472
  %490 = vmatmul.f32.gmra.mxu0 %v448
  %v491 = vpop.f32.mrf.mxu0
  %v492 = vadd.f32 0.0, %v491
  %493 = vmatmul.f32.gmra.mxu0 %v451
  %v494 = vpop.f32.mrf.mxu0
  %v495 = vadd.f32 0.0, %v494
  %496 = vmatmul.f32.gmra.mxu0 %v454
  %v497 = vpop.f32.mrf.mxu0
  %v498 = vadd.f32 0.0, %v497
  %499 = vmatmul.f32.gmra.mxu0 %v457
  %v500 = vpop.f32.mrf.mxu0
  %v501 = vadd.f32 0.0, %v500
  %502 = vmatmul.f32.gmra.mxu0 %v460
  %v503 = vpop.f32.mrf.mxu0
  %v504 = vadd.f32 0.0, %v503
  %505 = vmatmul.f32.gmra.mxu0 %v463
  %v506 = vpop.f32.mrf.mxu0
  %v507 = vadd.f32 0.0, %v506
  %508 = vmatmul.f32.gmra.mxu0 %v466
  %v509 = vpop.f32.mrf.mxu0
  %v510 = vadd.f32 0.0, %v509
  %511 = vmatmul.f32.gmra.mxu0 %v469
  %v512 = vpop.f32.mrf.mxu0
  %v513 = vadd.f32 0.0, %v512
  %514 = vdwg.mxu0
  %515 = vmatpush.msra.mxu0 0.0
  %516 = vmatpush.msra.mxu0 0.0
  %517 = vmatpush.msra.mxu0 0.0
  %518 = vmatpush.msra.mxu0 0.0
  %519 = vmatpush.msra.mxu0 0.0
  %520 = vmatpush.msra.mxu0 0.0
  %521 = vmatpush.msra.mxu0 0.0
  %522 = vmatpush.msra.mxu0 0.0
  %523 = vmatpush.msra.mxu0 0.0
  %524 = vmatpush.msra.mxu0 0.0
  %525 = vmatpush.msra.mxu0 0.0
  %526 = vmatpush.msra.mxu0 0.0
  %527 = vmatpush.msra.mxu0 %v27
  %528 = vmatpush.msra.mxu0 %v26
  %529 = vmatpush.msra.mxu0 %v25
  %530 = vmatpush.msra.mxu0 %v24
  %531 = vmatmul.f32.gmra.mxu0 %v83
  %v532 = vpop.f32.mrf.mxu0
  %v533 = vadd.f32 0.0, %v532
  %534 = vmatmul.f32.gmra.mxu0 %v86
  %v535 = vpop.f32.mrf.mxu0
  %v536 = vadd.f32 0.0, %v535
  %537 = vmatmul.f32.gmra.mxu0 %v89
  %v538 = vpop.f32.mrf.mxu0
  %v539 = vadd.f32 0.0, %v538
  %540 = vmatmul.f32.gmra.mxu0 %v92
  %v541 = vpop.f32.mrf.mxu0
  %v542 = vadd.f32 0.0, %v541
  %543 = vmatmul.f32.gmra.mxu0 %v95
  %v544 = vpop.f32.mrf.mxu0
  %v545 = vadd.f32 0.0, %v544
  %546 = vmatmul.f32.gmra.mxu0 %v98
  %v547 = vpop.f32.mrf.mxu0
  %v548 = vadd.f32 0.0, %v547
  %549 = vmatmul.f32.gmra.mxu0 %v101
  %v550 = vpop.f32.mrf.mxu0
  %v551 = vadd.f32 0.0, %v550
  %552 = vmatmul.f32.gmra.mxu0 %v104
  %v553 = vpop.f32.mrf.mxu0
  %v554 = vadd.f32 0.0, %v553
  %555 = vdwg.mxu0
  %v557 = vsel %vm188, %v533, 0
  %v560 = vsel %vm188, %v536, 0
  %v563 = vsel %vm188, %v539, 0
  %v566 = vsel %vm188, %v542, 0
  %v569 = vsel %vm188, %v545, 0
  %v572 = vsel %vm188, %v548, 0
  %v575 = vsel %vm188, %v551, 0
  %v578 = vsel %vm188, %v554, 0
  %580 = vmatpush.msra.mxu0 0.0
  %581 = vmatpush.msra.mxu0 0.0
  %582 = vmatpush.msra.mxu0 0.0
  %583 = vmatpush.msra.mxu0 0.0
  %584 = vmatpush.msra.mxu0 0.0
  %585 = vmatpush.msra.mxu0 0.0
  %586 = vmatpush.msra.mxu0 0.0
  %587 = vmatpush.msra.mxu0 0.0
  %588 = vmatpush.msra.mxu0 0.0
  %589 = vmatpush.msra.mxu0 0.0
  %590 = vmatpush.msra.mxu0 0.0
  %591 = vmatpush.msra.mxu0 0.0
  %592 = vmatpush.msra.mxu0 0.0
  %593 = vmatpush.msra.mxu0 0.0
  %594 = vmatpush.msra.mxu0 0.0
  %595 = vmatpush.msra.mxu0 %v127
  %596 = vmatmul.f32.gmra.mxu0 %v557
  %v597 = vpop.f32.mrf.mxu0
  %v598 = vadd.f32 0.0, %v597
  %599 = vmatmul.f32.gmra.mxu0 %v560
  %v600 = vpop.f32.mrf.mxu0
  %v601 = vadd.f32 0.0, %v600
  %602 = vmatmul.f32.gmra.mxu0 %v563
  %v603 = vpop.f32.mrf.mxu0
  %v604 = vadd.f32 0.0, %v603
  %605 = vmatmul.f32.gmra.mxu0 %v566
  %v606 = vpop.f32.mrf.mxu0
  %v607 = vadd.f32 0.0, %v606
  %608 = vmatmul.f32.gmra.mxu0 %v569
  %v609 = vpop.f32.mrf.mxu0
  %v610 = vadd.f32 0.0, %v609
  %611 = vmatmul.f32.gmra.mxu0 %v572
  %v612 = vpop.f32.mrf.mxu0
  %v613 = vadd.f32 0.0, %v612
  %614 = vmatmul.f32.gmra.mxu0 %v575
  %v615 = vpop.f32.mrf.mxu0
  %v616 = vadd.f32 0.0, %v615
  %617 = vmatmul.f32.gmra.mxu0 %v578
  %v618 = vpop.f32.mrf.mxu0
  %v619 = vadd.f32 0.0, %v618
  %620 = vdwg.mxu0
  %v621 = vsel %vm254, %v598, -inf
  %622 = vmax.xlane.f32.xlu0 %v621
  %v623 = vpop.xlane.xlu0 %622
  %v624 = vsel %vm254, %v601, -inf
  %625 = vmax.xlane.f32.xlu0 %v624
  %v626 = vpop.xlane.xlu0 %625
  %v627 = vsel %vm254, %v604, -inf
  %628 = vmax.xlane.f32.xlu0 %v627
  %v629 = vpop.xlane.xlu0 %628
  %v630 = vsel %vm254, %v607, -inf
  %631 = vmax.xlane.f32.xlu0 %v630
  %v632 = vpop.xlane.xlu0 %631
  %v633 = vsel %vm254, %v610, -inf
  %634 = vmax.xlane.f32.xlu0 %v633
  %v635 = vpop.xlane.xlu0 %634
  %v636 = vsel %vm254, %v613, -inf
  %637 = vmax.xlane.f32.xlu0 %v636
  %v638 = vpop.xlane.xlu0 %637
  %v639 = vsel %vm254, %v616, -inf
  %640 = vmax.xlane.f32.xlu0 %v639
  %v641 = vpop.xlane.xlu0 %640
  %v642 = vsel %vm254, %v619, -inf
  %643 = vmax.xlane.f32.xlu0 %v642
  %v644 = vpop.xlane.xlu0 %643
  %v645 = vsub.f32 %v598, %v623
  %v646 = vsub.f32 %v601, %v626
  %v647 = vsub.f32 %v604, %v629
  %v648 = vsub.f32 %v607, %v632
  %v649 = vsub.f32 %v610, %v635
  %v650 = vsub.f32 %v613, %v638
  %v651 = vsub.f32 %v616, %v641
  %v652 = vsub.f32 %v619, %v644
  %v653 = vmul.f32 %v645, 1.442695
  %v654 = vpow.pop %v653
  %v655 = vmul.f32 %v646, 1.442695
  %v656 = vpow.pop %v655
  %v657 = vmul.f32 %v647, 1.442695
  %v658 = vpow.pop %v657
  %v659 = vmul.f32 %v648, 1.442695
  %v660 = vpow.pop %v659
  %v661 = vmul.f32 %v649, 1.442695
  %v662 = vpow.pop %v661
  %v663 = vmul.f32 %v650, 1.442695
  %v664 = vpow.pop %v663
  %v665 = vmul.f32 %v651, 1.442695
  %v666 = vpow.pop %v665
  %v667 = vmul.f32 %v652, 1.442695
  %v668 = vpow.pop %v667
  %v669 = vsel %vm254, %v654, 0.0
  %670 = vadd.xlane.f32.xlu0 %v669
  %v671 = vpop.xlane.xlu0 %670
  %v672 = vsel %vm254, %v656, 0.0
  %673 = vadd.xlane.f32.xlu0 %v672
  %v674 = vpop.xlane.xlu0 %673
  %v675 = vsel %vm254, %v658, 0.0
  %676 = vadd.xlane.f32.xlu0 %v675
  %v677 = vpop.xlane.xlu0 %676
  %v678 = vsel %vm254, %v660, 0.0
  %679 = vadd.xlane.f32.xlu0 %v678
  %v680 = vpop.xlane.xlu0 %679
  %v681 = vsel %vm254, %v662, 0.0
  %682 = vadd.xlane.f32.xlu0 %v681
  %v683 = vpop.xlane.xlu0 %682
  %v684 = vsel %vm254, %v664, 0.0
  %685 = vadd.xlane.f32.xlu0 %v684
  %v686 = vpop.xlane.xlu0 %685
  %v687 = vsel %vm254, %v666, 0.0
  %688 = vadd.xlane.f32.xlu0 %v687
  %v689 = vpop.xlane.xlu0 %688
  %v690 = vsel %vm254, %v668, 0.0
  %691 = vadd.xlane.f32.xlu0 %v690
  %v692 = vpop.xlane.xlu0 %691
  %v693 = vrcp.pop %v671
  %v694 = vmul.f32 %v671, %v693
  %v695 = vsub.f32 1.0, %v694
  %v696 = vmul.f32 %v693, %v695
  %v697 = vadd.f32 %v693, %v696
  %vm698 = vweird.f32 %v671
  %vm699 = vweird.f32 %v693
  %vm700 = vmor %vm698, %vm699
  %v701 = vsel %vm700, %v693, %v697
  %v702 = vand.u32 2147483647, %v671
  %vm703 = vcmp.eq.f32.partialorder %v702, 8.507059e+37
  %v704 = vand.u32 %v671, 2147483648
  %v705 = vor.u32 1.1754944e-38, %v704
  %v706 = vsel %vm703, %v705, %v701
  %v707 = vrcp.pop %v674
  %v708 = vmul.f32 %v674, %v707
  %v709 = vsub.f32 1.0, %v708
  %v710 = vmul.f32 %v707, %v709
  %v711 = vadd.f32 %v707, %v710
  %vm712 = vweird.f32 %v674
  %vm713 = vweird.f32 %v707
  %vm714 = vmor %vm712, %vm713
  %v715 = vsel %vm714, %v707, %v711
  %v716 = vand.u32 2147483647, %v674
  %vm717 = vcmp.eq.f32.partialorder %v716, 8.507059e+37
  %v718 = vand.u32 %v674, 2147483648
  %v719 = vor.u32 1.1754944e-38, %v718
  %v720 = vsel %vm717, %v719, %v715
  %v721 = vrcp.pop %v677
  %v722 = vmul.f32 %v677, %v721
  %v723 = vsub.f32 1.0, %v722
  %v724 = vmul.f32 %v721, %v723
  %v725 = vadd.f32 %v721, %v724
  %vm726 = vweird.f32 %v677
  %vm727 = vweird.f32 %v721
  %vm728 = vmor %vm726, %vm727
  %v729 = vsel %vm728, %v721, %v725
  %v730 = vand.u32 2147483647, %v677
  %vm731 = vcmp.eq.f32.partialorder %v730, 8.507059e+37
  %v732 = vand.u32 %v677, 2147483648
  %v733 = vor.u32 1.1754944e-38, %v732
  %v734 = vsel %vm731, %v733, %v729
  %v735 = vrcp.pop %v680
  %v736 = vmul.f32 %v680, %v735
  %v737 = vsub.f32 1.0, %v736
  %v738 = vmul.f32 %v735, %v737
  %v739 = vadd.f32 %v735, %v738
  %vm740 = vweird.f32 %v680
  %vm741 = vweird.f32 %v735
  %vm742 = vmor %vm740, %vm741
  %v743 = vsel %vm742, %v735, %v739
  %v744 = vand.u32 2147483647, %v680
  %vm745 = vcmp.eq.f32.partialorder %v744, 8.507059e+37
  %v746 = vand.u32 %v680, 2147483648
  %v747 = vor.u32 1.1754944e-38, %v746
  %v748 = vsel %vm745, %v747, %v743
  %v749 = vrcp.pop %v683
  %v750 = vmul.f32 %v683, %v749
  %v751 = vsub.f32 1.0, %v750
  %v752 = vmul.f32 %v749, %v751
  %v753 = vadd.f32 %v749, %v752
  %vm754 = vweird.f32 %v683
  %vm755 = vweird.f32 %v749
  %vm756 = vmor %vm754, %vm755
  %v757 = vsel %vm756, %v749, %v753
  %v758 = vand.u32 2147483647, %v683
  %vm759 = vcmp.eq.f32.partialorder %v758, 8.507059e+37
  %v760 = vand.u32 %v683, 2147483648
  %v761 = vor.u32 1.1754944e-38, %v760
  %v762 = vsel %vm759, %v761, %v757
  %v763 = vrcp.pop %v686
  %v764 = vmul.f32 %v686, %v763
  %v765 = vsub.f32 1.0, %v764
  %v766 = vmul.f32 %v763, %v765
  %v767 = vadd.f32 %v763, %v766
  %vm768 = vweird.f32 %v686
  %vm769 = vweird.f32 %v763
  %vm770 = vmor %vm768, %vm769
  %v771 = vsel %vm770, %v763, %v767
  %v772 = vand.u32 2147483647, %v686
  %vm773 = vcmp.eq.f32.partialorder %v772, 8.507059e+37
  %v774 = vand.u32 %v686, 2147483648
  %v775 = vor.u32 1.1754944e-38, %v774
  %v776 = vsel %vm773, %v775, %v771
  %v777 = vrcp.pop %v689
  %v778 = vmul.f32 %v689, %v777
  %v779 = vsub.f32 1.0, %v778
  %v780 = vmul.f32 %v777, %v779
  %v781 = vadd.f32 %v777, %v780
  %vm782 = vweird.f32 %v689
  %vm783 = vweird.f32 %v777
  %vm784 = vmor %vm782, %vm783
  %v785 = vsel %vm784, %v777, %v781
  %v786 = vand.u32 2147483647, %v689
  %vm787 = vcmp.eq.f32.partialorder %v786, 8.507059e+37
  %v788 = vand.u32 %v689, 2147483648
  %v789 = vor.u32 1.1754944e-38, %v788
  %v790 = vsel %vm787, %v789, %v785
  %v791 = vrcp.pop %v692
  %v792 = vmul.f32 %v692, %v791
  %v793 = vsub.f32 1.0, %v792
  %v794 = vmul.f32 %v791, %v793
  %v795 = vadd.f32 %v791, %v794
  %vm796 = vweird.f32 %v692
  %vm797 = vweird.f32 %v791
  %vm798 = vmor %vm796, %vm797
  %v799 = vsel %vm798, %v791, %v795
  %v800 = vand.u32 2147483647, %v692
  %vm801 = vcmp.eq.f32.partialorder %v800, 8.507059e+37
  %v802 = vand.u32 %v692, 2147483648
  %v803 = vor.u32 1.1754944e-38, %v802
  %v804 = vsel %vm801, %v803, %v799
  %v805 = vmul.f32 %v654, %v706
  %v806 = vmul.f32 %v656, %v720
  %v807 = vmul.f32 %v658, %v734
  %v808 = vmul.f32 %v660, %v748
  %v809 = vmul.f32 %v662, %v762
  %v810 = vmul.f32 %v664, %v776
  %v811 = vmul.f32 %v666, %v790
  %v812 = vmul.f32 %v668, %v804
  %v814 = vsel %vm254, %v805, 0
  %v817 = vsel %vm254, %v806, 0
  %v820 = vsel %vm254, %v807, 0
  %v823 = vsel %vm254, %v808, 0
  %v826 = vsel %vm254, %v809, 0
  %v829 = vsel %vm254, %v810, 0
  %v832 = vsel %vm254, %v811, 0
  %v835 = vsel %vm254, %v812, 0
  %v838 = vsel %vm254, %v139, 0
  %840 = vmatpush.xpose.msra.mxu0 0.0
  %841 = vmatpush.xpose.msra.mxu0 0.0
  %842 = vmatpush.xpose.msra.mxu0 0.0
  %843 = vmatpush.xpose.msra.mxu0 0.0
  %844 = vmatpush.xpose.msra.mxu0 0.0
  %845 = vmatpush.xpose.msra.mxu0 0.0
  %846 = vmatpush.xpose.msra.mxu0 0.0
  %847 = vmatpush.xpose.msra.mxu0 0.0
  %848 = vmatpush.xpose.msra.mxu0 0.0
  %849 = vmatpush.xpose.msra.mxu0 0.0
  %850 = vmatpush.xpose.msra.mxu0 0.0
  %851 = vmatpush.xpose.msra.mxu0 0.0
  %852 = vmatpush.xpose.msra.mxu0 0.0
  %853 = vmatpush.xpose.msra.mxu0 0.0
  %854 = vmatpush.xpose.msra.mxu0 0.0
  %855 = vmatpush.xpose.msra.mxu0 %v838
  %856 = vmatmul.f32.gmra.mxu0 %v814
  %v857 = vpop.f32.mrf.mxu0
  %v858 = vadd.f32 0.0, %v857
  %859 = vmatmul.f32.gmra.mxu0 %v817
  %v860 = vpop.f32.mrf.mxu0
  %v861 = vadd.f32 0.0, %v860
  %862 = vmatmul.f32.gmra.mxu0 %v820
  %v863 = vpop.f32.mrf.mxu0
  %v864 = vadd.f32 0.0, %v863
  %865 = vmatmul.f32.gmra.mxu0 %v823
  %v866 = vpop.f32.mrf.mxu0
  %v867 = vadd.f32 0.0, %v866
  %868 = vmatmul.f32.gmra.mxu0 %v826
  %v869 = vpop.f32.mrf.mxu0
  %v870 = vadd.f32 0.0, %v869
  %871 = vmatmul.f32.gmra.mxu0 %v829
  %v872 = vpop.f32.mrf.mxu0
  %v873 = vadd.f32 0.0, %v872
  %874 = vmatmul.f32.gmra.mxu0 %v832
  %v875 = vpop.f32.mrf.mxu0
  %v876 = vadd.f32 0.0, %v875
  %877 = vmatmul.f32.gmra.mxu0 %v835
  %v878 = vpop.f32.mrf.mxu0
  %v879 = vadd.f32 0.0, %v878
  %880 = vdwg.mxu0
  %v882 = vsel %vm188, %v858, 0
  %v885 = vsel %vm188, %v861, 0
  %v888 = vsel %vm188, %v864, 0
  %v891 = vsel %vm188, %v867, 0
  %v894 = vsel %vm188, %v870, 0
  %v897 = vsel %vm188, %v873, 0
  %v900 = vsel %vm188, %v876, 0
  %v903 = vsel %vm188, %v879, 0
  %905 = vmatpush.msra.mxu0 0.0
  %906 = vmatpush.msra.mxu0 0.0
  %907 = vmatpush.msra.mxu0 0.0
  %908 = vmatpush.msra.mxu0 0.0
  %909 = vmatpush.msra.mxu0 0.0
  %910 = vmatpush.msra.mxu0 0.0
  %911 = vmatpush.msra.mxu0 0.0
  %912 = vmatpush.msra.mxu0 0.0
  %913 = vmatpush.msra.mxu0 0.0
  %914 = vmatpush.msra.mxu0 0.0
  %915 = vmatpush.msra.mxu0 0.0
  %916 = vmatpush.msra.mxu0 0.0
  %917 = vmatpush.msra.mxu0 0.0
  %918 = vmatpush.msra.mxu0 0.0
  %919 = vmatpush.msra.mxu0 0.0
  %920 = vmatpush.msra.mxu0 %v45
  %921 = vmatmul.f32.gmra.mxu0 %v882
  %v922 = vpop.f32.mrf.mxu0
  %v923 = vadd.f32 0.0, %v922
  %924 = vmatmul.f32.gmra.mxu0 %v885
  %v925 = vpop.f32.mrf.mxu0
  %v926 = vadd.f32 0.0, %v925
  %927 = vmatmul.f32.gmra.mxu0 %v888
  %v928 = vpop.f32.mrf.mxu0
  %v929 = vadd.f32 0.0, %v928
  %930 = vmatmul.f32.gmra.mxu0 %v891
  %v931 = vpop.f32.mrf.mxu0
  %v932 = vadd.f32 0.0, %v931
  %933 = vmatmul.f32.gmra.mxu0 %v894
  %v934 = vpop.f32.mrf.mxu0
  %v935 = vadd.f32 0.0, %v934
  %936 = vmatmul.f32.gmra.mxu0 %v897
  %v937 = vpop.f32.mrf.mxu0
  %v938 = vadd.f32 0.0, %v937
  %939 = vmatmul.f32.gmra.mxu0 %v900
  %v940 = vpop.f32.mrf.mxu0
  %v941 = vadd.f32 0.0, %v940
  %942 = vmatmul.f32.gmra.mxu0 %v903
  %v943 = vpop.f32.mrf.mxu0
  %v944 = vadd.f32 0.0, %v943
  %945 = vdwg.mxu0
  %v947 = vsel %vm188, %v492, 0
  %v950 = vsel %vm188, %v495, 0
  %v953 = vsel %vm188, %v498, 0
  %v956 = vsel %vm188, %v501, 0
  %v959 = vsel %vm188, %v504, 0
  %v962 = vsel %vm188, %v507, 0
  %v965 = vsel %vm188, %v510, 0
  %v968 = vsel %vm188, %v513, 0
  %970 = vmatpush.msra.mxu0 0.0
  %971 = vmatpush.msra.mxu0 0.0
  %972 = vmatpush.msra.mxu0 0.0
  %973 = vmatpush.msra.mxu0 0.0
  %974 = vmatpush.msra.mxu0 0.0
  %975 = vmatpush.msra.mxu0 0.0
  %976 = vmatpush.msra.mxu0 0.0
  %977 = vmatpush.msra.mxu0 0.0
  %978 = vmatpush.msra.mxu0 0.0
  %979 = vmatpush.msra.mxu0 0.0
  %980 = vmatpush.msra.mxu0 0.0
  %981 = vmatpush.msra.mxu0 0.0
  %982 = vmatpush.msra.mxu0 0.0
  %983 = vmatpush.msra.mxu0 0.0
  %984 = vmatpush.msra.mxu0 0.0
  %985 = vmatpush.msra.mxu0 %v44
  %986 = vmatmul.f32.gmra.mxu0 %v947
  %v987 = vpop.f32.mrf.mxu0
  %v988 = vadd.f32 %v923, %v987
  %989 = vmatmul.f32.gmra.mxu0 %v950
  %v990 = vpop.f32.mrf.mxu0
  %v991 = vadd.f32 %v926, %v990
  %992 = vmatmul.f32.gmra.mxu0 %v953
  %v993 = vpop.f32.mrf.mxu0
  %v994 = vadd.f32 %v929, %v993
  %995 = vmatmul.f32.gmra.mxu0 %v956
  %v996 = vpop.f32.mrf.mxu0
  %v997 = vadd.f32 %v932, %v996
  %998 = vmatmul.f32.gmra.mxu0 %v959
  %v999 = vpop.f32.mrf.mxu0
  %v1000 = vadd.f32 %v935, %v999
  %1001 = vmatmul.f32.gmra.mxu0 %v962
  %v1002 = vpop.f32.mrf.mxu0
  %v1003 = vadd.f32 %v938, %v1002
  %1004 = vmatmul.f32.gmra.mxu0 %v965
  %v1005 = vpop.f32.mrf.mxu0
  %v1006 = vadd.f32 %v941, %v1005
  %1007 = vmatmul.f32.gmra.mxu0 %v968
  %v1008 = vpop.f32.mrf.mxu0
  %v1009 = vadd.f32 %v944, %v1008
  %1010 = vdwg.mxu0
  %1011 = vmatpush.msra.mxu0 0.0
  %1012 = vmatpush.msra.mxu0 0.0
  %1013 = vmatpush.msra.mxu0 0.0
  %1014 = vmatpush.msra.mxu0 0.0
  %1015 = vmatpush.msra.mxu0 0.0
  %1016 = vmatpush.msra.mxu0 0.0
  %1017 = vmatpush.msra.mxu0 0.0
  %1018 = vmatpush.msra.mxu0 0.0
  %1019 = vmatpush.msra.mxu0 0.0
  %1020 = vmatpush.msra.mxu0 0.0
  %1021 = vmatpush.msra.mxu0 0.0
  %1022 = vmatpush.msra.mxu0 0.0
  %1023 = vmatpush.msra.mxu0 %v31
  %1024 = vmatpush.msra.mxu0 %v30
  %1025 = vmatpush.msra.mxu0 %v29
  %1026 = vmatpush.msra.mxu0 %v28
  %1027 = vmatmul.f32.gmra.mxu0 %v83
  %v1028 = vpop.f32.mrf.mxu0
  %v1029 = vadd.f32 0.0, %v1028
  %1030 = vmatmul.f32.gmra.mxu0 %v86
  %v1031 = vpop.f32.mrf.mxu0
  %v1032 = vadd.f32 0.0, %v1031
  %1033 = vmatmul.f32.gmra.mxu0 %v89
  %v1034 = vpop.f32.mrf.mxu0
  %v1035 = vadd.f32 0.0, %v1034
  %1036 = vmatmul.f32.gmra.mxu0 %v92
  %v1037 = vpop.f32.mrf.mxu0
  %v1038 = vadd.f32 0.0, %v1037
  %1039 = vmatmul.f32.gmra.mxu0 %v95
  %v1040 = vpop.f32.mrf.mxu0
  %v1041 = vadd.f32 0.0, %v1040
  %1042 = vmatmul.f32.gmra.mxu0 %v98
  %v1043 = vpop.f32.mrf.mxu0
  %v1044 = vadd.f32 0.0, %v1043
  %1045 = vmatmul.f32.gmra.mxu0 %v101
  %v1046 = vpop.f32.mrf.mxu0
  %v1047 = vadd.f32 0.0, %v1046
  %1048 = vmatmul.f32.gmra.mxu0 %v104
  %v1049 = vpop.f32.mrf.mxu0
  %v1050 = vadd.f32 0.0, %v1049
  %1051 = vdwg.mxu0
  %v1053 = vsel %vm188, %v1029, 0
  %v1056 = vsel %vm188, %v1032, 0
  %v1059 = vsel %vm188, %v1035, 0
  %v1062 = vsel %vm188, %v1038, 0
  %v1065 = vsel %vm188, %v1041, 0
  %v1068 = vsel %vm188, %v1044, 0
  %v1071 = vsel %vm188, %v1047, 0
  %v1074 = vsel %vm188, %v1050, 0
  %1076 = vmatpush.msra.mxu0 0.0
  %1077 = vmatpush.msra.mxu0 0.0
  %1078 = vmatpush.msra.mxu0 0.0
  %1079 = vmatpush.msra.mxu0 0.0
  %1080 = vmatpush.msra.mxu0 0.0
  %1081 = vmatpush.msra.mxu0 0.0
  %1082 = vmatpush.msra.mxu0 0.0
  %1083 = vmatpush.msra.mxu0 0.0
  %1084 = vmatpush.msra.mxu0 0.0
  %1085 = vmatpush.msra.mxu0 0.0
  %1086 = vmatpush.msra.mxu0 0.0
  %1087 = vmatpush.msra.mxu0 0.0
  %1088 = vmatpush.msra.mxu0 0.0
  %1089 = vmatpush.msra.mxu0 0.0
  %1090 = vmatpush.msra.mxu0 0.0
  %1091 = vmatpush.msra.mxu0 %v130
  %1092 = vmatmul.f32.gmra.mxu0 %v1053
  %v1093 = vpop.f32.mrf.mxu0
  %v1094 = vadd.f32 0.0, %v1093
  %1095 = vmatmul.f32.gmra.mxu0 %v1056
  %v1096 = vpop.f32.mrf.mxu0
  %v1097 = vadd.f32 0.0, %v1096
  %1098 = vmatmul.f32.gmra.mxu0 %v1059
  %v1099 = vpop.f32.mrf.mxu0
  %v1100 = vadd.f32 0.0, %v1099
  %1101 = vmatmul.f32.gmra.mxu0 %v1062
  %v1102 = vpop.f32.mrf.mxu0
  %v1103 = vadd.f32 0.0, %v1102
  %1104 = vmatmul.f32.gmra.mxu0 %v1065
  %v1105 = vpop.f32.mrf.mxu0
  %v1106 = vadd.f32 0.0, %v1105
  %1107 = vmatmul.f32.gmra.mxu0 %v1068
  %v1108 = vpop.f32.mrf.mxu0
  %v1109 = vadd.f32 0.0, %v1108
  %1110 = vmatmul.f32.gmra.mxu0 %v1071
  %v1111 = vpop.f32.mrf.mxu0
  %v1112 = vadd.f32 0.0, %v1111
  %1113 = vmatmul.f32.gmra.mxu0 %v1074
  %v1114 = vpop.f32.mrf.mxu0
  %v1115 = vadd.f32 0.0, %v1114
  %1116 = vdwg.mxu0
  %v1117 = vsel %vm254, %v1094, -inf
  %1118 = vmax.xlane.f32.xlu0 %v1117
  %v1119 = vpop.xlane.xlu0 %1118
  %v1120 = vsel %vm254, %v1097, -inf
  %1121 = vmax.xlane.f32.xlu0 %v1120
  %v1122 = vpop.xlane.xlu0 %1121
  %v1123 = vsel %vm254, %v1100, -inf
  %1124 = vmax.xlane.f32.xlu0 %v1123
  %v1125 = vpop.xlane.xlu0 %1124
  %v1126 = vsel %vm254, %v1103, -inf
  %1127 = vmax.xlane.f32.xlu0 %v1126
  %v1128 = vpop.xlane.xlu0 %1127
  %v1129 = vsel %vm254, %v1106, -inf
  %1130 = vmax.xlane.f32.xlu0 %v1129
  %v1131 = vpop.xlane.xlu0 %1130
  %v1132 = vsel %vm254, %v1109, -inf
  %1133 = vmax.xlane.f32.xlu0 %v1132
  %v1134 = vpop.xlane.xlu0 %1133
  %v1135 = vsel %vm254, %v1112, -inf
  %1136 = vmax.xlane.f32.xlu0 %v1135
  %v1137 = vpop.xlane.xlu0 %1136
  %v1138 = vsel %vm254, %v1115, -inf
  %1139 = vmax.xlane.f32.xlu0 %v1138
  %v1140 = vpop.xlane.xlu0 %1139
  %v1141 = vsub.f32 %v1094, %v1119
  %v1142 = vsub.f32 %v1097, %v1122
  %v1143 = vsub.f32 %v1100, %v1125
  %v1144 = vsub.f32 %v1103, %v1128
  %v1145 = vsub.f32 %v1106, %v1131
  %v1146 = vsub.f32 %v1109, %v1134
  %v1147 = vsub.f32 %v1112, %v1137
  %v1148 = vsub.f32 %v1115, %v1140
  %v1149 = vmul.f32 %v1141, 1.442695
  %v1150 = vpow.pop %v1149
  %v1151 = vmul.f32 %v1142, 1.442695
  %v1152 = vpow.pop %v1151
  %v1153 = vmul.f32 %v1143, 1.442695
  %v1154 = vpow.pop %v1153
  %v1155 = vmul.f32 %v1144, 1.442695
  %v1156 = vpow.pop %v1155
  %v1157 = vmul.f32 %v1145, 1.442695
  %v1158 = vpow.pop %v1157
  %v1159 = vmul.f32 %v1146, 1.442695
  %v1160 = vpow.pop %v1159
  %v1161 = vmul.f32 %v1147, 1.442695
  %v1162 = vpow.pop %v1161
  %v1163 = vmul.f32 %v1148, 1.442695
  %v1164 = vpow.pop %v1163
  %v1165 = vsel %vm254, %v1150, 0.0
  %1166 = vadd.xlane.f32.xlu0 %v1165
  %v1167 = vpop.xlane.xlu0 %1166
  %v1168 = vsel %vm254, %v1152, 0.0
  %1169 = vadd.xlane.f32.xlu0 %v1168
  %v1170 = vpop.xlane.xlu0 %1169
  %v1171 = vsel %vm254, %v1154, 0.0
  %1172 = vadd.xlane.f32.xlu0 %v1171
  %v1173 = vpop.xlane.xlu0 %1172
  %v1174 = vsel %vm254, %v1156, 0.0
  %1175 = vadd.xlane.f32.xlu0 %v1174
  %v1176 = vpop.xlane.xlu0 %1175
  %v1177 = vsel %vm254, %v1158, 0.0
  %1178 = vadd.xlane.f32.xlu0 %v1177
  %v1179 = vpop.xlane.xlu0 %1178
  %v1180 = vsel %vm254, %v1160, 0.0
  %1181 = vadd.xlane.f32.xlu0 %v1180
  %v1182 = vpop.xlane.xlu0 %1181
  %v1183 = vsel %vm254, %v1162, 0.0
  %1184 = vadd.xlane.f32.xlu0 %v1183
  %v1185 = vpop.xlane.xlu0 %1184
  %v1186 = vsel %vm254, %v1164, 0.0
  %1187 = vadd.xlane.f32.xlu0 %v1186
  %v1188 = vpop.xlane.xlu0 %1187
  %v1189 = vrcp.pop %v1167
  %v1190 = vmul.f32 %v1167, %v1189
  %v1191 = vsub.f32 1.0, %v1190
  %v1192 = vmul.f32 %v1189, %v1191
  %v1193 = vadd.f32 %v1189, %v1192
  %vm1194 = vweird.f32 %v1167
  %vm1195 = vweird.f32 %v1189
  %vm1196 = vmor %vm1194, %vm1195
  %v1197 = vsel %vm1196, %v1189, %v1193
  %v1198 = vand.u32 2147483647, %v1167
  %vm1199 = vcmp.eq.f32.partialorder %v1198, 8.507059e+37
  %v1200 = vand.u32 %v1167, 2147483648
  %v1201 = vor.u32 1.1754944e-38, %v1200
  %v1202 = vsel %vm1199, %v1201, %v1197
  %v1203 = vrcp.pop %v1170
  %v1204 = vmul.f32 %v1170, %v1203
  %v1205 = vsub.f32 1.0, %v1204
  %v1206 = vmul.f32 %v1203, %v1205
  %v1207 = vadd.f32 %v1203, %v1206
  %vm1208 = vweird.f32 %v1170
  %vm1209 = vweird.f32 %v1203
  %vm1210 = vmor %vm1208, %vm1209
  %v1211 = vsel %vm1210, %v1203, %v1207
  %v1212 = vand.u32 2147483647, %v1170
  %vm1213 = vcmp.eq.f32.partialorder %v1212, 8.507059e+37
  %v1214 = vand.u32 %v1170, 2147483648
  %v1215 = vor.u32 1.1754944e-38, %v1214
  %v1216 = vsel %vm1213, %v1215, %v1211
  %v1217 = vrcp.pop %v1173
  %v1218 = vmul.f32 %v1173, %v1217
  %v1219 = vsub.f32 1.0, %v1218
  %v1220 = vmul.f32 %v1217, %v1219
  %v1221 = vadd.f32 %v1217, %v1220
  %vm1222 = vweird.f32 %v1173
  %vm1223 = vweird.f32 %v1217
  %vm1224 = vmor %vm1222, %vm1223
  %v1225 = vsel %vm1224, %v1217, %v1221
  %v1226 = vand.u32 2147483647, %v1173
  %vm1227 = vcmp.eq.f32.partialorder %v1226, 8.507059e+37
  %v1228 = vand.u32 %v1173, 2147483648
  %v1229 = vor.u32 1.1754944e-38, %v1228
  %v1230 = vsel %vm1227, %v1229, %v1225
  %v1231 = vrcp.pop %v1176
  %v1232 = vmul.f32 %v1176, %v1231
  %v1233 = vsub.f32 1.0, %v1232
  %v1234 = vmul.f32 %v1231, %v1233
  %v1235 = vadd.f32 %v1231, %v1234
  %vm1236 = vweird.f32 %v1176
  %vm1237 = vweird.f32 %v1231
  %vm1238 = vmor %vm1236, %vm1237
  %v1239 = vsel %vm1238, %v1231, %v1235
  %v1240 = vand.u32 2147483647, %v1176
  %vm1241 = vcmp.eq.f32.partialorder %v1240, 8.507059e+37
  %v1242 = vand.u32 %v1176, 2147483648
  %v1243 = vor.u32 1.1754944e-38, %v1242
  %v1244 = vsel %vm1241, %v1243, %v1239
  %v1245 = vrcp.pop %v1179
  %v1246 = vmul.f32 %v1179, %v1245
  %v1247 = vsub.f32 1.0, %v1246
  %v1248 = vmul.f32 %v1245, %v1247
  %v1249 = vadd.f32 %v1245, %v1248
  %vm1250 = vweird.f32 %v1179
  %vm1251 = vweird.f32 %v1245
  %vm1252 = vmor %vm1250, %vm1251
  %v1253 = vsel %vm1252, %v1245, %v1249
  %v1254 = vand.u32 2147483647, %v1179
  %vm1255 = vcmp.eq.f32.partialorder %v1254, 8.507059e+37
  %v1256 = vand.u32 %v1179, 2147483648
  %v1257 = vor.u32 1.1754944e-38, %v1256
  %v1258 = vsel %vm1255, %v1257, %v1253
  %v1259 = vrcp.pop %v1182
  %v1260 = vmul.f32 %v1182, %v1259
  %v1261 = vsub.f32 1.0, %v1260
  %v1262 = vmul.f32 %v1259, %v1261
  %v1263 = vadd.f32 %v1259, %v1262
  %vm1264 = vweird.f32 %v1182
  %vm1265 = vweird.f32 %v1259
  %vm1266 = vmor %vm1264, %vm1265
  %v1267 = vsel %vm1266, %v1259, %v1263
  %v1268 = vand.u32 2147483647, %v1182
  %vm1269 = vcmp.eq.f32.partialorder %v1268, 8.507059e+37
  %v1270 = vand.u32 %v1182, 2147483648
  %v1271 = vor.u32 1.1754944e-38, %v1270
  %v1272 = vsel %vm1269, %v1271, %v1267
  %v1273 = vrcp.pop %v1185
  %v1274 = vmul.f32 %v1185, %v1273
  %v1275 = vsub.f32 1.0, %v1274
  %v1276 = vmul.f32 %v1273, %v1275
  %v1277 = vadd.f32 %v1273, %v1276
  %vm1278 = vweird.f32 %v1185
  %vm1279 = vweird.f32 %v1273
  %vm1280 = vmor %vm1278, %vm1279
  %v1281 = vsel %vm1280, %v1273, %v1277
  %v1282 = vand.u32 2147483647, %v1185
  %vm1283 = vcmp.eq.f32.partialorder %v1282, 8.507059e+37
  %v1284 = vand.u32 %v1185, 2147483648
  %v1285 = vor.u32 1.1754944e-38, %v1284
  %v1286 = vsel %vm1283, %v1285, %v1281
  %v1287 = vrcp.pop %v1188
  %v1288 = vmul.f32 %v1188, %v1287
  %v1289 = vsub.f32 1.0, %v1288
  %v1290 = vmul.f32 %v1287, %v1289
  %v1291 = vadd.f32 %v1287, %v1290
  %vm1292 = vweird.f32 %v1188
  %vm1293 = vweird.f32 %v1287
  %vm1294 = vmor %vm1292, %vm1293
  %v1295 = vsel %vm1294, %v1287, %v1291
  %v1296 = vand.u32 2147483647, %v1188
  %vm1297 = vcmp.eq.f32.partialorder %v1296, 8.507059e+37
  %v1298 = vand.u32 %v1188, 2147483648
  %v1299 = vor.u32 1.1754944e-38, %v1298
  %v1300 = vsel %vm1297, %v1299, %v1295
  %v1301 = vmul.f32 %v1150, %v1202
  %v1302 = vmul.f32 %v1152, %v1216
  %v1303 = vmul.f32 %v1154, %v1230
  %v1304 = vmul.f32 %v1156, %v1244
  %v1305 = vmul.f32 %v1158, %v1258
  %v1306 = vmul.f32 %v1160, %v1272
  %v1307 = vmul.f32 %v1162, %v1286
  %v1308 = vmul.f32 %v1164, %v1300
  %v1310 = vsel %vm254, %v1301, 0
  %v1313 = vsel %vm254, %v1302, 0
  %v1316 = vsel %vm254, %v1303, 0
  %v1319 = vsel %vm254, %v1304, 0
  %v1322 = vsel %vm254, %v1305, 0
  %v1325 = vsel %vm254, %v1306, 0
  %v1328 = vsel %vm254, %v1307, 0
  %v1331 = vsel %vm254, %v1308, 0
  %v1334 = vsel %vm254, %v142, 0
  %1336 = vmatpush.xpose.msra.mxu0 0.0
  %1337 = vmatpush.xpose.msra.mxu0 0.0
  %1338 = vmatpush.xpose.msra.mxu0 0.0
  %1339 = vmatpush.xpose.msra.mxu0 0.0
  %1340 = vmatpush.xpose.msra.mxu0 0.0
  %1341 = vmatpush.xpose.msra.mxu0 0.0
  %1342 = vmatpush.xpose.msra.mxu0 0.0
  %1343 = vmatpush.xpose.msra.mxu0 0.0
  %1344 = vmatpush.xpose.msra.mxu0 0.0
  %1345 = vmatpush.xpose.msra.mxu0 0.0
  %1346 = vmatpush.xpose.msra.mxu0 0.0
  %1347 = vmatpush.xpose.msra.mxu0 0.0
  %1348 = vmatpush.xpose.msra.mxu0 0.0
  %1349 = vmatpush.xpose.msra.mxu0 0.0
  %1350 = vmatpush.xpose.msra.mxu0 0.0
  %1351 = vmatpush.xpose.msra.mxu0 %v1334
  %1352 = vmatmul.f32.gmra.mxu0 %v1310
  %v1353 = vpop.f32.mrf.mxu0
  %v1354 = vadd.f32 0.0, %v1353
  %1355 = vmatmul.f32.gmra.mxu0 %v1313
  %v1356 = vpop.f32.mrf.mxu0
  %v1357 = vadd.f32 0.0, %v1356
  %1358 = vmatmul.f32.gmra.mxu0 %v1316
  %v1359 = vpop.f32.mrf.mxu0
  %v1360 = vadd.f32 0.0, %v1359
  %1361 = vmatmul.f32.gmra.mxu0 %v1319
  %v1362 = vpop.f32.mrf.mxu0
  %v1363 = vadd.f32 0.0, %v1362
  %1364 = vmatmul.f32.gmra.mxu0 %v1322
  %v1365 = vpop.f32.mrf.mxu0
  %v1366 = vadd.f32 0.0, %v1365
  %1367 = vmatmul.f32.gmra.mxu0 %v1325
  %v1368 = vpop.f32.mrf.mxu0
  %v1369 = vadd.f32 0.0, %v1368
  %1370 = vmatmul.f32.gmra.mxu0 %v1328
  %v1371 = vpop.f32.mrf.mxu0
  %v1372 = vadd.f32 0.0, %v1371
  %1373 = vmatmul.f32.gmra.mxu0 %v1331
  %v1374 = vpop.f32.mrf.mxu0
  %v1375 = vadd.f32 0.0, %v1374
  %1376 = vdwg.mxu0
  %v1378 = vsel %vm188, %v1354, 0
  %v1381 = vsel %vm188, %v1357, 0
  %v1384 = vsel %vm188, %v1360, 0
  %v1387 = vsel %vm188, %v1363, 0
  %v1390 = vsel %vm188, %v1366, 0
  %v1393 = vsel %vm188, %v1369, 0
  %v1396 = vsel %vm188, %v1372, 0
  %v1399 = vsel %vm188, %v1375, 0
  %1401 = vmatpush.msra.mxu0 0.0
  %1402 = vmatpush.msra.mxu0 0.0
  %1403 = vmatpush.msra.mxu0 0.0
  %1404 = vmatpush.msra.mxu0 0.0
  %1405 = vmatpush.msra.mxu0 0.0
  %1406 = vmatpush.msra.mxu0 0.0
  %1407 = vmatpush.msra.mxu0 0.0
  %1408 = vmatpush.msra.mxu0 0.0
  %1409 = vmatpush.msra.mxu0 0.0
  %1410 = vmatpush.msra.mxu0 0.0
  %1411 = vmatpush.msra.mxu0 0.0
  %1412 = vmatpush.msra.mxu0 0.0
  %1413 = vmatpush.msra.mxu0 0.0
  %1414 = vmatpush.msra.mxu0 0.0
  %1415 = vmatpush.msra.mxu0 0.0
  %1416 = vmatpush.msra.mxu0 %v46
  %1417 = vmatmul.f32.gmra.mxu0 %v1378
  %v1418 = vpop.f32.mrf.mxu0
  %v1419 = vadd.f32 0.0, %v1418
  %1420 = vmatmul.f32.gmra.mxu0 %v1381
  %v1421 = vpop.f32.mrf.mxu0
  %v1422 = vadd.f32 0.0, %v1421
  %1423 = vmatmul.f32.gmra.mxu0 %v1384
  %v1424 = vpop.f32.mrf.mxu0
  %v1425 = vadd.f32 0.0, %v1424
  %1426 = vmatmul.f32.gmra.mxu0 %v1387
  %v1427 = vpop.f32.mrf.mxu0
  %v1428 = vadd.f32 0.0, %v1427
  %1429 = vmatmul.f32.gmra.mxu0 %v1390
  %v1430 = vpop.f32.mrf.mxu0
  %v1431 = vadd.f32 0.0, %v1430
  %1432 = vmatmul.f32.gmra.mxu0 %v1393
  %v1433 = vpop.f32.mrf.mxu0
  %v1434 = vadd.f32 0.0, %v1433
  %1435 = vmatmul.f32.gmra.mxu0 %v1396
  %v1436 = vpop.f32.mrf.mxu0
  %v1437 = vadd.f32 0.0, %v1436
  %1438 = vmatmul.f32.gmra.mxu0 %v1399
  %v1439 = vpop.f32.mrf.mxu0
  %v1440 = vadd.f32 0.0, %v1439
  %1441 = vdwg.mxu0
  %v1442 = vadd.f32 %v988, %v1419
  %v1443 = vadd.f32 %v991, %v1422
  %v1444 = vadd.f32 %v994, %v1425
  %v1445 = vadd.f32 %v997, %v1428
  %v1446 = vadd.f32 %v1000, %v1431
  %v1447 = vadd.f32 %v1003, %v1434
  %v1448 = vadd.f32 %v1006, %v1437
  %v1449 = vadd.f32 %v1009, %v1440
  %1450 = vmatpush.msra.mxu0 0.0
  %1451 = vmatpush.msra.mxu0 0.0
  %1452 = vmatpush.msra.mxu0 0.0
  %1453 = vmatpush.msra.mxu0 0.0
  %1454 = vmatpush.msra.mxu0 0.0
  %1455 = vmatpush.msra.mxu0 0.0
  %1456 = vmatpush.msra.mxu0 0.0
  %1457 = vmatpush.msra.mxu0 0.0
  %1458 = vmatpush.msra.mxu0 0.0
  %1459 = vmatpush.msra.mxu0 0.0
  %1460 = vmatpush.msra.mxu0 0.0
  %1461 = vmatpush.msra.mxu0 0.0
  %1462 = vmatpush.msra.mxu0 %v35
  %1463 = vmatpush.msra.mxu0 %v34
  %1464 = vmatpush.msra.mxu0 %v33
  %1465 = vmatpush.msra.mxu0 %v32
  %1466 = vmatmul.f32.gmra.mxu0 %v83
  %v1467 = vpop.f32.mrf.mxu0
  %v1468 = vadd.f32 0.0, %v1467
  %1469 = vmatmul.f32.gmra.mxu0 %v86
  %v1470 = vpop.f32.mrf.mxu0
  %v1471 = vadd.f32 0.0, %v1470
  %1472 = vmatmul.f32.gmra.mxu0 %v89
  %v1473 = vpop.f32.mrf.mxu0
  %v1474 = vadd.f32 0.0, %v1473
  %1475 = vmatmul.f32.gmra.mxu0 %v92
  %v1476 = vpop.f32.mrf.mxu0
  %v1477 = vadd.f32 0.0, %v1476
  %1478 = vmatmul.f32.gmra.mxu0 %v95
  %v1479 = vpop.f32.mrf.mxu0
  %v1480 = vadd.f32 0.0, %v1479
  %1481 = vmatmul.f32.gmra.mxu0 %v98
  %v1482 = vpop.f32.mrf.mxu0
  %v1483 = vadd.f32 0.0, %v1482
  %1484 = vmatmul.f32.gmra.mxu0 %v101
  %v1485 = vpop.f32.mrf.mxu0
  %v1486 = vadd.f32 0.0, %v1485
  %1487 = vmatmul.f32.gmra.mxu0 %v104
  %v1488 = vpop.f32.mrf.mxu0
  %v1489 = vadd.f32 0.0, %v1488
  %1490 = vdwg.mxu0
  %v1492 = vsel %vm188, %v1468, 0
  %v1495 = vsel %vm188, %v1471, 0
  %v1498 = vsel %vm188, %v1474, 0
  %v1501 = vsel %vm188, %v1477, 0
  %v1504 = vsel %vm188, %v1480, 0
  %v1507 = vsel %vm188, %v1483, 0
  %v1510 = vsel %vm188, %v1486, 0
  %v1513 = vsel %vm188, %v1489, 0
  %1515 = vmatpush.msra.mxu0 0.0
  %1516 = vmatpush.msra.mxu0 0.0
  %1517 = vmatpush.msra.mxu0 0.0
  %1518 = vmatpush.msra.mxu0 0.0
  %1519 = vmatpush.msra.mxu0 0.0
  %1520 = vmatpush.msra.mxu0 0.0
  %1521 = vmatpush.msra.mxu0 0.0
  %1522 = vmatpush.msra.mxu0 0.0
  %1523 = vmatpush.msra.mxu0 0.0
  %1524 = vmatpush.msra.mxu0 0.0
  %1525 = vmatpush.msra.mxu0 0.0
  %1526 = vmatpush.msra.mxu0 0.0
  %1527 = vmatpush.msra.mxu0 0.0
  %1528 = vmatpush.msra.mxu0 0.0
  %1529 = vmatpush.msra.mxu0 0.0
  %1530 = vmatpush.msra.mxu0 %v133
  %1531 = vmatmul.f32.gmra.mxu0 %v1492
  %v1532 = vpop.f32.mrf.mxu0
  %v1533 = vadd.f32 0.0, %v1532
  %1534 = vmatmul.f32.gmra.mxu0 %v1495
  %v1535 = vpop.f32.mrf.mxu0
  %v1536 = vadd.f32 0.0, %v1535
  %1537 = vmatmul.f32.gmra.mxu0 %v1498
  %v1538 = vpop.f32.mrf.mxu0
  %v1539 = vadd.f32 0.0, %v1538
  %1540 = vmatmul.f32.gmra.mxu0 %v1501
  %v1541 = vpop.f32.mrf.mxu0
  %v1542 = vadd.f32 0.0, %v1541
  %1543 = vmatmul.f32.gmra.mxu0 %v1504
  %v1544 = vpop.f32.mrf.mxu0
  %v1545 = vadd.f32 0.0, %v1544
  %1546 = vmatmul.f32.gmra.mxu0 %v1507
  %v1547 = vpop.f32.mrf.mxu0
  %v1548 = vadd.f32 0.0, %v1547
  %1549 = vmatmul.f32.gmra.mxu0 %v1510
  %v1550 = vpop.f32.mrf.mxu0
  %v1551 = vadd.f32 0.0, %v1550
  %1552 = vmatmul.f32.gmra.mxu0 %v1513
  %v1553 = vpop.f32.mrf.mxu0
  %v1554 = vadd.f32 0.0, %v1553
  %1555 = vdwg.mxu0
  %v1556 = vsel %vm254, %v1533, -inf
  %1557 = vmax.xlane.f32.xlu0 %v1556
  %v1558 = vpop.xlane.xlu0 %1557
  %v1559 = vsel %vm254, %v1536, -inf
  %1560 = vmax.xlane.f32.xlu0 %v1559
  %v1561 = vpop.xlane.xlu0 %1560
  %v1562 = vsel %vm254, %v1539, -inf
  %1563 = vmax.xlane.f32.xlu0 %v1562
  %v1564 = vpop.xlane.xlu0 %1563
  %v1565 = vsel %vm254, %v1542, -inf
  %1566 = vmax.xlane.f32.xlu0 %v1565
  %v1567 = vpop.xlane.xlu0 %1566
  %v1568 = vsel %vm254, %v1545, -inf
  %1569 = vmax.xlane.f32.xlu0 %v1568
  %v1570 = vpop.xlane.xlu0 %1569
  %v1571 = vsel %vm254, %v1548, -inf
  %1572 = vmax.xlane.f32.xlu0 %v1571
  %v1573 = vpop.xlane.xlu0 %1572
  %v1574 = vsel %vm254, %v1551, -inf
  %1575 = vmax.xlane.f32.xlu0 %v1574
  %v1576 = vpop.xlane.xlu0 %1575
  %v1577 = vsel %vm254, %v1554, -inf
  %1578 = vmax.xlane.f32.xlu0 %v1577
  %v1579 = vpop.xlane.xlu0 %1578
  %v1580 = vsub.f32 %v1533, %v1558
  %v1581 = vsub.f32 %v1536, %v1561
  %v1582 = vsub.f32 %v1539, %v1564
  %v1583 = vsub.f32 %v1542, %v1567
  %v1584 = vsub.f32 %v1545, %v1570
  %v1585 = vsub.f32 %v1548, %v1573
  %v1586 = vsub.f32 %v1551, %v1576
  %v1587 = vsub.f32 %v1554, %v1579
  %v1588 = vmul.f32 %v1580, 1.442695
  %v1589 = vpow.pop %v1588
  %v1590 = vmul.f32 %v1581, 1.442695
  %v1591 = vpow.pop %v1590
  %v1592 = vmul.f32 %v1582, 1.442695
  %v1593 = vpow.pop %v1592
  %v1594 = vmul.f32 %v1583, 1.442695
  %v1595 = vpow.pop %v1594
  %v1596 = vmul.f32 %v1584, 1.442695
  %v1597 = vpow.pop %v1596
  %v1598 = vmul.f32 %v1585, 1.442695
  %v1599 = vpow.pop %v1598
  %v1600 = vmul.f32 %v1586, 1.442695
  %v1601 = vpow.pop %v1600
  %v1602 = vmul.f32 %v1587, 1.442695
  %v1603 = vpow.pop %v1602
  %v1604 = vsel %vm254, %v1589, 0.0
  %1605 = vadd.xlane.f32.xlu0 %v1604
  %v1606 = vpop.xlane.xlu0 %1605
  %v1607 = vsel %vm254, %v1591, 0.0
  %1608 = vadd.xlane.f32.xlu0 %v1607
  %v1609 = vpop.xlane.xlu0 %1608
  %v1610 = vsel %vm254, %v1593, 0.0
  %1611 = vadd.xlane.f32.xlu0 %v1610
  %v1612 = vpop.xlane.xlu0 %1611
  %v1613 = vsel %vm254, %v1595, 0.0
  %1614 = vadd.xlane.f32.xlu0 %v1613
  %v1615 = vpop.xlane.xlu0 %1614
  %v1616 = vsel %vm254, %v1597, 0.0
  %1617 = vadd.xlane.f32.xlu0 %v1616
  %v1618 = vpop.xlane.xlu0 %1617
  %v1619 = vsel %vm254, %v1599, 0.0
  %1620 = vadd.xlane.f32.xlu0 %v1619
  %v1621 = vpop.xlane.xlu0 %1620
  %v1622 = vsel %vm254, %v1601, 0.0
  %1623 = vadd.xlane.f32.xlu0 %v1622
  %v1624 = vpop.xlane.xlu0 %1623
  %v1625 = vsel %vm254, %v1603, 0.0
  %1626 = vadd.xlane.f32.xlu0 %v1625
  %v1627 = vpop.xlane.xlu0 %1626
  %v1628 = vrcp.pop %v1606
  %v1629 = vmul.f32 %v1606, %v1628
  %v1630 = vsub.f32 1.0, %v1629
  %v1631 = vmul.f32 %v1628, %v1630
  %v1632 = vadd.f32 %v1628, %v1631
  %vm1633 = vweird.f32 %v1606
  %vm1634 = vweird.f32 %v1628
  %vm1635 = vmor %vm1633, %vm1634
  %v1636 = vsel %vm1635, %v1628, %v1632
  %v1637 = vand.u32 2147483647, %v1606
  %vm1638 = vcmp.eq.f32.partialorder %v1637, 8.507059e+37
  %v1639 = vand.u32 %v1606, 2147483648
  %v1640 = vor.u32 1.1754944e-38, %v1639
  %v1641 = vsel %vm1638, %v1640, %v1636
  %v1642 = vrcp.pop %v1609
  %v1643 = vmul.f32 %v1609, %v1642
  %v1644 = vsub.f32 1.0, %v1643
  %v1645 = vmul.f32 %v1642, %v1644
  %v1646 = vadd.f32 %v1642, %v1645
  %vm1647 = vweird.f32 %v1609
  %vm1648 = vweird.f32 %v1642
  %vm1649 = vmor %vm1647, %vm1648
  %v1650 = vsel %vm1649, %v1642, %v1646
  %v1651 = vand.u32 2147483647, %v1609
  %vm1652 = vcmp.eq.f32.partialorder %v1651, 8.507059e+37
  %v1653 = vand.u32 %v1609, 2147483648
  %v1654 = vor.u32 1.1754944e-38, %v1653
  %v1655 = vsel %vm1652, %v1654, %v1650
  %v1656 = vrcp.pop %v1612
  %v1657 = vmul.f32 %v1612, %v1656
  %v1658 = vsub.f32 1.0, %v1657
  %v1659 = vmul.f32 %v1656, %v1658
  %v1660 = vadd.f32 %v1656, %v1659
  %vm1661 = vweird.f32 %v1612
  %vm1662 = vweird.f32 %v1656
  %vm1663 = vmor %vm1661, %vm1662
  %v1664 = vsel %vm1663, %v1656, %v1660
  %v1665 = vand.u32 2147483647, %v1612
  %vm1666 = vcmp.eq.f32.partialorder %v1665, 8.507059e+37
  %v1667 = vand.u32 %v1612, 2147483648
  %v1668 = vor.u32 1.1754944e-38, %v1667
  %v1669 = vsel %vm1666, %v1668, %v1664
  %v1670 = vrcp.pop %v1615
  %v1671 = vmul.f32 %v1615, %v1670
  %v1672 = vsub.f32 1.0, %v1671
  %v1673 = vmul.f32 %v1670, %v1672
  %v1674 = vadd.f32 %v1670, %v1673
  %vm1675 = vweird.f32 %v1615
  %vm1676 = vweird.f32 %v1670
  %vm1677 = vmor %vm1675, %vm1676
  %v1678 = vsel %vm1677, %v1670, %v1674
  %v1679 = vand.u32 2147483647, %v1615
  %vm1680 = vcmp.eq.f32.partialorder %v1679, 8.507059e+37
  %v1681 = vand.u32 %v1615, 2147483648
  %v1682 = vor.u32 1.1754944e-38, %v1681
  %v1683 = vsel %vm1680, %v1682, %v1678
  %v1684 = vrcp.pop %v1618
  %v1685 = vmul.f32 %v1618, %v1684
  %v1686 = vsub.f32 1.0, %v1685
  %v1687 = vmul.f32 %v1684, %v1686
  %v1688 = vadd.f32 %v1684, %v1687
  %vm1689 = vweird.f32 %v1618
  %vm1690 = vweird.f32 %v1684
  %vm1691 = vmor %vm1689, %vm1690
  %v1692 = vsel %vm1691, %v1684, %v1688
  %v1693 = vand.u32 2147483647, %v1618
  %vm1694 = vcmp.eq.f32.partialorder %v1693, 8.507059e+37
  %v1695 = vand.u32 %v1618, 2147483648
  %v1696 = vor.u32 1.1754944e-38, %v1695
  %v1697 = vsel %vm1694, %v1696, %v1692
  %v1698 = vrcp.pop %v1621
  %v1699 = vmul.f32 %v1621, %v1698
  %v1700 = vsub.f32 1.0, %v1699
  %v1701 = vmul.f32 %v1698, %v1700
  %v1702 = vadd.f32 %v1698, %v1701
  %vm1703 = vweird.f32 %v1621
  %vm1704 = vweird.f32 %v1698
  %vm1705 = vmor %vm1703, %vm1704
  %v1706 = vsel %vm1705, %v1698, %v1702
  %v1707 = vand.u32 2147483647, %v1621
  %vm1708 = vcmp.eq.f32.partialorder %v1707, 8.507059e+37
  %v1709 = vand.u32 %v1621, 2147483648
  %v1710 = vor.u32 1.1754944e-38, %v1709
  %v1711 = vsel %vm1708, %v1710, %v1706
  %v1712 = vrcp.pop %v1624
  %v1713 = vmul.f32 %v1624, %v1712
  %v1714 = vsub.f32 1.0, %v1713
  %v1715 = vmul.f32 %v1712, %v1714
  %v1716 = vadd.f32 %v1712, %v1715
  %vm1717 = vweird.f32 %v1624
  %vm1718 = vweird.f32 %v1712
  %vm1719 = vmor %vm1717, %vm1718
  %v1720 = vsel %vm1719, %v1712, %v1716
  %v1721 = vand.u32 2147483647, %v1624
  %vm1722 = vcmp.eq.f32.partialorder %v1721, 8.507059e+37
  %v1723 = vand.u32 %v1624, 2147483648
  %v1724 = vor.u32 1.1754944e-38, %v1723
  %v1725 = vsel %vm1722, %v1724, %v1720
  %v1726 = vrcp.pop %v1627
  %v1727 = vmul.f32 %v1627, %v1726
  %v1728 = vsub.f32 1.0, %v1727
  %v1729 = vmul.f32 %v1726, %v1728
  %v1730 = vadd.f32 %v1726, %v1729
  %vm1731 = vweird.f32 %v1627
  %vm1732 = vweird.f32 %v1726
  %vm1733 = vmor %vm1731, %vm1732
  %v1734 = vsel %vm1733, %v1726, %v1730
  %v1735 = vand.u32 2147483647, %v1627
  %vm1736 = vcmp.eq.f32.partialorder %v1735, 8.507059e+37
  %v1737 = vand.u32 %v1627, 2147483648
  %v1738 = vor.u32 1.1754944e-38, %v1737
  %v1739 = vsel %vm1736, %v1738, %v1734
  %v1740 = vmul.f32 %v1589, %v1641
  %v1741 = vmul.f32 %v1591, %v1655
  %v1742 = vmul.f32 %v1593, %v1669
  %v1743 = vmul.f32 %v1595, %v1683
  %v1744 = vmul.f32 %v1597, %v1697
  %v1745 = vmul.f32 %v1599, %v1711
  %v1746 = vmul.f32 %v1601, %v1725
  %v1747 = vmul.f32 %v1603, %v1739
  %v1749 = vsel %vm254, %v1740, 0
  %v1752 = vsel %vm254, %v1741, 0
  %v1755 = vsel %vm254, %v1742, 0
  %v1758 = vsel %vm254, %v1743, 0
  %v1761 = vsel %vm254, %v1744, 0
  %v1764 = vsel %vm254, %v1745, 0
  %v1767 = vsel %vm254, %v1746, 0
  %v1770 = vsel %vm254, %v1747, 0
  %v1773 = vsel %vm254, %v145, 0
  %1775 = vmatpush.xpose.msra.mxu0 0.0
  %1776 = vmatpush.xpose.msra.mxu0 0.0
  %1777 = vmatpush.xpose.msra.mxu0 0.0
  %1778 = vmatpush.xpose.msra.mxu0 0.0
  %1779 = vmatpush.xpose.msra.mxu0 0.0
  %1780 = vmatpush.xpose.msra.mxu0 0.0
  %1781 = vmatpush.xpose.msra.mxu0 0.0
  %1782 = vmatpush.xpose.msra.mxu0 0.0
  %1783 = vmatpush.xpose.msra.mxu0 0.0
  %1784 = vmatpush.xpose.msra.mxu0 0.0
  %1785 = vmatpush.xpose.msra.mxu0 0.0
  %1786 = vmatpush.xpose.msra.mxu0 0.0
  %1787 = vmatpush.xpose.msra.mxu0 0.0
  %1788 = vmatpush.xpose.msra.mxu0 0.0
  %1789 = vmatpush.xpose.msra.mxu0 0.0
  %1790 = vmatpush.xpose.msra.mxu0 %v1773
  %1791 = vmatmul.f32.gmra.mxu0 %v1749
  %v1792 = vpop.f32.mrf.mxu0
  %v1793 = vadd.f32 0.0, %v1792
  %1794 = vmatmul.f32.gmra.mxu0 %v1752
  %v1795 = vpop.f32.mrf.mxu0
  %v1796 = vadd.f32 0.0, %v1795
  %1797 = vmatmul.f32.gmra.mxu0 %v1755
  %v1798 = vpop.f32.mrf.mxu0
  %v1799 = vadd.f32 0.0, %v1798
  %1800 = vmatmul.f32.gmra.mxu0 %v1758
  %v1801 = vpop.f32.mrf.mxu0
  %v1802 = vadd.f32 0.0, %v1801
  %1803 = vmatmul.f32.gmra.mxu0 %v1761
  %v1804 = vpop.f32.mrf.mxu0
  %v1805 = vadd.f32 0.0, %v1804
  %1806 = vmatmul.f32.gmra.mxu0 %v1764
  %v1807 = vpop.f32.mrf.mxu0
  %v1808 = vadd.f32 0.0, %v1807
  %1809 = vmatmul.f32.gmra.mxu0 %v1767
  %v1810 = vpop.f32.mrf.mxu0
  %v1811 = vadd.f32 0.0, %v1810
  %1812 = vmatmul.f32.gmra.mxu0 %v1770
  %v1813 = vpop.f32.mrf.mxu0
  %v1814 = vadd.f32 0.0, %v1813
  %1815 = vdwg.mxu0
  %v1817 = vsel %vm188, %v1793, 0
  %v1820 = vsel %vm188, %v1796, 0
  %v1823 = vsel %vm188, %v1799, 0
  %v1826 = vsel %vm188, %v1802, 0
  %v1829 = vsel %vm188, %v1805, 0
  %v1832 = vsel %vm188, %v1808, 0
  %v1835 = vsel %vm188, %v1811, 0
  %v1838 = vsel %vm188, %v1814, 0
  %1840 = vmatpush.msra.mxu0 0.0
  %1841 = vmatpush.msra.mxu0 0.0
  %1842 = vmatpush.msra.mxu0 0.0
  %1843 = vmatpush.msra.mxu0 0.0
  %1844 = vmatpush.msra.mxu0 0.0
  %1845 = vmatpush.msra.mxu0 0.0
  %1846 = vmatpush.msra.mxu0 0.0
  %1847 = vmatpush.msra.mxu0 0.0
  %1848 = vmatpush.msra.mxu0 0.0
  %1849 = vmatpush.msra.mxu0 0.0
  %1850 = vmatpush.msra.mxu0 0.0
  %1851 = vmatpush.msra.mxu0 0.0
  %1852 = vmatpush.msra.mxu0 0.0
  %1853 = vmatpush.msra.mxu0 0.0
  %1854 = vmatpush.msra.mxu0 0.0
  %1855 = vmatpush.msra.mxu0 %v47
  %1856 = vmatmul.f32.gmra.mxu0 %v1817
  %v1857 = vpop.f32.mrf.mxu0
  %v1858 = vadd.f32 0.0, %v1857
  %1859 = vmatmul.f32.gmra.mxu0 %v1820
  %v1860 = vpop.f32.mrf.mxu0
  %v1861 = vadd.f32 0.0, %v1860
  %1862 = vmatmul.f32.gmra.mxu0 %v1823
  %v1863 = vpop.f32.mrf.mxu0
  %v1864 = vadd.f32 0.0, %v1863
  %1865 = vmatmul.f32.gmra.mxu0 %v1826
  %v1866 = vpop.f32.mrf.mxu0
  %v1867 = vadd.f32 0.0, %v1866
  %1868 = vmatmul.f32.gmra.mxu0 %v1829
  %v1869 = vpop.f32.mrf.mxu0
  %v1870 = vadd.f32 0.0, %v1869
  %1871 = vmatmul.f32.gmra.mxu0 %v1832
  %v1872 = vpop.f32.mrf.mxu0
  %v1873 = vadd.f32 0.0, %v1872
  %1874 = vmatmul.f32.gmra.mxu0 %v1835
  %v1875 = vpop.f32.mrf.mxu0
  %v1876 = vadd.f32 0.0, %v1875
  %1877 = vmatmul.f32.gmra.mxu0 %v1838
  %v1878 = vpop.f32.mrf.mxu0
  %v1879 = vadd.f32 0.0, %v1878
  %1880 = vdwg.mxu0
  %v1881 = vadd.f32 %v1442, %v1858
  %v1882 = vadd.f32 %v1443, %v1861
  %v1883 = vadd.f32 %v1444, %v1864
  %v1884 = vadd.f32 %v1445, %v1867
  %v1885 = vadd.f32 %v1446, %v1870
  %v1886 = vadd.f32 %v1447, %v1873
  %v1887 = vadd.f32 %v1448, %v1876
  %v1888 = vadd.f32 %v1449, %v1879
  %v1890 = vperm.slane %v48, 0
  %v1892 = vadd.f32 %v1881, %v1890
  %v1893 = vadd.f32 %v1882, %v1890
  %v1894 = vadd.f32 %v1883, %v1890
  %v1895 = vadd.f32 %v1884, %v1890
  %v1896 = vadd.f32 %v1885, %v1890
  %v1897 = vadd.f32 %v1886, %v1890
  %v1898 = vadd.f32 %v1887, %v1890
  %v1899 = vadd.f32 %v1888, %v1890
  %1900 = vst.msk [vmem:[%s5] sm:$0xff] %vm57, %v1892
  %1901 = vst.msk [vmem:[%s5 + $0x8] sm:$0xff] %vm57, %v1893
  %1902 = vst.msk [vmem:[%s5 + $0x10] sm:$0xff] %vm57, %v1894
  %1903 = vst.msk [vmem:[%s5 + $0x18] sm:$0xff] %vm57, %v1895
  %1904 = vst.msk [vmem:[%s5 + $0x20] sm:$0xff] %vm57, %v1896
  %1905 = vst.msk [vmem:[%s5 + $0x28] sm:$0xff] %vm57, %v1897
  %1906 = vst.msk [vmem:[%s5 + $0x30] sm:$0xff] %vm57, %v1898
  %1907 = vst.msk [vmem:[%s5 + $0x38] sm:$0xff] %vm57, %v1899
  %s1908 = scalar_lea.vmem %s0, 64
  %v1909 = vld [vmem:[%s1908] sm:$0xff]
  %v1910 = vld [vmem:[%s1908 + $0x8] sm:$0xff]
  %v1911 = vld [vmem:[%s1908 + $0x10] sm:$0xff]
  %v1912 = vld [vmem:[%s1908 + $0x18] sm:$0xff]
  %v1913 = vld [vmem:[%s1908 + $0x20] sm:$0xff]
  %v1914 = vld [vmem:[%s1908 + $0x28] sm:$0xff]
  %v1915 = vld [vmem:[%s1908 + $0x30] sm:$0xff]
  %v1916 = vld [vmem:[%s1908 + $0x38] sm:$0xff]
  %v1918 = vsel %vm57, %v1909, 0
  %v1921 = vsel %vm57, %v1910, 0
  %v1924 = vsel %vm57, %v1911, 0
  %v1927 = vsel %vm57, %v1912, 0
  %v1930 = vsel %vm57, %v1913, 0
  %v1933 = vsel %vm57, %v1914, 0
  %v1936 = vsel %vm57, %v1915, 0
  %v1939 = vsel %vm57, %v1916, 0
  %1941 = vmatpush.xpose.msra.mxu0 0.0
  %1942 = vmatpush.xpose.msra.mxu0 0.0
  %1943 = vmatpush.xpose.msra.mxu0 0.0
  %1944 = vmatpush.xpose.msra.mxu0 0.0
  %1945 = vmatpush.xpose.msra.mxu0 0.0
  %1946 = vmatpush.xpose.msra.mxu0 0.0
  %1947 = vmatpush.xpose.msra.mxu0 0.0
  %1948 = vmatpush.xpose.msra.mxu0 0.0
  %1949 = vmatpush.xpose.msra.mxu0 %v1939
  %1950 = vmatpush.xpose.msra.mxu0 %v1936
  %1951 = vmatpush.xpose.msra.mxu0 %v1933
  %1952 = vmatpush.xpose.msra.mxu0 %v1930
  %1953 = vmatpush.xpose.msra.mxu0 %v1927
  %1954 = vmatpush.xpose.msra.mxu0 %v1924
  %1955 = vmatpush.xpose.msra.mxu0 %v1921
  %1956 = vmatpush.xpose.msra.mxu0 %v1918
  %1957 = vmatmul.f32.gmra.mxu0 %v59
  %v1958 = vpop.f32.mrf.mxu0
  %v1959 = vadd.f32 0.0, %v1958
  %1960 = vmatmul.f32.gmra.mxu0 %v62
  %v1961 = vpop.f32.mrf.mxu0
  %v1962 = vadd.f32 0.0, %v1961
  %1963 = vmatmul.f32.gmra.mxu0 %v65
  %v1964 = vpop.f32.mrf.mxu0
  %v1965 = vadd.f32 0.0, %v1964
  %1966 = vmatmul.f32.gmra.mxu0 %v68
  %v1967 = vpop.f32.mrf.mxu0
  %v1968 = vadd.f32 0.0, %v1967
  %1969 = vmatmul.f32.gmra.mxu0 %v71
  %v1970 = vpop.f32.mrf.mxu0
  %v1971 = vadd.f32 0.0, %v1970
  %1972 = vmatmul.f32.gmra.mxu0 %v74
  %v1973 = vpop.f32.mrf.mxu0
  %v1974 = vadd.f32 0.0, %v1973
  %1975 = vmatmul.f32.gmra.mxu0 %v77
  %v1976 = vpop.f32.mrf.mxu0
  %v1977 = vadd.f32 0.0, %v1976
  %1978 = vmatmul.f32.gmra.mxu0 %v80
  %v1979 = vpop.f32.mrf.mxu0
  %v1980 = vadd.f32 0.0, %v1979
  %1981 = vdwg.mxu0
  %1982 = vmatpush.msra.mxu0 0.0
  %1983 = vmatpush.msra.mxu0 0.0
  %1984 = vmatpush.msra.mxu0 0.0
  %1985 = vmatpush.msra.mxu0 0.0
  %1986 = vmatpush.msra.mxu0 0.0
  %1987 = vmatpush.msra.mxu0 0.0
  %1988 = vmatpush.msra.mxu0 0.0
  %1989 = vmatpush.msra.mxu0 0.0
  %1990 = vmatpush.msra.mxu0 0.0
  %1991 = vmatpush.msra.mxu0 0.0
  %1992 = vmatpush.msra.mxu0 0.0
  %1993 = vmatpush.msra.mxu0 0.0
  %1994 = vmatpush.msra.mxu0 %v23
  %1995 = vmatpush.msra.mxu0 %v22
  %1996 = vmatpush.msra.mxu0 %v21
  %1997 = vmatpush.msra.mxu0 %v20
  %1998 = vmatmul.f32.gmra.mxu0 %v1918
  %v1999 = vpop.f32.mrf.mxu0
  %v2000 = vadd.f32 0.0, %v1999
  %2001 = vmatmul.f32.gmra.mxu0 %v1921
  %v2002 = vpop.f32.mrf.mxu0
  %v2003 = vadd.f32 0.0, %v2002
  %2004 = vmatmul.f32.gmra.mxu0 %v1924
  %v2005 = vpop.f32.mrf.mxu0
  %v2006 = vadd.f32 0.0, %v2005
  %2007 = vmatmul.f32.gmra.mxu0 %v1927
  %v2008 = vpop.f32.mrf.mxu0
  %v2009 = vadd.f32 0.0, %v2008
  %2010 = vmatmul.f32.gmra.mxu0 %v1930
  %v2011 = vpop.f32.mrf.mxu0
  %v2012 = vadd.f32 0.0, %v2011
  %2013 = vmatmul.f32.gmra.mxu0 %v1933
  %v2014 = vpop.f32.mrf.mxu0
  %v2015 = vadd.f32 0.0, %v2014
  %2016 = vmatmul.f32.gmra.mxu0 %v1936
  %v2017 = vpop.f32.mrf.mxu0
  %v2018 = vadd.f32 0.0, %v2017
  %2019 = vmatmul.f32.gmra.mxu0 %v1939
  %v2020 = vpop.f32.mrf.mxu0
  %v2021 = vadd.f32 0.0, %v2020
  %2022 = vdwg.mxu0
  %v2024 = vsel %vm188, %v2000, 0
  %v2027 = vsel %vm188, %v2003, 0
  %v2030 = vsel %vm188, %v2006, 0
  %v2033 = vsel %vm188, %v2009, 0
  %v2036 = vsel %vm188, %v2012, 0
  %v2039 = vsel %vm188, %v2015, 0
  %v2042 = vsel %vm188, %v2018, 0
  %v2045 = vsel %vm188, %v2021, 0
  %2047 = vmatpush.msra.mxu0 0.0
  %2048 = vmatpush.msra.mxu0 0.0
  %2049 = vmatpush.msra.mxu0 0.0
  %2050 = vmatpush.msra.mxu0 0.0
  %2051 = vmatpush.msra.mxu0 0.0
  %2052 = vmatpush.msra.mxu0 0.0
  %2053 = vmatpush.msra.mxu0 0.0
  %2054 = vmatpush.msra.mxu0 0.0
  %2055 = vmatpush.msra.mxu0 0.0
  %2056 = vmatpush.msra.mxu0 0.0
  %2057 = vmatpush.msra.mxu0 0.0
  %2058 = vmatpush.msra.mxu0 0.0
  %2059 = vmatpush.msra.mxu0 0.0
  %2060 = vmatpush.msra.mxu0 0.0
  %2061 = vmatpush.msra.mxu0 0.0
  %2062 = vmatpush.msra.mxu0 %v1959
  %2063 = vmatmul.f32.gmra.mxu0 %v2024
  %v2064 = vpop.f32.mrf.mxu0
  %v2065 = vadd.f32 0.0, %v2064
  %2066 = vmatmul.f32.gmra.mxu0 %v2027
  %v2067 = vpop.f32.mrf.mxu0
  %v2068 = vadd.f32 0.0, %v2067
  %2069 = vmatmul.f32.gmra.mxu0 %v2030
  %v2070 = vpop.f32.mrf.mxu0
  %v2071 = vadd.f32 0.0, %v2070
  %2072 = vmatmul.f32.gmra.mxu0 %v2033
  %v2073 = vpop.f32.mrf.mxu0
  %v2074 = vadd.f32 0.0, %v2073
  %2075 = vmatmul.f32.gmra.mxu0 %v2036
  %v2076 = vpop.f32.mrf.mxu0
  %v2077 = vadd.f32 0.0, %v2076
  %2078 = vmatmul.f32.gmra.mxu0 %v2039
  %v2079 = vpop.f32.mrf.mxu0
  %v2080 = vadd.f32 0.0, %v2079
  %2081 = vmatmul.f32.gmra.mxu0 %v2042
  %v2082 = vpop.f32.mrf.mxu0
  %v2083 = vadd.f32 0.0, %v2082
  %2084 = vmatmul.f32.gmra.mxu0 %v2045
  %v2085 = vpop.f32.mrf.mxu0
  %v2086 = vadd.f32 0.0, %v2085
  %2087 = vdwg.mxu0
  %v2088 = vsel %vm254, %v2065, -inf
  %2089 = vmax.xlane.f32.xlu0 %v2088
  %v2090 = vpop.xlane.xlu0 %2089
  %v2091 = vsel %vm254, %v2068, -inf
  %2092 = vmax.xlane.f32.xlu0 %v2091
  %v2093 = vpop.xlane.xlu0 %2092
  %v2094 = vsel %vm254, %v2071, -inf
  %2095 = vmax.xlane.f32.xlu0 %v2094
  %v2096 = vpop.xlane.xlu0 %2095
  %v2097 = vsel %vm254, %v2074, -inf
  %2098 = vmax.xlane.f32.xlu0 %v2097
  %v2099 = vpop.xlane.xlu0 %2098
  %v2100 = vsel %vm254, %v2077, -inf
  %2101 = vmax.xlane.f32.xlu0 %v2100
  %v2102 = vpop.xlane.xlu0 %2101
  %v2103 = vsel %vm254, %v2080, -inf
  %2104 = vmax.xlane.f32.xlu0 %v2103
  %v2105 = vpop.xlane.xlu0 %2104
  %v2106 = vsel %vm254, %v2083, -inf
  %2107 = vmax.xlane.f32.xlu0 %v2106
  %v2108 = vpop.xlane.xlu0 %2107
  %v2109 = vsel %vm254, %v2086, -inf
  %2110 = vmax.xlane.f32.xlu0 %v2109
  %v2111 = vpop.xlane.xlu0 %2110
  %v2112 = vsub.f32 %v2065, %v2090
  %v2113 = vsub.f32 %v2068, %v2093
  %v2114 = vsub.f32 %v2071, %v2096
  %v2115 = vsub.f32 %v2074, %v2099
  %v2116 = vsub.f32 %v2077, %v2102
  %v2117 = vsub.f32 %v2080, %v2105
  %v2118 = vsub.f32 %v2083, %v2108
  %v2119 = vsub.f32 %v2086, %v2111
  %v2120 = vmul.f32 %v2112, 1.442695
  %v2121 = vpow.pop %v2120
  %v2122 = vmul.f32 %v2113, 1.442695
  %v2123 = vpow.pop %v2122
  %v2124 = vmul.f32 %v2114, 1.442695
  %v2125 = vpow.pop %v2124
  %v2126 = vmul.f32 %v2115, 1.442695
  %v2127 = vpow.pop %v2126
  %v2128 = vmul.f32 %v2116, 1.442695
  %v2129 = vpow.pop %v2128
  %v2130 = vmul.f32 %v2117, 1.442695
  %v2131 = vpow.pop %v2130
  %v2132 = vmul.f32 %v2118, 1.442695
  %v2133 = vpow.pop %v2132
  %v2134 = vmul.f32 %v2119, 1.442695
  %v2135 = vpow.pop %v2134
  %v2136 = vsel %vm254, %v2121, 0.0
  %2137 = vadd.xlane.f32.xlu0 %v2136
  %v2138 = vpop.xlane.xlu0 %2137
  %v2139 = vsel %vm254, %v2123, 0.0
  %2140 = vadd.xlane.f32.xlu0 %v2139
  %v2141 = vpop.xlane.xlu0 %2140
  %v2142 = vsel %vm254, %v2125, 0.0
  %2143 = vadd.xlane.f32.xlu0 %v2142
  %v2144 = vpop.xlane.xlu0 %2143
  %v2145 = vsel %vm254, %v2127, 0.0
  %2146 = vadd.xlane.f32.xlu0 %v2145
  %v2147 = vpop.xlane.xlu0 %2146
  %v2148 = vsel %vm254, %v2129, 0.0
  %2149 = vadd.xlane.f32.xlu0 %v2148
  %v2150 = vpop.xlane.xlu0 %2149
  %v2151 = vsel %vm254, %v2131, 0.0
  %2152 = vadd.xlane.f32.xlu0 %v2151
  %v2153 = vpop.xlane.xlu0 %2152
  %v2154 = vsel %vm254, %v2133, 0.0
  %2155 = vadd.xlane.f32.xlu0 %v2154
  %v2156 = vpop.xlane.xlu0 %2155
  %v2157 = vsel %vm254, %v2135, 0.0
  %2158 = vadd.xlane.f32.xlu0 %v2157
  %v2159 = vpop.xlane.xlu0 %2158
  %v2160 = vrcp.pop %v2138
  %v2161 = vmul.f32 %v2138, %v2160
  %v2162 = vsub.f32 1.0, %v2161
  %v2163 = vmul.f32 %v2160, %v2162
  %v2164 = vadd.f32 %v2160, %v2163
  %vm2165 = vweird.f32 %v2138
  %vm2166 = vweird.f32 %v2160
  %vm2167 = vmor %vm2165, %vm2166
  %v2168 = vsel %vm2167, %v2160, %v2164
  %v2169 = vand.u32 2147483647, %v2138
  %vm2170 = vcmp.eq.f32.partialorder %v2169, 8.507059e+37
  %v2171 = vand.u32 %v2138, 2147483648
  %v2172 = vor.u32 1.1754944e-38, %v2171
  %v2173 = vsel %vm2170, %v2172, %v2168
  %v2174 = vrcp.pop %v2141
  %v2175 = vmul.f32 %v2141, %v2174
  %v2176 = vsub.f32 1.0, %v2175
  %v2177 = vmul.f32 %v2174, %v2176
  %v2178 = vadd.f32 %v2174, %v2177
  %vm2179 = vweird.f32 %v2141
  %vm2180 = vweird.f32 %v2174
  %vm2181 = vmor %vm2179, %vm2180
  %v2182 = vsel %vm2181, %v2174, %v2178
  %v2183 = vand.u32 2147483647, %v2141
  %vm2184 = vcmp.eq.f32.partialorder %v2183, 8.507059e+37
  %v2185 = vand.u32 %v2141, 2147483648
  %v2186 = vor.u32 1.1754944e-38, %v2185
  %v2187 = vsel %vm2184, %v2186, %v2182
  %v2188 = vrcp.pop %v2144
  %v2189 = vmul.f32 %v2144, %v2188
  %v2190 = vsub.f32 1.0, %v2189
  %v2191 = vmul.f32 %v2188, %v2190
  %v2192 = vadd.f32 %v2188, %v2191
  %vm2193 = vweird.f32 %v2144
  %vm2194 = vweird.f32 %v2188
  %vm2195 = vmor %vm2193, %vm2194
  %v2196 = vsel %vm2195, %v2188, %v2192
  %v2197 = vand.u32 2147483647, %v2144
  %vm2198 = vcmp.eq.f32.partialorder %v2197, 8.507059e+37
  %v2199 = vand.u32 %v2144, 2147483648
  %v2200 = vor.u32 1.1754944e-38, %v2199
  %v2201 = vsel %vm2198, %v2200, %v2196
  %v2202 = vrcp.pop %v2147
  %v2203 = vmul.f32 %v2147, %v2202
  %v2204 = vsub.f32 1.0, %v2203
  %v2205 = vmul.f32 %v2202, %v2204
  %v2206 = vadd.f32 %v2202, %v2205
  %vm2207 = vweird.f32 %v2147
  %vm2208 = vweird.f32 %v2202
  %vm2209 = vmor %vm2207, %vm2208
  %v2210 = vsel %vm2209, %v2202, %v2206
  %v2211 = vand.u32 2147483647, %v2147
  %vm2212 = vcmp.eq.f32.partialorder %v2211, 8.507059e+37
  %v2213 = vand.u32 %v2147, 2147483648
  %v2214 = vor.u32 1.1754944e-38, %v2213
  %v2215 = vsel %vm2212, %v2214, %v2210
  %v2216 = vrcp.pop %v2150
  %v2217 = vmul.f32 %v2150, %v2216
  %v2218 = vsub.f32 1.0, %v2217
  %v2219 = vmul.f32 %v2216, %v2218
  %v2220 = vadd.f32 %v2216, %v2219
  %vm2221 = vweird.f32 %v2150
  %vm2222 = vweird.f32 %v2216
  %vm2223 = vmor %vm2221, %vm2222
  %v2224 = vsel %vm2223, %v2216, %v2220
  %v2225 = vand.u32 2147483647, %v2150
  %vm2226 = vcmp.eq.f32.partialorder %v2225, 8.507059e+37
  %v2227 = vand.u32 %v2150, 2147483648
  %v2228 = vor.u32 1.1754944e-38, %v2227
  %v2229 = vsel %vm2226, %v2228, %v2224
  %v2230 = vrcp.pop %v2153
  %v2231 = vmul.f32 %v2153, %v2230
  %v2232 = vsub.f32 1.0, %v2231
  %v2233 = vmul.f32 %v2230, %v2232
  %v2234 = vadd.f32 %v2230, %v2233
  %vm2235 = vweird.f32 %v2153
  %vm2236 = vweird.f32 %v2230
  %vm2237 = vmor %vm2235, %vm2236
  %v2238 = vsel %vm2237, %v2230, %v2234
  %v2239 = vand.u32 2147483647, %v2153
  %vm2240 = vcmp.eq.f32.partialorder %v2239, 8.507059e+37
  %v2241 = vand.u32 %v2153, 2147483648
  %v2242 = vor.u32 1.1754944e-38, %v2241
  %v2243 = vsel %vm2240, %v2242, %v2238
  %v2244 = vrcp.pop %v2156
  %v2245 = vmul.f32 %v2156, %v2244
  %v2246 = vsub.f32 1.0, %v2245
  %v2247 = vmul.f32 %v2244, %v2246
  %v2248 = vadd.f32 %v2244, %v2247
  %vm2249 = vweird.f32 %v2156
  %vm2250 = vweird.f32 %v2244
  %vm2251 = vmor %vm2249, %vm2250
  %v2252 = vsel %vm2251, %v2244, %v2248
  %v2253 = vand.u32 2147483647, %v2156
  %vm2254 = vcmp.eq.f32.partialorder %v2253, 8.507059e+37
  %v2255 = vand.u32 %v2156, 2147483648
  %v2256 = vor.u32 1.1754944e-38, %v2255
  %v2257 = vsel %vm2254, %v2256, %v2252
  %v2258 = vrcp.pop %v2159
  %v2259 = vmul.f32 %v2159, %v2258
  %v2260 = vsub.f32 1.0, %v2259
  %v2261 = vmul.f32 %v2258, %v2260
  %v2262 = vadd.f32 %v2258, %v2261
  %vm2263 = vweird.f32 %v2159
  %vm2264 = vweird.f32 %v2258
  %vm2265 = vmor %vm2263, %vm2264
  %v2266 = vsel %vm2265, %v2258, %v2262
  %v2267 = vand.u32 2147483647, %v2159
  %vm2268 = vcmp.eq.f32.partialorder %v2267, 8.507059e+37
  %v2269 = vand.u32 %v2159, 2147483648
  %v2270 = vor.u32 1.1754944e-38, %v2269
  %v2271 = vsel %vm2268, %v2270, %v2266
  %v2272 = vmul.f32 %v2121, %v2173
  %v2273 = vmul.f32 %v2123, %v2187
  %v2274 = vmul.f32 %v2125, %v2201
  %v2275 = vmul.f32 %v2127, %v2215
  %v2276 = vmul.f32 %v2129, %v2229
  %v2277 = vmul.f32 %v2131, %v2243
  %v2278 = vmul.f32 %v2133, %v2257
  %v2279 = vmul.f32 %v2135, %v2271
  %v2281 = vsel %vm254, %v2272, 0
  %v2284 = vsel %vm254, %v2273, 0
  %v2287 = vsel %vm254, %v2274, 0
  %v2290 = vsel %vm254, %v2275, 0
  %v2293 = vsel %vm254, %v2276, 0
  %v2296 = vsel %vm254, %v2277, 0
  %v2299 = vsel %vm254, %v2278, 0
  %v2302 = vsel %vm254, %v2279, 0
  %v2305 = vsel %vm254, %v1971, 0
  %2307 = vmatpush.xpose.msra.mxu0 0.0
  %2308 = vmatpush.xpose.msra.mxu0 0.0
  %2309 = vmatpush.xpose.msra.mxu0 0.0
  %2310 = vmatpush.xpose.msra.mxu0 0.0
  %2311 = vmatpush.xpose.msra.mxu0 0.0
  %2312 = vmatpush.xpose.msra.mxu0 0.0
  %2313 = vmatpush.xpose.msra.mxu0 0.0
  %2314 = vmatpush.xpose.msra.mxu0 0.0
  %2315 = vmatpush.xpose.msra.mxu0 0.0
  %2316 = vmatpush.xpose.msra.mxu0 0.0
  %2317 = vmatpush.xpose.msra.mxu0 0.0
  %2318 = vmatpush.xpose.msra.mxu0 0.0
  %2319 = vmatpush.xpose.msra.mxu0 0.0
  %2320 = vmatpush.xpose.msra.mxu0 0.0
  %2321 = vmatpush.xpose.msra.mxu0 0.0
  %2322 = vmatpush.xpose.msra.mxu0 %v2305
  %2323 = vmatmul.f32.gmra.mxu0 %v2281
  %v2324 = vpop.f32.mrf.mxu0
  %v2325 = vadd.f32 0.0, %v2324
  %2326 = vmatmul.f32.gmra.mxu0 %v2284
  %v2327 = vpop.f32.mrf.mxu0
  %v2328 = vadd.f32 0.0, %v2327
  %2329 = vmatmul.f32.gmra.mxu0 %v2287
  %v2330 = vpop.f32.mrf.mxu0
  %v2331 = vadd.f32 0.0, %v2330
  %2332 = vmatmul.f32.gmra.mxu0 %v2290
  %v2333 = vpop.f32.mrf.mxu0
  %v2334 = vadd.f32 0.0, %v2333
  %2335 = vmatmul.f32.gmra.mxu0 %v2293
  %v2336 = vpop.f32.mrf.mxu0
  %v2337 = vadd.f32 0.0, %v2336
  %2338 = vmatmul.f32.gmra.mxu0 %v2296
  %v2339 = vpop.f32.mrf.mxu0
  %v2340 = vadd.f32 0.0, %v2339
  %2341 = vmatmul.f32.gmra.mxu0 %v2299
  %v2342 = vpop.f32.mrf.mxu0
  %v2343 = vadd.f32 0.0, %v2342
  %2344 = vmatmul.f32.gmra.mxu0 %v2302
  %v2345 = vpop.f32.mrf.mxu0
  %v2346 = vadd.f32 0.0, %v2345
  %2347 = vdwg.mxu0
  %2348 = vmatpush.msra.mxu0 0.0
  %2349 = vmatpush.msra.mxu0 0.0
  %2350 = vmatpush.msra.mxu0 0.0
  %2351 = vmatpush.msra.mxu0 0.0
  %2352 = vmatpush.msra.mxu0 0.0
  %2353 = vmatpush.msra.mxu0 0.0
  %2354 = vmatpush.msra.mxu0 0.0
  %2355 = vmatpush.msra.mxu0 0.0
  %2356 = vmatpush.msra.mxu0 0.0
  %2357 = vmatpush.msra.mxu0 0.0
  %2358 = vmatpush.msra.mxu0 0.0
  %2359 = vmatpush.msra.mxu0 0.0
  %2360 = vmatpush.msra.mxu0 %v27
  %2361 = vmatpush.msra.mxu0 %v26
  %2362 = vmatpush.msra.mxu0 %v25
  %2363 = vmatpush.msra.mxu0 %v24
  %2364 = vmatmul.f32.gmra.mxu0 %v1918
  %v2365 = vpop.f32.mrf.mxu0
  %v2366 = vadd.f32 0.0, %v2365
  %2367 = vmatmul.f32.gmra.mxu0 %v1921
  %v2368 = vpop.f32.mrf.mxu0
  %v2369 = vadd.f32 0.0, %v2368
  %2370 = vmatmul.f32.gmra.mxu0 %v1924
  %v2371 = vpop.f32.mrf.mxu0
  %v2372 = vadd.f32 0.0, %v2371
  %2373 = vmatmul.f32.gmra.mxu0 %v1927
  %v2374 = vpop.f32.mrf.mxu0
  %v2375 = vadd.f32 0.0, %v2374
  %2376 = vmatmul.f32.gmra.mxu0 %v1930
  %v2377 = vpop.f32.mrf.mxu0
  %v2378 = vadd.f32 0.0, %v2377
  %2379 = vmatmul.f32.gmra.mxu0 %v1933
  %v2380 = vpop.f32.mrf.mxu0
  %v2381 = vadd.f32 0.0, %v2380
  %2382 = vmatmul.f32.gmra.mxu0 %v1936
  %v2383 = vpop.f32.mrf.mxu0
  %v2384 = vadd.f32 0.0, %v2383
  %2385 = vmatmul.f32.gmra.mxu0 %v1939
  %v2386 = vpop.f32.mrf.mxu0
  %v2387 = vadd.f32 0.0, %v2386
  %2388 = vdwg.mxu0
  %v2390 = vsel %vm188, %v2366, 0
  %v2393 = vsel %vm188, %v2369, 0
  %v2396 = vsel %vm188, %v2372, 0
  %v2399 = vsel %vm188, %v2375, 0
  %v2402 = vsel %vm188, %v2378, 0
  %v2405 = vsel %vm188, %v2381, 0
  %v2408 = vsel %vm188, %v2384, 0
  %v2411 = vsel %vm188, %v2387, 0
  %2413 = vmatpush.msra.mxu0 0.0
  %2414 = vmatpush.msra.mxu0 0.0
  %2415 = vmatpush.msra.mxu0 0.0
  %2416 = vmatpush.msra.mxu0 0.0
  %2417 = vmatpush.msra.mxu0 0.0
  %2418 = vmatpush.msra.mxu0 0.0
  %2419 = vmatpush.msra.mxu0 0.0
  %2420 = vmatpush.msra.mxu0 0.0
  %2421 = vmatpush.msra.mxu0 0.0
  %2422 = vmatpush.msra.mxu0 0.0
  %2423 = vmatpush.msra.mxu0 0.0
  %2424 = vmatpush.msra.mxu0 0.0
  %2425 = vmatpush.msra.mxu0 0.0
  %2426 = vmatpush.msra.mxu0 0.0
  %2427 = vmatpush.msra.mxu0 0.0
  %2428 = vmatpush.msra.mxu0 %v1962
  %2429 = vmatmul.f32.gmra.mxu0 %v2390
  %v2430 = vpop.f32.mrf.mxu0
  %v2431 = vadd.f32 0.0, %v2430
  %2432 = vmatmul.f32.gmra.mxu0 %v2393
  %v2433 = vpop.f32.mrf.mxu0
  %v2434 = vadd.f32 0.0, %v2433
  %2435 = vmatmul.f32.gmra.mxu0 %v2396
  %v2436 = vpop.f32.mrf.mxu0
  %v2437 = vadd.f32 0.0, %v2436
  %2438 = vmatmul.f32.gmra.mxu0 %v2399
  %v2439 = vpop.f32.mrf.mxu0
  %v2440 = vadd.f32 0.0, %v2439
  %2441 = vmatmul.f32.gmra.mxu0 %v2402
  %v2442 = vpop.f32.mrf.mxu0
  %v2443 = vadd.f32 0.0, %v2442
  %2444 = vmatmul.f32.gmra.mxu0 %v2405
  %v2445 = vpop.f32.mrf.mxu0
  %v2446 = vadd.f32 0.0, %v2445
  %2447 = vmatmul.f32.gmra.mxu0 %v2408
  %v2448 = vpop.f32.mrf.mxu0
  %v2449 = vadd.f32 0.0, %v2448
  %2450 = vmatmul.f32.gmra.mxu0 %v2411
  %v2451 = vpop.f32.mrf.mxu0
  %v2452 = vadd.f32 0.0, %v2451
  %2453 = vdwg.mxu0
  %v2454 = vsel %vm254, %v2431, -inf
  %2455 = vmax.xlane.f32.xlu0 %v2454
  %v2456 = vpop.xlane.xlu0 %2455
  %v2457 = vsel %vm254, %v2434, -inf
  %2458 = vmax.xlane.f32.xlu0 %v2457
  %v2459 = vpop.xlane.xlu0 %2458
  %v2460 = vsel %vm254, %v2437, -inf
  %2461 = vmax.xlane.f32.xlu0 %v2460
  %v2462 = vpop.xlane.xlu0 %2461
  %v2463 = vsel %vm254, %v2440, -inf
  %2464 = vmax.xlane.f32.xlu0 %v2463
  %v2465 = vpop.xlane.xlu0 %2464
  %v2466 = vsel %vm254, %v2443, -inf
  %2467 = vmax.xlane.f32.xlu0 %v2466
  %v2468 = vpop.xlane.xlu0 %2467
  %v2469 = vsel %vm254, %v2446, -inf
  %2470 = vmax.xlane.f32.xlu0 %v2469
  %v2471 = vpop.xlane.xlu0 %2470
  %v2472 = vsel %vm254, %v2449, -inf
  %2473 = vmax.xlane.f32.xlu0 %v2472
  %v2474 = vpop.xlane.xlu0 %2473
  %v2475 = vsel %vm254, %v2452, -inf
  %2476 = vmax.xlane.f32.xlu0 %v2475
  %v2477 = vpop.xlane.xlu0 %2476
  %v2478 = vsub.f32 %v2431, %v2456
  %v2479 = vsub.f32 %v2434, %v2459
  %v2480 = vsub.f32 %v2437, %v2462
  %v2481 = vsub.f32 %v2440, %v2465
  %v2482 = vsub.f32 %v2443, %v2468
  %v2483 = vsub.f32 %v2446, %v2471
  %v2484 = vsub.f32 %v2449, %v2474
  %v2485 = vsub.f32 %v2452, %v2477
  %v2486 = vmul.f32 %v2478, 1.442695
  %v2487 = vpow.pop %v2486
  %v2488 = vmul.f32 %v2479, 1.442695
  %v2489 = vpow.pop %v2488
  %v2490 = vmul.f32 %v2480, 1.442695
  %v2491 = vpow.pop %v2490
  %v2492 = vmul.f32 %v2481, 1.442695
  %v2493 = vpow.pop %v2492
  %v2494 = vmul.f32 %v2482, 1.442695
  %v2495 = vpow.pop %v2494
  %v2496 = vmul.f32 %v2483, 1.442695
  %v2497 = vpow.pop %v2496
  %v2498 = vmul.f32 %v2484, 1.442695
  %v2499 = vpow.pop %v2498
  %v2500 = vmul.f32 %v2485, 1.442695
  %v2501 = vpow.pop %v2500
  %v2502 = vsel %vm254, %v2487, 0.0
  %2503 = vadd.xlane.f32.xlu0 %v2502
  %v2504 = vpop.xlane.xlu0 %2503
  %v2505 = vsel %vm254, %v2489, 0.0
  %2506 = vadd.xlane.f32.xlu0 %v2505
  %v2507 = vpop.xlane.xlu0 %2506
  %v2508 = vsel %vm254, %v2491, 0.0
  %2509 = vadd.xlane.f32.xlu0 %v2508
  %v2510 = vpop.xlane.xlu0 %2509
  %v2511 = vsel %vm254, %v2493, 0.0
  %2512 = vadd.xlane.f32.xlu0 %v2511
  %v2513 = vpop.xlane.xlu0 %2512
  %v2514 = vsel %vm254, %v2495, 0.0
  %2515 = vadd.xlane.f32.xlu0 %v2514
  %v2516 = vpop.xlane.xlu0 %2515
  %v2517 = vsel %vm254, %v2497, 0.0
  %2518 = vadd.xlane.f32.xlu0 %v2517
  %v2519 = vpop.xlane.xlu0 %2518
  %v2520 = vsel %vm254, %v2499, 0.0
  %2521 = vadd.xlane.f32.xlu0 %v2520
  %v2522 = vpop.xlane.xlu0 %2521
  %v2523 = vsel %vm254, %v2501, 0.0
  %2524 = vadd.xlane.f32.xlu0 %v2523
  %v2525 = vpop.xlane.xlu0 %2524
  %v2526 = vrcp.pop %v2504
  %v2527 = vmul.f32 %v2504, %v2526
  %v2528 = vsub.f32 1.0, %v2527
  %v2529 = vmul.f32 %v2526, %v2528
  %v2530 = vadd.f32 %v2526, %v2529
  %vm2531 = vweird.f32 %v2504
  %vm2532 = vweird.f32 %v2526
  %vm2533 = vmor %vm2531, %vm2532
  %v2534 = vsel %vm2533, %v2526, %v2530
  %v2535 = vand.u32 2147483647, %v2504
  %vm2536 = vcmp.eq.f32.partialorder %v2535, 8.507059e+37
  %v2537 = vand.u32 %v2504, 2147483648
  %v2538 = vor.u32 1.1754944e-38, %v2537
  %v2539 = vsel %vm2536, %v2538, %v2534
  %v2540 = vrcp.pop %v2507
  %v2541 = vmul.f32 %v2507, %v2540
  %v2542 = vsub.f32 1.0, %v2541
  %v2543 = vmul.f32 %v2540, %v2542
  %v2544 = vadd.f32 %v2540, %v2543
  %vm2545 = vweird.f32 %v2507
  %vm2546 = vweird.f32 %v2540
  %vm2547 = vmor %vm2545, %vm2546
  %v2548 = vsel %vm2547, %v2540, %v2544
  %v2549 = vand.u32 2147483647, %v2507
  %vm2550 = vcmp.eq.f32.partialorder %v2549, 8.507059e+37
  %v2551 = vand.u32 %v2507, 2147483648
  %v2552 = vor.u32 1.1754944e-38, %v2551
  %v2553 = vsel %vm2550, %v2552, %v2548
  %v2554 = vrcp.pop %v2510
  %v2555 = vmul.f32 %v2510, %v2554
  %v2556 = vsub.f32 1.0, %v2555
  %v2557 = vmul.f32 %v2554, %v2556
  %v2558 = vadd.f32 %v2554, %v2557
  %vm2559 = vweird.f32 %v2510
  %vm2560 = vweird.f32 %v2554
  %vm2561 = vmor %vm2559, %vm2560
  %v2562 = vsel %vm2561, %v2554, %v2558
  %v2563 = vand.u32 2147483647, %v2510
  %vm2564 = vcmp.eq.f32.partialorder %v2563, 8.507059e+37
  %v2565 = vand.u32 %v2510, 2147483648
  %v2566 = vor.u32 1.1754944e-38, %v2565
  %v2567 = vsel %vm2564, %v2566, %v2562
  %v2568 = vrcp.pop %v2513
  %v2569 = vmul.f32 %v2513, %v2568
  %v2570 = vsub.f32 1.0, %v2569
  %v2571 = vmul.f32 %v2568, %v2570
  %v2572 = vadd.f32 %v2568, %v2571
  %vm2573 = vweird.f32 %v2513
  %vm2574 = vweird.f32 %v2568
  %vm2575 = vmor %vm2573, %vm2574
  %v2576 = vsel %vm2575, %v2568, %v2572
  %v2577 = vand.u32 2147483647, %v2513
  %vm2578 = vcmp.eq.f32.partialorder %v2577, 8.507059e+37
  %v2579 = vand.u32 %v2513, 2147483648
  %v2580 = vor.u32 1.1754944e-38, %v2579
  %v2581 = vsel %vm2578, %v2580, %v2576
  %v2582 = vrcp.pop %v2516
  %v2583 = vmul.f32 %v2516, %v2582
  %v2584 = vsub.f32 1.0, %v2583
  %v2585 = vmul.f32 %v2582, %v2584
  %v2586 = vadd.f32 %v2582, %v2585
  %vm2587 = vweird.f32 %v2516
  %vm2588 = vweird.f32 %v2582
  %vm2589 = vmor %vm2587, %vm2588
  %v2590 = vsel %vm2589, %v2582, %v2586
  %v2591 = vand.u32 2147483647, %v2516
  %vm2592 = vcmp.eq.f32.partialorder %v2591, 8.507059e+37
  %v2593 = vand.u32 %v2516, 2147483648
  %v2594 = vor.u32 1.1754944e-38, %v2593
  %v2595 = vsel %vm2592, %v2594, %v2590
  %v2596 = vrcp.pop %v2519
  %v2597 = vmul.f32 %v2519, %v2596
  %v2598 = vsub.f32 1.0, %v2597
  %v2599 = vmul.f32 %v2596, %v2598
  %v2600 = vadd.f32 %v2596, %v2599
  %vm2601 = vweird.f32 %v2519
  %vm2602 = vweird.f32 %v2596
  %vm2603 = vmor %vm2601, %vm2602
  %v2604 = vsel %vm2603, %v2596, %v2600
  %v2605 = vand.u32 2147483647, %v2519
  %vm2606 = vcmp.eq.f32.partialorder %v2605, 8.507059e+37
  %v2607 = vand.u32 %v2519, 2147483648
  %v2608 = vor.u32 1.1754944e-38, %v2607
  %v2609 = vsel %vm2606, %v2608, %v2604
  %v2610 = vrcp.pop %v2522
  %v2611 = vmul.f32 %v2522, %v2610
  %v2612 = vsub.f32 1.0, %v2611
  %v2613 = vmul.f32 %v2610, %v2612
  %v2614 = vadd.f32 %v2610, %v2613
  %vm2615 = vweird.f32 %v2522
  %vm2616 = vweird.f32 %v2610
  %vm2617 = vmor %vm2615, %vm2616
  %v2618 = vsel %vm2617, %v2610, %v2614
  %v2619 = vand.u32 2147483647, %v2522
  %vm2620 = vcmp.eq.f32.partialorder %v2619, 8.507059e+37
  %v2621 = vand.u32 %v2522, 2147483648
  %v2622 = vor.u32 1.1754944e-38, %v2621
  %v2623 = vsel %vm2620, %v2622, %v2618
  %v2624 = vrcp.pop %v2525
  %v2625 = vmul.f32 %v2525, %v2624
  %v2626 = vsub.f32 1.0, %v2625
  %v2627 = vmul.f32 %v2624, %v2626
  %v2628 = vadd.f32 %v2624, %v2627
  %vm2629 = vweird.f32 %v2525
  %vm2630 = vweird.f32 %v2624
  %vm2631 = vmor %vm2629, %vm2630
  %v2632 = vsel %vm2631, %v2624, %v2628
  %v2633 = vand.u32 2147483647, %v2525
  %vm2634 = vcmp.eq.f32.partialorder %v2633, 8.507059e+37
  %v2635 = vand.u32 %v2525, 2147483648
  %v2636 = vor.u32 1.1754944e-38, %v2635
  %v2637 = vsel %vm2634, %v2636, %v2632
  %v2638 = vmul.f32 %v2487, %v2539
  %v2639 = vmul.f32 %v2489, %v2553
  %v2640 = vmul.f32 %v2491, %v2567
  %v2641 = vmul.f32 %v2493, %v2581
  %v2642 = vmul.f32 %v2495, %v2595
  %v2643 = vmul.f32 %v2497, %v2609
  %v2644 = vmul.f32 %v2499, %v2623
  %v2645 = vmul.f32 %v2501, %v2637
  %v2647 = vsel %vm254, %v2638, 0
  %v2650 = vsel %vm254, %v2639, 0
  %v2653 = vsel %vm254, %v2640, 0
  %v2656 = vsel %vm254, %v2641, 0
  %v2659 = vsel %vm254, %v2642, 0
  %v2662 = vsel %vm254, %v2643, 0
  %v2665 = vsel %vm254, %v2644, 0
  %v2668 = vsel %vm254, %v2645, 0
  %v2671 = vsel %vm254, %v1974, 0
  %2673 = vmatpush.xpose.msra.mxu0 0.0
  %2674 = vmatpush.xpose.msra.mxu0 0.0
  %2675 = vmatpush.xpose.msra.mxu0 0.0
  %2676 = vmatpush.xpose.msra.mxu0 0.0
  %2677 = vmatpush.xpose.msra.mxu0 0.0
  %2678 = vmatpush.xpose.msra.mxu0 0.0
  %2679 = vmatpush.xpose.msra.mxu0 0.0
  %2680 = vmatpush.xpose.msra.mxu0 0.0
  %2681 = vmatpush.xpose.msra.mxu0 0.0
  %2682 = vmatpush.xpose.msra.mxu0 0.0
  %2683 = vmatpush.xpose.msra.mxu0 0.0
  %2684 = vmatpush.xpose.msra.mxu0 0.0
  %2685 = vmatpush.xpose.msra.mxu0 0.0
  %2686 = vmatpush.xpose.msra.mxu0 0.0
  %2687 = vmatpush.xpose.msra.mxu0 0.0
  %2688 = vmatpush.xpose.msra.mxu0 %v2671
  %2689 = vmatmul.f32.gmra.mxu0 %v2647
  %v2690 = vpop.f32.mrf.mxu0
  %v2691 = vadd.f32 0.0, %v2690
  %2692 = vmatmul.f32.gmra.mxu0 %v2650
  %v2693 = vpop.f32.mrf.mxu0
  %v2694 = vadd.f32 0.0, %v2693
  %2695 = vmatmul.f32.gmra.mxu0 %v2653
  %v2696 = vpop.f32.mrf.mxu0
  %v2697 = vadd.f32 0.0, %v2696
  %2698 = vmatmul.f32.gmra.mxu0 %v2656
  %v2699 = vpop.f32.mrf.mxu0
  %v2700 = vadd.f32 0.0, %v2699
  %2701 = vmatmul.f32.gmra.mxu0 %v2659
  %v2702 = vpop.f32.mrf.mxu0
  %v2703 = vadd.f32 0.0, %v2702
  %2704 = vmatmul.f32.gmra.mxu0 %v2662
  %v2705 = vpop.f32.mrf.mxu0
  %v2706 = vadd.f32 0.0, %v2705
  %2707 = vmatmul.f32.gmra.mxu0 %v2665
  %v2708 = vpop.f32.mrf.mxu0
  %v2709 = vadd.f32 0.0, %v2708
  %2710 = vmatmul.f32.gmra.mxu0 %v2668
  %v2711 = vpop.f32.mrf.mxu0
  %v2712 = vadd.f32 0.0, %v2711
  %2713 = vdwg.mxu0
  %v2715 = vsel %vm188, %v2691, 0
  %v2718 = vsel %vm188, %v2694, 0
  %v2721 = vsel %vm188, %v2697, 0
  %v2724 = vsel %vm188, %v2700, 0
  %v2727 = vsel %vm188, %v2703, 0
  %v2730 = vsel %vm188, %v2706, 0
  %v2733 = vsel %vm188, %v2709, 0
  %v2736 = vsel %vm188, %v2712, 0
  %2738 = vmatpush.msra.mxu0 0.0
  %2739 = vmatpush.msra.mxu0 0.0
  %2740 = vmatpush.msra.mxu0 0.0
  %2741 = vmatpush.msra.mxu0 0.0
  %2742 = vmatpush.msra.mxu0 0.0
  %2743 = vmatpush.msra.mxu0 0.0
  %2744 = vmatpush.msra.mxu0 0.0
  %2745 = vmatpush.msra.mxu0 0.0
  %2746 = vmatpush.msra.mxu0 0.0
  %2747 = vmatpush.msra.mxu0 0.0
  %2748 = vmatpush.msra.mxu0 0.0
  %2749 = vmatpush.msra.mxu0 0.0
  %2750 = vmatpush.msra.mxu0 0.0
  %2751 = vmatpush.msra.mxu0 0.0
  %2752 = vmatpush.msra.mxu0 0.0
  %2753 = vmatpush.msra.mxu0 %v45
  %2754 = vmatmul.f32.gmra.mxu0 %v2715
  %v2755 = vpop.f32.mrf.mxu0
  %v2756 = vadd.f32 0.0, %v2755
  %2757 = vmatmul.f32.gmra.mxu0 %v2718
  %v2758 = vpop.f32.mrf.mxu0
  %v2759 = vadd.f32 0.0, %v2758
  %2760 = vmatmul.f32.gmra.mxu0 %v2721
  %v2761 = vpop.f32.mrf.mxu0
  %v2762 = vadd.f32 0.0, %v2761
  %2763 = vmatmul.f32.gmra.mxu0 %v2724
  %v2764 = vpop.f32.mrf.mxu0
  %v2765 = vadd.f32 0.0, %v2764
  %2766 = vmatmul.f32.gmra.mxu0 %v2727
  %v2767 = vpop.f32.mrf.mxu0
  %v2768 = vadd.f32 0.0, %v2767
  %2769 = vmatmul.f32.gmra.mxu0 %v2730
  %v2770 = vpop.f32.mrf.mxu0
  %v2771 = vadd.f32 0.0, %v2770
  %2772 = vmatmul.f32.gmra.mxu0 %v2733
  %v2773 = vpop.f32.mrf.mxu0
  %v2774 = vadd.f32 0.0, %v2773
  %2775 = vmatmul.f32.gmra.mxu0 %v2736
  %v2776 = vpop.f32.mrf.mxu0
  %v2777 = vadd.f32 0.0, %v2776
  %2778 = vdwg.mxu0
  %v2780 = vsel %vm188, %v2325, 0
  %v2783 = vsel %vm188, %v2328, 0
  %v2786 = vsel %vm188, %v2331, 0
  %v2789 = vsel %vm188, %v2334, 0
  %v2792 = vsel %vm188, %v2337, 0
  %v2795 = vsel %vm188, %v2340, 0
  %v2798 = vsel %vm188, %v2343, 0
  %v2801 = vsel %vm188, %v2346, 0
  %2803 = vmatpush.msra.mxu0 0.0
  %2804 = vmatpush.msra.mxu0 0.0
  %2805 = vmatpush.msra.mxu0 0.0
  %2806 = vmatpush.msra.mxu0 0.0
  %2807 = vmatpush.msra.mxu0 0.0
  %2808 = vmatpush.msra.mxu0 0.0
  %2809 = vmatpush.msra.mxu0 0.0
  %2810 = vmatpush.msra.mxu0 0.0
  %2811 = vmatpush.msra.mxu0 0.0
  %2812 = vmatpush.msra.mxu0 0.0
  %2813 = vmatpush.msra.mxu0 0.0
  %2814 = vmatpush.msra.mxu0 0.0
  %2815 = vmatpush.msra.mxu0 0.0
  %2816 = vmatpush.msra.mxu0 0.0
  %2817 = vmatpush.msra.mxu0 0.0
  %2818 = vmatpush.msra.mxu0 %v44
  %2819 = vmatmul.f32.gmra.mxu0 %v2780
  %v2820 = vpop.f32.mrf.mxu0
  %v2821 = vadd.f32 %v2756, %v2820
  %2822 = vmatmul.f32.gmra.mxu0 %v2783
  %v2823 = vpop.f32.mrf.mxu0
  %v2824 = vadd.f32 %v2759, %v2823
  %2825 = vmatmul.f32.gmra.mxu0 %v2786
  %v2826 = vpop.f32.mrf.mxu0
  %v2827 = vadd.f32 %v2762, %v2826
  %2828 = vmatmul.f32.gmra.mxu0 %v2789
  %v2829 = vpop.f32.mrf.mxu0
  %v2830 = vadd.f32 %v2765, %v2829
  %2831 = vmatmul.f32.gmra.mxu0 %v2792
  %v2832 = vpop.f32.mrf.mxu0
  %v2833 = vadd.f32 %v2768, %v2832
  %2834 = vmatmul.f32.gmra.mxu0 %v2795
  %v2835 = vpop.f32.mrf.mxu0
  %v2836 = vadd.f32 %v2771, %v2835
  %2837 = vmatmul.f32.gmra.mxu0 %v2798
  %v2838 = vpop.f32.mrf.mxu0
  %v2839 = vadd.f32 %v2774, %v2838
  %2840 = vmatmul.f32.gmra.mxu0 %v2801
  %v2841 = vpop.f32.mrf.mxu0
  %v2842 = vadd.f32 %v2777, %v2841
  %2843 = vdwg.mxu0
  %2844 = vmatpush.msra.mxu0 0.0
  %2845 = vmatpush.msra.mxu0 0.0
  %2846 = vmatpush.msra.mxu0 0.0
  %2847 = vmatpush.msra.mxu0 0.0
  %2848 = vmatpush.msra.mxu0 0.0
  %2849 = vmatpush.msra.mxu0 0.0
  %2850 = vmatpush.msra.mxu0 0.0
  %2851 = vmatpush.msra.mxu0 0.0
  %2852 = vmatpush.msra.mxu0 0.0
  %2853 = vmatpush.msra.mxu0 0.0
  %2854 = vmatpush.msra.mxu0 0.0
  %2855 = vmatpush.msra.mxu0 0.0
  %2856 = vmatpush.msra.mxu0 %v31
  %2857 = vmatpush.msra.mxu0 %v30
  %2858 = vmatpush.msra.mxu0 %v29
  %2859 = vmatpush.msra.mxu0 %v28
  %2860 = vmatmul.f32.gmra.mxu0 %v1918
  %v2861 = vpop.f32.mrf.mxu0
  %v2862 = vadd.f32 0.0, %v2861
  %2863 = vmatmul.f32.gmra.mxu0 %v1921
  %v2864 = vpop.f32.mrf.mxu0
  %v2865 = vadd.f32 0.0, %v2864
  %2866 = vmatmul.f32.gmra.mxu0 %v1924
  %v2867 = vpop.f32.mrf.mxu0
  %v2868 = vadd.f32 0.0, %v2867
  %2869 = vmatmul.f32.gmra.mxu0 %v1927
  %v2870 = vpop.f32.mrf.mxu0
  %v2871 = vadd.f32 0.0, %v2870
  %2872 = vmatmul.f32.gmra.mxu0 %v1930
  %v2873 = vpop.f32.mrf.mxu0
  %v2874 = vadd.f32 0.0, %v2873
  %2875 = vmatmul.f32.gmra.mxu0 %v1933
  %v2876 = vpop.f32.mrf.mxu0
  %v2877 = vadd.f32 0.0, %v2876
  %2878 = vmatmul.f32.gmra.mxu0 %v1936
  %v2879 = vpop.f32.mrf.mxu0
  %v2880 = vadd.f32 0.0, %v2879
  %2881 = vmatmul.f32.gmra.mxu0 %v1939
  %v2882 = vpop.f32.mrf.mxu0
  %v2883 = vadd.f32 0.0, %v2882
  %2884 = vdwg.mxu0
  %v2886 = vsel %vm188, %v2862, 0
  %v2889 = vsel %vm188, %v2865, 0
  %v2892 = vsel %vm188, %v2868, 0
  %v2895 = vsel %vm188, %v2871, 0
  %v2898 = vsel %vm188, %v2874, 0
  %v2901 = vsel %vm188, %v2877, 0
  %v2904 = vsel %vm188, %v2880, 0
  %v2907 = vsel %vm188, %v2883, 0
  %2909 = vmatpush.msra.mxu0 0.0
  %2910 = vmatpush.msra.mxu0 0.0
  %2911 = vmatpush.msra.mxu0 0.0
  %2912 = vmatpush.msra.mxu0 0.0
  %2913 = vmatpush.msra.mxu0 0.0
  %2914 = vmatpush.msra.mxu0 0.0
  %2915 = vmatpush.msra.mxu0 0.0
  %2916 = vmatpush.msra.mxu0 0.0
  %2917 = vmatpush.msra.mxu0 0.0
  %2918 = vmatpush.msra.mxu0 0.0
  %2919 = vmatpush.msra.mxu0 0.0
  %2920 = vmatpush.msra.mxu0 0.0
  %2921 = vmatpush.msra.mxu0 0.0
  %2922 = vmatpush.msra.mxu0 0.0
  %2923 = vmatpush.msra.mxu0 0.0
  %2924 = vmatpush.msra.mxu0 %v1965
  %2925 = vmatmul.f32.gmra.mxu0 %v2886
  %v2926 = vpop.f32.mrf.mxu0
  %v2927 = vadd.f32 0.0, %v2926
  %2928 = vmatmul.f32.gmra.mxu0 %v2889
  %v2929 = vpop.f32.mrf.mxu0
  %v2930 = vadd.f32 0.0, %v2929
  %2931 = vmatmul.f32.gmra.mxu0 %v2892
  %v2932 = vpop.f32.mrf.mxu0
  %v2933 = vadd.f32 0.0, %v2932
  %2934 = vmatmul.f32.gmra.mxu0 %v2895
  %v2935 = vpop.f32.mrf.mxu0
  %v2936 = vadd.f32 0.0, %v2935
  %2937 = vmatmul.f32.gmra.mxu0 %v2898
  %v2938 = vpop.f32.mrf.mxu0
  %v2939 = vadd.f32 0.0, %v2938
  %2940 = vmatmul.f32.gmra.mxu0 %v2901
  %v2941 = vpop.f32.mrf.mxu0
  %v2942 = vadd.f32 0.0, %v2941
  %2943 = vmatmul.f32.gmra.mxu0 %v2904
  %v2944 = vpop.f32.mrf.mxu0
  %v2945 = vadd.f32 0.0, %v2944
  %2946 = vmatmul.f32.gmra.mxu0 %v2907
  %v2947 = vpop.f32.mrf.mxu0
  %v2948 = vadd.f32 0.0, %v2947
  %2949 = vdwg.mxu0
  %v2950 = vsel %vm254, %v2927, -inf
  %2951 = vmax.xlane.f32.xlu0 %v2950
  %v2952 = vpop.xlane.xlu0 %2951
  %v2953 = vsel %vm254, %v2930, -inf
  %2954 = vmax.xlane.f32.xlu0 %v2953
  %v2955 = vpop.xlane.xlu0 %2954
  %v2956 = vsel %vm254, %v2933, -inf
  %2957 = vmax.xlane.f32.xlu0 %v2956
  %v2958 = vpop.xlane.xlu0 %2957
  %v2959 = vsel %vm254, %v2936, -inf
  %2960 = vmax.xlane.f32.xlu0 %v2959
  %v2961 = vpop.xlane.xlu0 %2960
  %v2962 = vsel %vm254, %v2939, -inf
  %2963 = vmax.xlane.f32.xlu0 %v2962
  %v2964 = vpop.xlane.xlu0 %2963
  %v2965 = vsel %vm254, %v2942, -inf
  %2966 = vmax.xlane.f32.xlu0 %v2965
  %v2967 = vpop.xlane.xlu0 %2966
  %v2968 = vsel %vm254, %v2945, -inf
  %2969 = vmax.xlane.f32.xlu0 %v2968
  %v2970 = vpop.xlane.xlu0 %2969
  %v2971 = vsel %vm254, %v2948, -inf
  %2972 = vmax.xlane.f32.xlu0 %v2971
  %v2973 = vpop.xlane.xlu0 %2972
  %v2974 = vsub.f32 %v2927, %v2952
  %v2975 = vsub.f32 %v2930, %v2955
  %v2976 = vsub.f32 %v2933, %v2958
  %v2977 = vsub.f32 %v2936, %v2961
  %v2978 = vsub.f32 %v2939, %v2964
  %v2979 = vsub.f32 %v2942, %v2967
  %v2980 = vsub.f32 %v2945, %v2970
  %v2981 = vsub.f32 %v2948, %v2973
  %v2982 = vmul.f32 %v2974, 1.442695
  %v2983 = vpow.pop %v2982
  %v2984 = vmul.f32 %v2975, 1.442695
  %v2985 = vpow.pop %v2984
  %v2986 = vmul.f32 %v2976, 1.442695
  %v2987 = vpow.pop %v2986
  %v2988 = vmul.f32 %v2977, 1.442695
  %v2989 = vpow.pop %v2988
  %v2990 = vmul.f32 %v2978, 1.442695
  %v2991 = vpow.pop %v2990
  %v2992 = vmul.f32 %v2979, 1.442695
  %v2993 = vpow.pop %v2992
  %v2994 = vmul.f32 %v2980, 1.442695
  %v2995 = vpow.pop %v2994
  %v2996 = vmul.f32 %v2981, 1.442695
  %v2997 = vpow.pop %v2996
  %v2998 = vsel %vm254, %v2983, 0.0
  %2999 = vadd.xlane.f32.xlu0 %v2998
  %v3000 = vpop.xlane.xlu0 %2999
  %v3001 = vsel %vm254, %v2985, 0.0
  %3002 = vadd.xlane.f32.xlu0 %v3001
  %v3003 = vpop.xlane.xlu0 %3002
  %v3004 = vsel %vm254, %v2987, 0.0
  %3005 = vadd.xlane.f32.xlu0 %v3004
  %v3006 = vpop.xlane.xlu0 %3005
  %v3007 = vsel %vm254, %v2989, 0.0
  %3008 = vadd.xlane.f32.xlu0 %v3007
  %v3009 = vpop.xlane.xlu0 %3008
  %v3010 = vsel %vm254, %v2991, 0.0
  %3011 = vadd.xlane.f32.xlu0 %v3010
  %v3012 = vpop.xlane.xlu0 %3011
  %v3013 = vsel %vm254, %v2993, 0.0
  %3014 = vadd.xlane.f32.xlu0 %v3013
  %v3015 = vpop.xlane.xlu0 %3014
  %v3016 = vsel %vm254, %v2995, 0.0
  %3017 = vadd.xlane.f32.xlu0 %v3016
  %v3018 = vpop.xlane.xlu0 %3017
  %v3019 = vsel %vm254, %v2997, 0.0
  %3020 = vadd.xlane.f32.xlu0 %v3019
  %v3021 = vpop.xlane.xlu0 %3020
  %v3022 = vrcp.pop %v3000
  %v3023 = vmul.f32 %v3000, %v3022
  %v3024 = vsub.f32 1.0, %v3023
  %v3025 = vmul.f32 %v3022, %v3024
  %v3026 = vadd.f32 %v3022, %v3025
  %vm3027 = vweird.f32 %v3000
  %vm3028 = vweird.f32 %v3022
  %vm3029 = vmor %vm3027, %vm3028
  %v3030 = vsel %vm3029, %v3022, %v3026
  %v3031 = vand.u32 2147483647, %v3000
  %vm3032 = vcmp.eq.f32.partialorder %v3031, 8.507059e+37
  %v3033 = vand.u32 %v3000, 2147483648
  %v3034 = vor.u32 1.1754944e-38, %v3033
  %v3035 = vsel %vm3032, %v3034, %v3030
  %v3036 = vrcp.pop %v3003
  %v3037 = vmul.f32 %v3003, %v3036
  %v3038 = vsub.f32 1.0, %v3037
  %v3039 = vmul.f32 %v3036, %v3038
  %v3040 = vadd.f32 %v3036, %v3039
  %vm3041 = vweird.f32 %v3003
  %vm3042 = vweird.f32 %v3036
  %vm3043 = vmor %vm3041, %vm3042
  %v3044 = vsel %vm3043, %v3036, %v3040
  %v3045 = vand.u32 2147483647, %v3003
  %vm3046 = vcmp.eq.f32.partialorder %v3045, 8.507059e+37
  %v3047 = vand.u32 %v3003, 2147483648
  %v3048 = vor.u32 1.1754944e-38, %v3047
  %v3049 = vsel %vm3046, %v3048, %v3044
  %v3050 = vrcp.pop %v3006
  %v3051 = vmul.f32 %v3006, %v3050
  %v3052 = vsub.f32 1.0, %v3051
  %v3053 = vmul.f32 %v3050, %v3052
  %v3054 = vadd.f32 %v3050, %v3053
  %vm3055 = vweird.f32 %v3006
  %vm3056 = vweird.f32 %v3050
  %vm3057 = vmor %vm3055, %vm3056
  %v3058 = vsel %vm3057, %v3050, %v3054
  %v3059 = vand.u32 2147483647, %v3006
  %vm3060 = vcmp.eq.f32.partialorder %v3059, 8.507059e+37
  %v3061 = vand.u32 %v3006, 2147483648
  %v3062 = vor.u32 1.1754944e-38, %v3061
  %v3063 = vsel %vm3060, %v3062, %v3058
  %v3064 = vrcp.pop %v3009
  %v3065 = vmul.f32 %v3009, %v3064
  %v3066 = vsub.f32 1.0, %v3065
  %v3067 = vmul.f32 %v3064, %v3066
  %v3068 = vadd.f32 %v3064, %v3067
  %vm3069 = vweird.f32 %v3009
  %vm3070 = vweird.f32 %v3064
  %vm3071 = vmor %vm3069, %vm3070
  %v3072 = vsel %vm3071, %v3064, %v3068
  %v3073 = vand.u32 2147483647, %v3009
  %vm3074 = vcmp.eq.f32.partialorder %v3073, 8.507059e+37
  %v3075 = vand.u32 %v3009, 2147483648
  %v3076 = vor.u32 1.1754944e-38, %v3075
  %v3077 = vsel %vm3074, %v3076, %v3072
  %v3078 = vrcp.pop %v3012
  %v3079 = vmul.f32 %v3012, %v3078
  %v3080 = vsub.f32 1.0, %v3079
  %v3081 = vmul.f32 %v3078, %v3080
  %v3082 = vadd.f32 %v3078, %v3081
  %vm3083 = vweird.f32 %v3012
  %vm3084 = vweird.f32 %v3078
  %vm3085 = vmor %vm3083, %vm3084
  %v3086 = vsel %vm3085, %v3078, %v3082
  %v3087 = vand.u32 2147483647, %v3012
  %vm3088 = vcmp.eq.f32.partialorder %v3087, 8.507059e+37
  %v3089 = vand.u32 %v3012, 2147483648
  %v3090 = vor.u32 1.1754944e-38, %v3089
  %v3091 = vsel %vm3088, %v3090, %v3086
  %v3092 = vrcp.pop %v3015
  %v3093 = vmul.f32 %v3015, %v3092
  %v3094 = vsub.f32 1.0, %v3093
  %v3095 = vmul.f32 %v3092, %v3094
  %v3096 = vadd.f32 %v3092, %v3095
  %vm3097 = vweird.f32 %v3015
  %vm3098 = vweird.f32 %v3092
  %vm3099 = vmor %vm3097, %vm3098
  %v3100 = vsel %vm3099, %v3092, %v3096
  %v3101 = vand.u32 2147483647, %v3015
  %vm3102 = vcmp.eq.f32.partialorder %v3101, 8.507059e+37
  %v3103 = vand.u32 %v3015, 2147483648
  %v3104 = vor.u32 1.1754944e-38, %v3103
  %v3105 = vsel %vm3102, %v3104, %v3100
  %v3106 = vrcp.pop %v3018
  %v3107 = vmul.f32 %v3018, %v3106
  %v3108 = vsub.f32 1.0, %v3107
  %v3109 = vmul.f32 %v3106, %v3108
  %v3110 = vadd.f32 %v3106, %v3109
  %vm3111 = vweird.f32 %v3018
  %vm3112 = vweird.f32 %v3106
  %vm3113 = vmor %vm3111, %vm3112
  %v3114 = vsel %vm3113, %v3106, %v3110
  %v3115 = vand.u32 2147483647, %v3018
  %vm3116 = vcmp.eq.f32.partialorder %v3115, 8.507059e+37
  %v3117 = vand.u32 %v3018, 2147483648
  %v3118 = vor.u32 1.1754944e-38, %v3117
  %v3119 = vsel %vm3116, %v3118, %v3114
  %v3120 = vrcp.pop %v3021
  %v3121 = vmul.f32 %v3021, %v3120
  %v3122 = vsub.f32 1.0, %v3121
  %v3123 = vmul.f32 %v3120, %v3122
  %v3124 = vadd.f32 %v3120, %v3123
  %vm3125 = vweird.f32 %v3021
  %vm3126 = vweird.f32 %v3120
  %vm3127 = vmor %vm3125, %vm3126
  %v3128 = vsel %vm3127, %v3120, %v3124
  %v3129 = vand.u32 2147483647, %v3021
  %vm3130 = vcmp.eq.f32.partialorder %v3129, 8.507059e+37
  %v3131 = vand.u32 %v3021, 2147483648
  %v3132 = vor.u32 1.1754944e-38, %v3131
  %v3133 = vsel %vm3130, %v3132, %v3128
  %v3134 = vmul.f32 %v2983, %v3035
  %v3135 = vmul.f32 %v2985, %v3049
  %v3136 = vmul.f32 %v2987, %v3063
  %v3137 = vmul.f32 %v2989, %v3077
  %v3138 = vmul.f32 %v2991, %v3091
  %v3139 = vmul.f32 %v2993, %v3105
  %v3140 = vmul.f32 %v2995, %v3119
  %v3141 = vmul.f32 %v2997, %v3133
  %v3143 = vsel %vm254, %v3134, 0
  %v3146 = vsel %vm254, %v3135, 0
  %v3149 = vsel %vm254, %v3136, 0
  %v3152 = vsel %vm254, %v3137, 0
  %v3155 = vsel %vm254, %v3138, 0
  %v3158 = vsel %vm254, %v3139, 0
  %v3161 = vsel %vm254, %v3140, 0
  %v3164 = vsel %vm254, %v3141, 0
  %v3167 = vsel %vm254, %v1977, 0
  %3169 = vmatpush.xpose.msra.mxu0 0.0
  %3170 = vmatpush.xpose.msra.mxu0 0.0
  %3171 = vmatpush.xpose.msra.mxu0 0.0
  %3172 = vmatpush.xpose.msra.mxu0 0.0
  %3173 = vmatpush.xpose.msra.mxu0 0.0
  %3174 = vmatpush.xpose.msra.mxu0 0.0
  %3175 = vmatpush.xpose.msra.mxu0 0.0
  %3176 = vmatpush.xpose.msra.mxu0 0.0
  %3177 = vmatpush.xpose.msra.mxu0 0.0
  %3178 = vmatpush.xpose.msra.mxu0 0.0
  %3179 = vmatpush.xpose.msra.mxu0 0.0
  %3180 = vmatpush.xpose.msra.mxu0 0.0
  %3181 = vmatpush.xpose.msra.mxu0 0.0
  %3182 = vmatpush.xpose.msra.mxu0 0.0
  %3183 = vmatpush.xpose.msra.mxu0 0.0
  %3184 = vmatpush.xpose.msra.mxu0 %v3167
  %3185 = vmatmul.f32.gmra.mxu0 %v3143
  %v3186 = vpop.f32.mrf.mxu0
  %v3187 = vadd.f32 0.0, %v3186
  %3188 = vmatmul.f32.gmra.mxu0 %v3146
  %v3189 = vpop.f32.mrf.mxu0
  %v3190 = vadd.f32 0.0, %v3189
  %3191 = vmatmul.f32.gmra.mxu0 %v3149
  %v3192 = vpop.f32.mrf.mxu0
  %v3193 = vadd.f32 0.0, %v3192
  %3194 = vmatmul.f32.gmra.mxu0 %v3152
  %v3195 = vpop.f32.mrf.mxu0
  %v3196 = vadd.f32 0.0, %v3195
  %3197 = vmatmul.f32.gmra.mxu0 %v3155
  %v3198 = vpop.f32.mrf.mxu0
  %v3199 = vadd.f32 0.0, %v3198
  %3200 = vmatmul.f32.gmra.mxu0 %v3158
  %v3201 = vpop.f32.mrf.mxu0
  %v3202 = vadd.f32 0.0, %v3201
  %3203 = vmatmul.f32.gmra.mxu0 %v3161
  %v3204 = vpop.f32.mrf.mxu0
  %v3205 = vadd.f32 0.0, %v3204
  %3206 = vmatmul.f32.gmra.mxu0 %v3164
  %v3207 = vpop.f32.mrf.mxu0
  %v3208 = vadd.f32 0.0, %v3207
  %3209 = vdwg.mxu0
  %v3211 = vsel %vm188, %v3187, 0
  %v3214 = vsel %vm188, %v3190, 0
  %v3217 = vsel %vm188, %v3193, 0
  %v3220 = vsel %vm188, %v3196, 0
  %v3223 = vsel %vm188, %v3199, 0
  %v3226 = vsel %vm188, %v3202, 0
  %v3229 = vsel %vm188, %v3205, 0
  %v3232 = vsel %vm188, %v3208, 0
  %3234 = vmatpush.msra.mxu0 0.0
  %3235 = vmatpush.msra.mxu0 0.0
  %3236 = vmatpush.msra.mxu0 0.0
  %3237 = vmatpush.msra.mxu0 0.0
  %3238 = vmatpush.msra.mxu0 0.0
  %3239 = vmatpush.msra.mxu0 0.0
  %3240 = vmatpush.msra.mxu0 0.0
  %3241 = vmatpush.msra.mxu0 0.0
  %3242 = vmatpush.msra.mxu0 0.0
  %3243 = vmatpush.msra.mxu0 0.0
  %3244 = vmatpush.msra.mxu0 0.0
  %3245 = vmatpush.msra.mxu0 0.0
  %3246 = vmatpush.msra.mxu0 0.0
  %3247 = vmatpush.msra.mxu0 0.0
  %3248 = vmatpush.msra.mxu0 0.0
  %3249 = vmatpush.msra.mxu0 %v46
  %3250 = vmatmul.f32.gmra.mxu0 %v3211
  %v3251 = vpop.f32.mrf.mxu0
  %v3252 = vadd.f32 0.0, %v3251
  %3253 = vmatmul.f32.gmra.mxu0 %v3214
  %v3254 = vpop.f32.mrf.mxu0
  %v3255 = vadd.f32 0.0, %v3254
  %3256 = vmatmul.f32.gmra.mxu0 %v3217
  %v3257 = vpop.f32.mrf.mxu0
  %v3258 = vadd.f32 0.0, %v3257
  %3259 = vmatmul.f32.gmra.mxu0 %v3220
  %v3260 = vpop.f32.mrf.mxu0
  %v3261 = vadd.f32 0.0, %v3260
  %3262 = vmatmul.f32.gmra.mxu0 %v3223
  %v3263 = vpop.f32.mrf.mxu0
  %v3264 = vadd.f32 0.0, %v3263
  %3265 = vmatmul.f32.gmra.mxu0 %v3226
  %v3266 = vpop.f32.mrf.mxu0
  %v3267 = vadd.f32 0.0, %v3266
  %3268 = vmatmul.f32.gmra.mxu0 %v3229
  %v3269 = vpop.f32.mrf.mxu0
  %v3270 = vadd.f32 0.0, %v3269
  %3271 = vmatmul.f32.gmra.mxu0 %v3232
  %v3272 = vpop.f32.mrf.mxu0
  %v3273 = vadd.f32 0.0, %v3272
  %3274 = vdwg.mxu0
  %v3275 = vadd.f32 %v2821, %v3252
  %v3276 = vadd.f32 %v2824, %v3255
  %v3277 = vadd.f32 %v2827, %v3258
  %v3278 = vadd.f32 %v2830, %v3261
  %v3279 = vadd.f32 %v2833, %v3264
  %v3280 = vadd.f32 %v2836, %v3267
  %v3281 = vadd.f32 %v2839, %v3270
  %v3282 = vadd.f32 %v2842, %v3273
  %3283 = vmatpush.msra.mxu0 0.0
  %3284 = vmatpush.msra.mxu0 0.0
  %3285 = vmatpush.msra.mxu0 0.0
  %3286 = vmatpush.msra.mxu0 0.0
  %3287 = vmatpush.msra.mxu0 0.0
  %3288 = vmatpush.msra.mxu0 0.0
  %3289 = vmatpush.msra.mxu0 0.0
  %3290 = vmatpush.msra.mxu0 0.0
  %3291 = vmatpush.msra.mxu0 0.0
  %3292 = vmatpush.msra.mxu0 0.0
  %3293 = vmatpush.msra.mxu0 0.0
  %3294 = vmatpush.msra.mxu0 0.0
  %3295 = vmatpush.msra.mxu0 %v35
  %3296 = vmatpush.msra.mxu0 %v34
  %3297 = vmatpush.msra.mxu0 %v33
  %3298 = vmatpush.msra.mxu0 %v32
  %3299 = vmatmul.f32.gmra.mxu0 %v1918
  %v3300 = vpop.f32.mrf.mxu0
  %v3301 = vadd.f32 0.0, %v3300
  %3302 = vmatmul.f32.gmra.mxu0 %v1921
  %v3303 = vpop.f32.mrf.mxu0
  %v3304 = vadd.f32 0.0, %v3303
  %3305 = vmatmul.f32.gmra.mxu0 %v1924
  %v3306 = vpop.f32.mrf.mxu0
  %v3307 = vadd.f32 0.0, %v3306
  %3308 = vmatmul.f32.gmra.mxu0 %v1927
  %v3309 = vpop.f32.mrf.mxu0
  %v3310 = vadd.f32 0.0, %v3309
  %3311 = vmatmul.f32.gmra.mxu0 %v1930
  %v3312 = vpop.f32.mrf.mxu0
  %v3313 = vadd.f32 0.0, %v3312
  %3314 = vmatmul.f32.gmra.mxu0 %v1933
  %v3315 = vpop.f32.mrf.mxu0
  %v3316 = vadd.f32 0.0, %v3315
  %3317 = vmatmul.f32.gmra.mxu0 %v1936
  %v3318 = vpop.f32.mrf.mxu0
  %v3319 = vadd.f32 0.0, %v3318
  %3320 = vmatmul.f32.gmra.mxu0 %v1939
  %v3321 = vpop.f32.mrf.mxu0
  %v3322 = vadd.f32 0.0, %v3321
  %3323 = vdwg.mxu0
  %v3325 = vsel %vm188, %v3301, 0
  %v3328 = vsel %vm188, %v3304, 0
  %v3331 = vsel %vm188, %v3307, 0
  %v3334 = vsel %vm188, %v3310, 0
  %v3337 = vsel %vm188, %v3313, 0
  %v3340 = vsel %vm188, %v3316, 0
  %v3343 = vsel %vm188, %v3319, 0
  %v3346 = vsel %vm188, %v3322, 0
  %3348 = vmatpush.msra.mxu0 0.0
  %3349 = vmatpush.msra.mxu0 0.0
  %3350 = vmatpush.msra.mxu0 0.0
  %3351 = vmatpush.msra.mxu0 0.0
  %3352 = vmatpush.msra.mxu0 0.0
  %3353 = vmatpush.msra.mxu0 0.0
  %3354 = vmatpush.msra.mxu0 0.0
  %3355 = vmatpush.msra.mxu0 0.0
  %3356 = vmatpush.msra.mxu0 0.0
  %3357 = vmatpush.msra.mxu0 0.0
  %3358 = vmatpush.msra.mxu0 0.0
  %3359 = vmatpush.msra.mxu0 0.0
  %3360 = vmatpush.msra.mxu0 0.0
  %3361 = vmatpush.msra.mxu0 0.0
  %3362 = vmatpush.msra.mxu0 0.0
  %3363 = vmatpush.msra.mxu0 %v1968
  %3364 = vmatmul.f32.gmra.mxu0 %v3325
  %v3365 = vpop.f32.mrf.mxu0
  %v3366 = vadd.f32 0.0, %v3365
  %3367 = vmatmul.f32.gmra.mxu0 %v3328
  %v3368 = vpop.f32.mrf.mxu0
  %v3369 = vadd.f32 0.0, %v3368
  %3370 = vmatmul.f32.gmra.mxu0 %v3331
  %v3371 = vpop.f32.mrf.mxu0
  %v3372 = vadd.f32 0.0, %v3371
  %3373 = vmatmul.f32.gmra.mxu0 %v3334
  %v3374 = vpop.f32.mrf.mxu0
  %v3375 = vadd.f32 0.0, %v3374
  %3376 = vmatmul.f32.gmra.mxu0 %v3337
  %v3377 = vpop.f32.mrf.mxu0
  %v3378 = vadd.f32 0.0, %v3377
  %3379 = vmatmul.f32.gmra.mxu0 %v3340
  %v3380 = vpop.f32.mrf.mxu0
  %v3381 = vadd.f32 0.0, %v3380
  %3382 = vmatmul.f32.gmra.mxu0 %v3343
  %v3383 = vpop.f32.mrf.mxu0
  %v3384 = vadd.f32 0.0, %v3383
  %3385 = vmatmul.f32.gmra.mxu0 %v3346
  %v3386 = vpop.f32.mrf.mxu0
  %v3387 = vadd.f32 0.0, %v3386
  %3388 = vdwg.mxu0
  %v3389 = vsel %vm254, %v3366, -inf
  %3390 = vmax.xlane.f32.xlu0 %v3389
  %v3391 = vpop.xlane.xlu0 %3390
  %v3392 = vsel %vm254, %v3369, -inf
  %3393 = vmax.xlane.f32.xlu0 %v3392
  %v3394 = vpop.xlane.xlu0 %3393
  %v3395 = vsel %vm254, %v3372, -inf
  %3396 = vmax.xlane.f32.xlu0 %v3395
  %v3397 = vpop.xlane.xlu0 %3396
  %v3398 = vsel %vm254, %v3375, -inf
  %3399 = vmax.xlane.f32.xlu0 %v3398
  %v3400 = vpop.xlane.xlu0 %3399
  %v3401 = vsel %vm254, %v3378, -inf
  %3402 = vmax.xlane.f32.xlu0 %v3401
  %v3403 = vpop.xlane.xlu0 %3402
  %v3404 = vsel %vm254, %v3381, -inf
  %3405 = vmax.xlane.f32.xlu0 %v3404
  %v3406 = vpop.xlane.xlu0 %3405
  %v3407 = vsel %vm254, %v3384, -inf
  %3408 = vmax.xlane.f32.xlu0 %v3407
  %v3409 = vpop.xlane.xlu0 %3408
  %v3410 = vsel %vm254, %v3387, -inf
  %3411 = vmax.xlane.f32.xlu0 %v3410
  %v3412 = vpop.xlane.xlu0 %3411
  %v3413 = vsub.f32 %v3366, %v3391
  %v3414 = vsub.f32 %v3369, %v3394
  %v3415 = vsub.f32 %v3372, %v3397
  %v3416 = vsub.f32 %v3375, %v3400
  %v3417 = vsub.f32 %v3378, %v3403
  %v3418 = vsub.f32 %v3381, %v3406
  %v3419 = vsub.f32 %v3384, %v3409
  %v3420 = vsub.f32 %v3387, %v3412
  %v3421 = vmul.f32 %v3413, 1.442695
  %v3422 = vpow.pop %v3421
  %v3423 = vmul.f32 %v3414, 1.442695
  %v3424 = vpow.pop %v3423
  %v3425 = vmul.f32 %v3415, 1.442695
  %v3426 = vpow.pop %v3425
  %v3427 = vmul.f32 %v3416, 1.442695
  %v3428 = vpow.pop %v3427
  %v3429 = vmul.f32 %v3417, 1.442695
  %v3430 = vpow.pop %v3429
  %v3431 = vmul.f32 %v3418, 1.442695
  %v3432 = vpow.pop %v3431
  %v3433 = vmul.f32 %v3419, 1.442695
  %v3434 = vpow.pop %v3433
  %v3435 = vmul.f32 %v3420, 1.442695
  %v3436 = vpow.pop %v3435
  %v3437 = vsel %vm254, %v3422, 0.0
  %3438 = vadd.xlane.f32.xlu0 %v3437
  %v3439 = vpop.xlane.xlu0 %3438
  %v3440 = vsel %vm254, %v3424, 0.0
  %3441 = vadd.xlane.f32.xlu0 %v3440
  %v3442 = vpop.xlane.xlu0 %3441
  %v3443 = vsel %vm254, %v3426, 0.0
  %3444 = vadd.xlane.f32.xlu0 %v3443
  %v3445 = vpop.xlane.xlu0 %3444
  %v3446 = vsel %vm254, %v3428, 0.0
  %3447 = vadd.xlane.f32.xlu0 %v3446
  %v3448 = vpop.xlane.xlu0 %3447
  %v3449 = vsel %vm254, %v3430, 0.0
  %3450 = vadd.xlane.f32.xlu0 %v3449
  %v3451 = vpop.xlane.xlu0 %3450
  %v3452 = vsel %vm254, %v3432, 0.0
  %3453 = vadd.xlane.f32.xlu0 %v3452
  %v3454 = vpop.xlane.xlu0 %3453
  %v3455 = vsel %vm254, %v3434, 0.0
  %3456 = vadd.xlane.f32.xlu0 %v3455
  %v3457 = vpop.xlane.xlu0 %3456
  %v3458 = vsel %vm254, %v3436, 0.0
  %3459 = vadd.xlane.f32.xlu0 %v3458
  %v3460 = vpop.xlane.xlu0 %3459
  %v3461 = vrcp.pop %v3439
  %v3462 = vmul.f32 %v3439, %v3461
  %v3463 = vsub.f32 1.0, %v3462
  %v3464 = vmul.f32 %v3461, %v3463
  %v3465 = vadd.f32 %v3461, %v3464
  %vm3466 = vweird.f32 %v3439
  %vm3467 = vweird.f32 %v3461
  %vm3468 = vmor %vm3466, %vm3467
  %v3469 = vsel %vm3468, %v3461, %v3465
  %v3470 = vand.u32 2147483647, %v3439
  %vm3471 = vcmp.eq.f32.partialorder %v3470, 8.507059e+37
  %v3472 = vand.u32 %v3439, 2147483648
  %v3473 = vor.u32 1.1754944e-38, %v3472
  %v3474 = vsel %vm3471, %v3473, %v3469
  %v3475 = vrcp.pop %v3442
  %v3476 = vmul.f32 %v3442, %v3475
  %v3477 = vsub.f32 1.0, %v3476
  %v3478 = vmul.f32 %v3475, %v3477
  %v3479 = vadd.f32 %v3475, %v3478
  %vm3480 = vweird.f32 %v3442
  %vm3481 = vweird.f32 %v3475
  %vm3482 = vmor %vm3480, %vm3481
  %v3483 = vsel %vm3482, %v3475, %v3479
  %v3484 = vand.u32 2147483647, %v3442
  %vm3485 = vcmp.eq.f32.partialorder %v3484, 8.507059e+37
  %v3486 = vand.u32 %v3442, 2147483648
  %v3487 = vor.u32 1.1754944e-38, %v3486
  %v3488 = vsel %vm3485, %v3487, %v3483
  %v3489 = vrcp.pop %v3445
  %v3490 = vmul.f32 %v3445, %v3489
  %v3491 = vsub.f32 1.0, %v3490
  %v3492 = vmul.f32 %v3489, %v3491
  %v3493 = vadd.f32 %v3489, %v3492
  %vm3494 = vweird.f32 %v3445
  %vm3495 = vweird.f32 %v3489
  %vm3496 = vmor %vm3494, %vm3495
  %v3497 = vsel %vm3496, %v3489, %v3493
  %v3498 = vand.u32 2147483647, %v3445
  %vm3499 = vcmp.eq.f32.partialorder %v3498, 8.507059e+37
  %v3500 = vand.u32 %v3445, 2147483648
  %v3501 = vor.u32 1.1754944e-38, %v3500
  %v3502 = vsel %vm3499, %v3501, %v3497
  %v3503 = vrcp.pop %v3448
  %v3504 = vmul.f32 %v3448, %v3503
  %v3505 = vsub.f32 1.0, %v3504
  %v3506 = vmul.f32 %v3503, %v3505
  %v3507 = vadd.f32 %v3503, %v3506
  %vm3508 = vweird.f32 %v3448
  %vm3509 = vweird.f32 %v3503
  %vm3510 = vmor %vm3508, %vm3509
  %v3511 = vsel %vm3510, %v3503, %v3507
  %v3512 = vand.u32 2147483647, %v3448
  %vm3513 = vcmp.eq.f32.partialorder %v3512, 8.507059e+37
  %v3514 = vand.u32 %v3448, 2147483648
  %v3515 = vor.u32 1.1754944e-38, %v3514
  %v3516 = vsel %vm3513, %v3515, %v3511
  %v3517 = vrcp.pop %v3451
  %v3518 = vmul.f32 %v3451, %v3517
  %v3519 = vsub.f32 1.0, %v3518
  %v3520 = vmul.f32 %v3517, %v3519
  %v3521 = vadd.f32 %v3517, %v3520
  %vm3522 = vweird.f32 %v3451
  %vm3523 = vweird.f32 %v3517
  %vm3524 = vmor %vm3522, %vm3523
  %v3525 = vsel %vm3524, %v3517, %v3521
  %v3526 = vand.u32 2147483647, %v3451
  %vm3527 = vcmp.eq.f32.partialorder %v3526, 8.507059e+37
  %v3528 = vand.u32 %v3451, 2147483648
  %v3529 = vor.u32 1.1754944e-38, %v3528
  %v3530 = vsel %vm3527, %v3529, %v3525
  %v3531 = vrcp.pop %v3454
  %v3532 = vmul.f32 %v3454, %v3531
  %v3533 = vsub.f32 1.0, %v3532
  %v3534 = vmul.f32 %v3531, %v3533
  %v3535 = vadd.f32 %v3531, %v3534
  %vm3536 = vweird.f32 %v3454
  %vm3537 = vweird.f32 %v3531
  %vm3538 = vmor %vm3536, %vm3537
  %v3539 = vsel %vm3538, %v3531, %v3535
  %v3540 = vand.u32 2147483647, %v3454
  %vm3541 = vcmp.eq.f32.partialorder %v3540, 8.507059e+37
  %v3542 = vand.u32 %v3454, 2147483648
  %v3543 = vor.u32 1.1754944e-38, %v3542
  %v3544 = vsel %vm3541, %v3543, %v3539
  %v3545 = vrcp.pop %v3457
  %v3546 = vmul.f32 %v3457, %v3545
  %v3547 = vsub.f32 1.0, %v3546
  %v3548 = vmul.f32 %v3545, %v3547
  %v3549 = vadd.f32 %v3545, %v3548
  %vm3550 = vweird.f32 %v3457
  %vm3551 = vweird.f32 %v3545
  %vm3552 = vmor %vm3550, %vm3551
  %v3553 = vsel %vm3552, %v3545, %v3549
  %v3554 = vand.u32 2147483647, %v3457
  %vm3555 = vcmp.eq.f32.partialorder %v3554, 8.507059e+37
  %v3556 = vand.u32 %v3457, 2147483648
  %v3557 = vor.u32 1.1754944e-38, %v3556
  %v3558 = vsel %vm3555, %v3557, %v3553
  %v3559 = vrcp.pop %v3460
  %v3560 = vmul.f32 %v3460, %v3559
  %v3561 = vsub.f32 1.0, %v3560
  %v3562 = vmul.f32 %v3559, %v3561
  %v3563 = vadd.f32 %v3559, %v3562
  %vm3564 = vweird.f32 %v3460
  %vm3565 = vweird.f32 %v3559
  %vm3566 = vmor %vm3564, %vm3565
  %v3567 = vsel %vm3566, %v3559, %v3563
  %v3568 = vand.u32 2147483647, %v3460
  %vm3569 = vcmp.eq.f32.partialorder %v3568, 8.507059e+37
  %v3570 = vand.u32 %v3460, 2147483648
  %v3571 = vor.u32 1.1754944e-38, %v3570
  %v3572 = vsel %vm3569, %v3571, %v3567
  %v3573 = vmul.f32 %v3422, %v3474
  %v3574 = vmul.f32 %v3424, %v3488
  %v3575 = vmul.f32 %v3426, %v3502
  %v3576 = vmul.f32 %v3428, %v3516
  %v3577 = vmul.f32 %v3430, %v3530
  %v3578 = vmul.f32 %v3432, %v3544
  %v3579 = vmul.f32 %v3434, %v3558
  %v3580 = vmul.f32 %v3436, %v3572
  %v3582 = vsel %vm254, %v3573, 0
  %v3585 = vsel %vm254, %v3574, 0
  %v3588 = vsel %vm254, %v3575, 0
  %v3591 = vsel %vm254, %v3576, 0
  %v3594 = vsel %vm254, %v3577, 0
  %v3597 = vsel %vm254, %v3578, 0
  %v3600 = vsel %vm254, %v3579, 0
  %v3603 = vsel %vm254, %v3580, 0
  %v3606 = vsel %vm254, %v1980, 0
  %3608 = vmatpush.xpose.msra.mxu0 0.0
  %3609 = vmatpush.xpose.msra.mxu0 0.0
  %3610 = vmatpush.xpose.msra.mxu0 0.0
  %3611 = vmatpush.xpose.msra.mxu0 0.0
  %3612 = vmatpush.xpose.msra.mxu0 0.0
  %3613 = vmatpush.xpose.msra.mxu0 0.0
  %3614 = vmatpush.xpose.msra.mxu0 0.0
  %3615 = vmatpush.xpose.msra.mxu0 0.0
  %3616 = vmatpush.xpose.msra.mxu0 0.0
  %3617 = vmatpush.xpose.msra.mxu0 0.0
  %3618 = vmatpush.xpose.msra.mxu0 0.0
  %3619 = vmatpush.xpose.msra.mxu0 0.0
  %3620 = vmatpush.xpose.msra.mxu0 0.0
  %3621 = vmatpush.xpose.msra.mxu0 0.0
  %3622 = vmatpush.xpose.msra.mxu0 0.0
  %3623 = vmatpush.xpose.msra.mxu0 %v3606
  %3624 = vmatmul.f32.gmra.mxu0 %v3582
  %v3625 = vpop.f32.mrf.mxu0
  %v3626 = vadd.f32 0.0, %v3625
  %3627 = vmatmul.f32.gmra.mxu0 %v3585
  %v3628 = vpop.f32.mrf.mxu0
  %v3629 = vadd.f32 0.0, %v3628
  %3630 = vmatmul.f32.gmra.mxu0 %v3588
  %v3631 = vpop.f32.mrf.mxu0
  %v3632 = vadd.f32 0.0, %v3631
  %3633 = vmatmul.f32.gmra.mxu0 %v3591
  %v3634 = vpop.f32.mrf.mxu0
  %v3635 = vadd.f32 0.0, %v3634
  %3636 = vmatmul.f32.gmra.mxu0 %v3594
  %v3637 = vpop.f32.mrf.mxu0
  %v3638 = vadd.f32 0.0, %v3637
  %3639 = vmatmul.f32.gmra.mxu0 %v3597
  %v3640 = vpop.f32.mrf.mxu0
  %v3641 = vadd.f32 0.0, %v3640
  %3642 = vmatmul.f32.gmra.mxu0 %v3600
  %v3643 = vpop.f32.mrf.mxu0
  %v3644 = vadd.f32 0.0, %v3643
  %3645 = vmatmul.f32.gmra.mxu0 %v3603
  %v3646 = vpop.f32.mrf.mxu0
  %v3647 = vadd.f32 0.0, %v3646
  %3648 = vdwg.mxu0
  %v3650 = vsel %vm188, %v3626, 0
  %v3653 = vsel %vm188, %v3629, 0
  %v3656 = vsel %vm188, %v3632, 0
  %v3659 = vsel %vm188, %v3635, 0
  %v3662 = vsel %vm188, %v3638, 0
  %v3665 = vsel %vm188, %v3641, 0
  %v3668 = vsel %vm188, %v3644, 0
  %v3671 = vsel %vm188, %v3647, 0
  %3673 = vmatpush.msra.mxu0 0.0
  %3674 = vmatpush.msra.mxu0 0.0
  %3675 = vmatpush.msra.mxu0 0.0
  %3676 = vmatpush.msra.mxu0 0.0
  %3677 = vmatpush.msra.mxu0 0.0
  %3678 = vmatpush.msra.mxu0 0.0
  %3679 = vmatpush.msra.mxu0 0.0
  %3680 = vmatpush.msra.mxu0 0.0
  %3681 = vmatpush.msra.mxu0 0.0
  %3682 = vmatpush.msra.mxu0 0.0
  %3683 = vmatpush.msra.mxu0 0.0
  %3684 = vmatpush.msra.mxu0 0.0
  %3685 = vmatpush.msra.mxu0 0.0
  %3686 = vmatpush.msra.mxu0 0.0
  %3687 = vmatpush.msra.mxu0 0.0
  %3688 = vmatpush.msra.mxu0 %v47
  %3689 = vmatmul.f32.gmra.mxu0 %v3650
  %v3690 = vpop.f32.mrf.mxu0
  %v3691 = vadd.f32 0.0, %v3690
  %3692 = vmatmul.f32.gmra.mxu0 %v3653
  %v3693 = vpop.f32.mrf.mxu0
  %v3694 = vadd.f32 0.0, %v3693
  %3695 = vmatmul.f32.gmra.mxu0 %v3656
  %v3696 = vpop.f32.mrf.mxu0
  %v3697 = vadd.f32 0.0, %v3696
  %3698 = vmatmul.f32.gmra.mxu0 %v3659
  %v3699 = vpop.f32.mrf.mxu0
  %v3700 = vadd.f32 0.0, %v3699
  %3701 = vmatmul.f32.gmra.mxu0 %v3662
  %v3702 = vpop.f32.mrf.mxu0
  %v3703 = vadd.f32 0.0, %v3702
  %3704 = vmatmul.f32.gmra.mxu0 %v3665
  %v3705 = vpop.f32.mrf.mxu0
  %v3706 = vadd.f32 0.0, %v3705
  %3707 = vmatmul.f32.gmra.mxu0 %v3668
  %v3708 = vpop.f32.mrf.mxu0
  %v3709 = vadd.f32 0.0, %v3708
  %3710 = vmatmul.f32.gmra.mxu0 %v3671
  %v3711 = vpop.f32.mrf.mxu0
  %v3712 = vadd.f32 0.0, %v3711
  %3713 = vdwg.mxu0
  %v3714 = vadd.f32 %v3275, %v3691
  %v3715 = vadd.f32 %v3276, %v3694
  %v3716 = vadd.f32 %v3277, %v3697
  %v3717 = vadd.f32 %v3278, %v3700
  %v3718 = vadd.f32 %v3279, %v3703
  %v3719 = vadd.f32 %v3280, %v3706
  %v3720 = vadd.f32 %v3281, %v3709
  %v3721 = vadd.f32 %v3282, %v3712
  %v3722 = vadd.f32 %v3714, %v1890
  %v3723 = vadd.f32 %v3715, %v1890
  %v3724 = vadd.f32 %v3716, %v1890
  %v3725 = vadd.f32 %v3717, %v1890
  %v3726 = vadd.f32 %v3718, %v1890
  %v3727 = vadd.f32 %v3719, %v1890
  %v3728 = vadd.f32 %v3720, %v1890
  %v3729 = vadd.f32 %v3721, %v1890
  %s3730 = scalar_lea.vmem %s5, 64
  %3731 = vst.msk [vmem:[%s3730] sm:$0xff] %vm57, %v3722
  %3732 = vst.msk [vmem:[%s3730 + $0x8] sm:$0xff] %vm57, %v3723
  %3733 = vst.msk [vmem:[%s3730 + $0x10] sm:$0xff] %vm57, %v3724
  %3734 = vst.msk [vmem:[%s3730 + $0x18] sm:$0xff] %vm57, %v3725
  %3735 = vst.msk [vmem:[%s3730 + $0x20] sm:$0xff] %vm57, %v3726
  %3736 = vst.msk [vmem:[%s3730 + $0x28] sm:$0xff] %vm57, %v3727
  %3737 = vst.msk [vmem:[%s3730 + $0x30] sm:$0xff] %vm57, %v3728
  %3738 = vst.msk [vmem:[%s3730 + $0x38] sm:$0xff] %vm57, %v3729
  // Predicated region
  $region22: #{attention.1} parent=0 // pred_check
    _
  $region23: #{attention.1} parent=0 // pred_check_branch
    %3740 = sbr.rel (0) target = $region25
  $region24: #{attention.1} parent=0 // pred_region
    _
  $region25: #{attention.1} parent=0 // pred_fallthru
    _
  // Predicated region
  $region26: #{attention.1} parent=0 // pred_check
    _
  $region27: #{attention.1} parent=0 // pred_check_branch
    %3742 = sbr.rel (0) target = $region29
  $region28: #{attention.1} parent=0 // pred_region
    _
  $region29: #{attention.1} parent=0 // pred_fallthru
    _

</llo_original>
